<compile_context>
chip_gen: v7x
topology: tpu7x:2x2x1
jax: 0.10.0
libtpu: 0.0.40
codegen_flags: <defaults>
</compile_context>

<pallas_src>
import math
import functools

import jax
import jax.numpy as jnp
from jax import lax
from jax.experimental import pallas as pl
from jax.experimental.pallas import tpu as pltpu


# ----------------------------------------------------------------------------
# small helpers
# ----------------------------------------------------------------------------
def _layer_norm(x, gamma, beta, eps):
    """Single-pass LayerNorm: one sweep accumulates E[x] and E[x^2]."""
    mu = jnp.mean(x, axis=-1, keepdims=True)
    msq = jnp.mean(x * x, axis=-1, keepdims=True)
    var = msq - mu * mu
    return (x - mu) * lax.rsqrt(var + eps) * gamma + beta


def _gelu_tanh(x):
    # matches torch.nn.functional.gelu(..., approximate='tanh')
    c = math.sqrt(2.0 / math.pi)
    return 0.5 * x * (1.0 + jnp.tanh(c * (x + 0.044715 * x * x * x)))


def _pick_tile(n, target, multiple):
    """Largest divisor of n that is <= target and a multiple of `multiple`.

    Falls back to the full dimension (always a legal block shape) when no
    such divisor exists, e.g. S = 729 or I = 4304 at so400m shapes.
    """
    for t in range(min(n, target), 0, -1):
        if n % t == 0 and t % multiple == 0:
            return t
    return n


def _vmem_limit_bytes():
    """Generation-aware scoped-VMEM limit (~7/8 of physical VMEM)."""
    try:
        cap = int(pltpu.get_tpu_info().vmem_capacity_bytes)
        return cap * 7 // 8           # 112 MiB on v5e/v6e, 56 MiB on v7x
    except Exception:                  # pragma: no cover - conservative default
        return 64 * 1024 * 1024


def _const_spec(shape):
    """Constant-index (weight/bias) block, single-buffered.

    The block index never changes across the grid, so a second pipeline
    buffer only wastes VMEM.  No silent fallback: if Buffered is rejected
    we want a loud failure, not 2x weight residency.
    """
    return pl.BlockSpec(shape, lambda *_: (0,) * len(shape),
                        pipeline_mode=pl.Buffered(1))


# ----------------------------------------------------------------------------
# one-time parameter preprocessing (hoisted out of the per-call path)
# ----------------------------------------------------------------------------
def prepare_params(params, compute_dtype=jnp.bfloat16):
    """Fuse Q/K/V into one [D, 3D] weight (columns ordered [qkv, head, d_k])
    and cast matmul weights to the compute dtype.  Biases / LN params stay
    f32 (added after the f32 MXU accumulation)."""
    cdt = compute_dtype
    f32 = lambda a: a.astype(jnp.float32)
    return dict(
        ln1_g=f32(params["ln1_g"]), ln1_b=f32(params["ln1_b"]),
        w_qkv=jnp.concatenate([params["wq"], params["wk"], params["wv"]],
                              axis=1).astype(cdt),
        b_qkv=jnp.concatenate([params["bq"], params["bk"], params["bv"]],
                              axis=1).astype(jnp.float32),
        wo=params["wo"].astype(cdt), bo=f32(params["bo"]),
        ln2_g=f32(params["ln2_g"]), ln2_b=f32(params["ln2_b"]),
        w1=params["w1"].astype(cdt), b1=f32(params["b1"]),
        w2=params["w2"].astype(cdt), b2=f32(params["b2"]),
    )


# ----------------------------------------------------------------------------
# kernel 1: LayerNorm1 + fused QKV projection -> head-major q / k / v
# ----------------------------------------------------------------------------
def _ln1_qkv_kernel(x_ref, g_ref, b_ref, wqkv_ref, bqkv_ref,
                    q_ref, k_ref, v_ref, *, n_heads, d_k, eps):
    ts, D = x_ref.shape[1], x_ref.shape[2]
    cdt = wqkv_ref.dtype

    x = x_ref[0].astype(jnp.float32)                       # (ts, D)
    h = _layer_norm(x, g_ref[...], b_ref[...], eps)

    # one (ts, D) @ (D, 3D) MXU burst, f32 accumulate
    qkv = jnp.dot(h.astype(cdt), wqkv_ref[...],
                  preferred_element_type=jnp.float32) + bqkv_ref[...]

    def heads(t):                                          # (ts, D) -> (H, ts, d_k)
        return jnp.transpose(t.reshape(ts, n_heads, d_k), (1, 0, 2))

    q_ref[0] = heads(qkv[:, 0 * D:1 * D]).astype(q_ref.dtype)
    k_ref[0] = heads(qkv[:, 1 * D:2 * D]).astype(k_ref.dtype)
    v_ref[0] = heads(qkv[:, 2 * D:3 * D]).astype(v_ref.dtype)


# ----------------------------------------------------------------------------
# kernel 2: flash attention (online softmax, per batch / head / q-tile)
# ----------------------------------------------------------------------------
def _flash_attn_kernel(q_ref, k_ref, v_ref, o_ref, m_sc, l_sc, acc_sc,
                       *, scale, approx_recip):
    ki = pl.program_id(3)
    cdt = q_ref.dtype

    @pl.when(ki == 0)
    def _():
        m_sc[...] = jnp.full_like(m_sc, -jnp.inf)
        l_sc[...] = jnp.zeros_like(l_sc)
        acc_sc[...] = jnp.zeros_like(acc_sc)

    q = q_ref[0, 0]                                        # (tq, d_k)
    k = k_ref[0, 0]                                        # (tk, d_k)
    v = v_ref[0, 0]                                        # (tk, d_k)

    # scores tile only — never the full (H, S, S) tensor
    s = lax.dot_general(q, k, (((1,), (1,)), ((), ())),
                        preferred_element_type=jnp.float32) * scale
    m_prev = m_sc[...]
    m_new = jnp.maximum(m_prev, jnp.max(s, axis=-1, keepdims=True))
    alpha = jnp.exp(m_prev - m_new)
    p = jnp.exp(s - m_new)                                 # mask=None, dropout=0.0
    l_sc[...] = alpha * l_sc[...] + jnp.sum(p, axis=-1, keepdims=True)
    acc_sc[...] = alpha * acc_sc[...] + jnp.dot(
        p.astype(cdt), v, preferred_element_type=jnp.float32)
    m_sc[...] = m_new

    @pl.when(ki == pl.num_programs(3) - 1)
    def _():
        o_ref[0, 0] = (acc_sc[...] *
                       pl.reciprocal(l_sc[...], approx=approx_recip)
                       ).astype(o_ref.dtype)


# ----------------------------------------------------------------------------
# kernel 3: output projection + residual + LayerNorm2 + MLP (I-tiled) + residual
# ----------------------------------------------------------------------------
def _out_proj_mlp_kernel(ctx_ref, x_ref, wo_ref, bo_ref, ln2_g_ref, ln2_b_ref,
                         w1_ref, b1_ref, w2_ref, b2_ref, out_ref,
                         x2_sc, h2_sc, acc_sc, *, eps):
    i = pl.program_id(2)
    cdt = wo_ref.dtype
    H, tq, dk = ctx_ref.shape[1], ctx_ref.shape[2], ctx_ref.shape[3]

    @pl.when(i == 0)
    def _():
        # merge heads, output projection, residual, LN2 — once per q-tile
        ctx = jnp.transpose(ctx_ref[0], (1, 0, 2)).reshape(tq, H * dk)
        attn = jnp.dot(ctx.astype(cdt), wo_ref[...],
                       preferred_element_type=jnp.float32) + bo_ref[...]
        x2 = x_ref[0].astype(jnp.float32) + attn
        x2_sc[...] = x2
        h2_sc[...] = _layer_norm(x2, ln2_g_ref[...], ln2_b_ref[...],
                                 eps).astype(h2_sc.dtype)
        acc_sc[...] = jnp.zeros_like(acc_sc)

    # stream one w1 column-block / w2 row-block per grid step
    g = jnp.dot(h2_sc[...], w1_ref[...],
                preferred_element_type=jnp.float32) + b1_ref[...]
    g = _gelu_tanh(g)
    acc_sc[...] += jnp.dot(g.astype(cdt), w2_ref[...],
                           preferred_element_type=jnp.float32)

    @pl.when(i == pl.num_programs(2) - 1)
    def _():
        out_ref[0] = (x2_sc[...] + acc_sc[...] + b2_ref[...]).astype(out_ref.dtype)


# ----------------------------------------------------------------------------
# wrapper
# ----------------------------------------------------------------------------
def _siglip_encoder_layer_impl(x, prep, *, n_heads, eps, compute_dtype,
                               seq_tile, mlp_tile):
    B, S, D = x.shape
    H = n_heads
    d_k = D // n_heads
    I = prep["w1"].shape[1]
    cdt = compute_dtype

    ts = _pick_tile(S, seq_tile, 8)       # sequence tile (q and kv)
    ti = _pick_tile(I, mlp_tile, 128)     # MLP intermediate tile
    ns, ni = S // ts, I // ti

    vmem_limit = _vmem_limit_bytes()
    cbytes = jnp.dtype(cdt).itemsize

    # ---- 1. LN1 + fused QKV projection ------------------------------------
    qkv_shape = jax.ShapeDtypeStruct((B, H, S, d_k), cdt)
    q, k, v = pl.pallas_call(
        functools.partial(_ln1_qkv_kernel, n_heads=H, d_k=d_k, eps=eps),
        out_shape=(qkv_shape, qkv_shape, qkv_shape),
        grid_spec=pltpu.PrefetchScalarGridSpec(
            num_scalar_prefetch=0,
            grid=(B, ns),
            in_specs=[
                pl.BlockSpec((1, ts, D), lambda b, s: (b, s, 0)),
                _const_spec((1, D)), _const_spec((1, D)),
                _const_spec((D, 3 * D)), _const_spec((1, 3 * D)),
            ],
            out_specs=[pl.BlockSpec((1, H, ts, d_k),
                                    lambda b, s: (b, 0, s, 0))] * 3,
        ),
        compiler_params=pltpu.CompilerParams(
            dimension_semantics=("parallel", "parallel"),
            vmem_limit_bytes=vmem_limit),
        cost_estimate=pl.CostEstimate(
            flops=int(2 * B * S * D * 3 * D),
            transcendentals=int(B * S),
            bytes_accessed=int(4 * B * S * D + 3 * B * S * D * cbytes
                               + 3 * D * D * cbytes)),
    )(x, prep["ln1_g"], prep["ln1_b"], prep["w_qkv"], prep["b_qkv"])

    # ---- 2. flash attention -------------------------------------------------
    ctx = pl.pallas_call(
        functools.partial(_flash_attn_kernel,
                          scale=1.0 / math.sqrt(d_k),
                          approx_recip=(cdt != jnp.float32)),
        out_shape=jax.ShapeDtypeStruct((B, H, S, d_k), cdt),
        grid_spec=pltpu.PrefetchScalarGridSpec(
            num_scalar_prefetch=0,
            grid=(B, H, ns, ns),
            in_specs=[
                pl.BlockSpec((1, 1, ts, d_k), lambda b, h, qi, ki: (b, h, qi, 0)),
                pl.BlockSpec((1, 1, ts, d_k), lambda b, h, qi, ki: (b, h, ki, 0)),
                pl.BlockSpec((1, 1, ts, d_k), lambda b, h, qi, ki: (b, h, ki, 0)),
            ],
            out_specs=pl.BlockSpec((1, 1, ts, d_k),
                                   lambda b, h, qi, ki: (b, h, qi, 0)),
            scratch_shapes=[pltpu.VMEM((ts, 1), jnp.float32),
                            pltpu.VMEM((ts, 1), jnp.float32),
                            pltpu.VMEM((ts, d_k), jnp.float32)],
        ),
        compiler_params=pltpu.CompilerParams(
            dimension_semantics=("parallel", "parallel", "parallel", "arbitrary"),
            vmem_limit_bytes=vmem_limit),
        cost_estimate=pl.CostEstimate(
            flops=int(4 * B * S * S * D),
            transcendentals=int(2 * B * H * S * S),
            bytes_accessed=int((2 * ns + 2) * B * S * D * cbytes)),
    )(q, k, v)

    # ---- 3. wo projection + residual + LN2 + MLP + residual -----------------
    out = pl.pallas_call(
        functools.partial(_out_proj_mlp_kernel, eps=eps),
        out_shape=jax.ShapeDtypeStruct((B, S, D), x.dtype),
        grid_spec=pltpu.PrefetchScalarGridSpec(
            num_scalar_prefetch=0,
            grid=(B, ns, ni),
            in_specs=[
                pl.BlockSpec((1, H, ts, d_k), lambda b, s, i: (b, 0, s, 0)),
                pl.BlockSpec((1, ts, D), lambda b, s, i: (b, s, 0)),
                _const_spec((D, D)), _const_spec((1, D)),         # wo, bo
                _const_spec((1, D)), _const_spec((1, D)),         # ln2 gamma/beta
                pl.BlockSpec((D, ti), lambda b, s, i: (0, i)),    # w1 col block
                pl.BlockSpec((1, ti), lambda b, s, i: (0, i)),    # b1 block
                pl.BlockSpec((ti, D), lambda b, s, i: (i, 0)),    # w2 row block
                _const_spec((1, D)),                              # b2
            ],
            out_specs=pl.BlockSpec((1, ts, D), lambda b, s, i: (b, s, 0)),
            scratch_shapes=[pltpu.VMEM((ts, D), jnp.float32),     # x2 (residual)
                            pltpu.VMEM((ts, D), cdt),             # LN2 output
                            pltpu.VMEM((ts, D), jnp.float32)],    # MLP accumulator
        ),
        compiler_params=pltpu.CompilerParams(
            dimension_semantics=("parallel", "parallel", "arbitrary"),
            vmem_limit_bytes=vmem_limit),
        cost_estimate=pl.CostEstimate(
            flops=int(2 * B * S * D * D + 4 * B * S * D * I),
            transcendentals=int(B * S * I),
            bytes_accessed=int((D * D + 2 * D * I) * cbytes + 2 * B * S * D * 4)),
    )(ctx, x, prep["wo"], prep["bo"], prep["ln2_g"], prep["ln2_b"],
      prep["w1"], prep["b1"], prep["w2"], prep["b2"])

    return out


@functools.partial(jax.jit,
                   static_argnames=("n_heads", "eps", "compute_dtype",
                                    "seq_tile", "mlp_tile"))
def siglip_encoder_layer(x, prep, *, n_heads, eps,
                         compute_dtype=jnp.bfloat16,
                         seq_tile=256, mlp_tile=1024):
    return _siglip_encoder_layer_impl(
        x, prep, n_heads=n_heads, eps=eps, compute_dtype=compute_dtype,
        seq_tile=seq_tile, mlp_tile=mlp_tile)


# ----------------------------------------------------------------------------
# pure-JAX reference mirroring the PyTorch forward
# ----------------------------------------------------------------------------
def reference_forward(x, p, *, n_heads, eps):
    B, S, D = x.shape
    d_k = D // n_heads
    h = _layer_norm(x, p["ln1_g"], p["ln1_b"], eps)
    q = h @ p["wq"] + p["bq"]
    k = h @ p["wk"] + p["bk"]
    v = h @ p["wv"] + p["bv"]
    q = q.reshape(B, S, n_heads, d_k).transpose(0, 2, 1, 3)
    k = k.reshape(B, S, n_heads, d_k).transpose(0, 2, 1, 3)
    v = v.reshape(B, S, n_heads, d_k).transpose(0, 2, 1, 3)
    s = jnp.einsum("bhqd,bhkd->bhqk", q, k) / math.sqrt(d_k)
    a = jax.nn.softmax(s, axis=-1)
    o = jnp.einsum("bhqk,bhkd->bhqd", a, v).transpose(0, 2, 1, 3).reshape(B, S, D)
    o = o @ p["wo"] + p["bo"]
    x2 = x + o
    h2 = _layer_norm(x2, p["ln2_g"], p["ln2_b"], eps)
    g = _gelu_tanh(h2 @ p["w1"] + p["b1"])
    return x2 + g @ p["w2"] + p["b2"]


if __name__ == "__main__":
    # Small SiglipVisionConfig-like sizes: hidden=32, heads=4, intermediate=64.
    B, S, D, H, I = 2, 8, 32, 4, 64
    eps = 1e-6

    key = jax.random.PRNGKey(0)
    ks = jax.random.split(key, 13)

    def lin(kw, kb, fan_in, fan_out):
        # deterministic init; weight stored as [in, out] (pre-transposed)
        w = jax.random.normal(kw, (fan_in, fan_out), jnp.float32) * 0.05
        b = jax.random.normal(kb, (1, fan_out), jnp.float32) * 0.05
        return w, b

    params = {}
    params["wq"], params["bq"] = lin(ks[0], ks[1], D, D)
    params["wk"], params["bk"] = lin(ks[2], ks[3], D, D)
    params["wv"], params["bv"] = lin(ks[4], ks[5], D, D)
    params["wo"], params["bo"] = lin(ks[6], ks[7], D, D)
    params["w1"], params["b1"] = lin(ks[8], ks[9], D, I)
    params["w2"], params["b2"] = lin(ks[10], ks[11], I, D)
    params["ln1_g"] = jnp.ones((1, D), jnp.float32)
    params["ln1_b"] = jnp.zeros((1, D), jnp.float32)
    params["ln2_g"] = jnp.ones((1, D), jnp.float32)
    params["ln2_b"] = jnp.zeros((1, D), jnp.float32)

    x = jax.random.normal(ks[12], (B, S, D), jnp.float32)

    ref = reference_forward(x, params, n_heads=H, eps=eps)

    # f32 compute path: tight correctness check against the pure-JAX reference.
    prep_f32 = prepare_params(params, jnp.float32)
    out_f32 = jax.block_until_ready(
        siglip_encoder_layer(x, prep_f32, n_heads=H, eps=eps,
                             compute_dtype=jnp.float32))
    assert out_f32.shape == (B, S, D)
    assert jnp.allclose(out_f32, ref, atol=2e-4, rtol=2e-4), "f32 mismatch vs reference"

    # bf16 compute path (production default): looser check, exercises the
    # reduced-precision MXU path and the approx softmax reciprocal.
    prep_bf16 = prepare_params(params, jnp.bfloat16)
    out_bf16 = jax.block_until_ready(
        siglip_encoder_layer(x, prep_bf16, n_heads=H, eps=eps,
                             compute_dtype=jnp.bfloat16))
    assert out_bf16.shape == (B, S, D)
    assert jnp.allclose(out_bf16, ref, atol=1e-1, rtol=1e-1), "bf16 mismatch vs reference"

    print("KERNEL_OK")
</pallas_src>

<mosaic_0001>
module attributes {stable_mosaic.version = 11 : i64} {
  func.func @_flash_attn_kernel(%arg0: i32, %arg1: i32, %arg2: i32, %arg3: i32, %arg4: memref<1x1x8x8xf32, #tpu.memory_space<vmem>>, %arg5: memref<1x1x8x8xf32, #tpu.memory_space<vmem>>, %arg6: memref<1x1x8x8xf32, #tpu.memory_space<vmem>>, %arg7: memref<1x1x8x8xf32, #tpu.memory_space<vmem>>, %arg8: memref<8x1xf32, #tpu.memory_space<vmem>>, %arg9: memref<8x1xf32, #tpu.memory_space<vmem>>, %arg10: memref<8x8xf32, #tpu.memory_space<vmem>>) attributes {dimension_semantics = [#tpu.dimension_semantics<parallel>, #tpu.dimension_semantics<parallel>, #tpu.dimension_semantics<parallel>, #tpu.dimension_semantics<arbitrary>], iteration_bounds = array<i64: 2, 4, 1, 1>, scalar_prefetch = 0 : i64, scratch_operands = 3 : i64, tpu.core_type = #tpu.core_type<tc>, window_params = [{transform_indices = @transform_0, window_bounds = array<i64: 1, 1, 8, 8>}, {transform_indices = @transform_1, window_bounds = array<i64: 1, 1, 8, 8>}, {transform_indices = @transform_2, window_bounds = array<i64: 1, 1, 8, 8>}, {transform_indices = @transform_3, window_bounds = array<i64: 1, 1, 8, 8>}]} {
    %c0_i32 = arith.constant 0 : i32
    %0 = arith.cmpi eq, %arg3, %c0_i32 : i32
    %1 = arith.extui %0 : i1 to i32
    %c0_i32_0 = arith.constant 0 : i32
    %2 = arith.cmpi ne, %1, %c0_i32_0 : i32
    scf.if %2 {
      %cst_30 = arith.constant 0xFF800000 : f32
      %37 = vector.broadcast %cst_30 : f32 to vector<8x1xf32>
      %c0_31 = arith.constant 0 : index
      %c0_32 = arith.constant 0 : index
      %38 = vector.load %arg8[%c0_31, %c0_32] : memref<8x1xf32, #tpu.memory_space<vmem>>, vector<8x1xf32>
      tpu.vector_store %arg8[%c0_31, %c0_32], %37 {strides = array<i32>} : memref<8x1xf32, #tpu.memory_space<vmem>>, vector<8x1xf32>,
      %cst_33 = arith.constant 0.000000e+00 : f32
      %39 = vector.broadcast %cst_33 : f32 to vector<8x1xf32>
      %c0_34 = arith.constant 0 : index
      %c0_35 = arith.constant 0 : index
      %40 = vector.load %arg9[%c0_34, %c0_35] : memref<8x1xf32, #tpu.memory_space<vmem>>, vector<8x1xf32>
      tpu.vector_store %arg9[%c0_34, %c0_35], %39 {strides = array<i32>} : memref<8x1xf32, #tpu.memory_space<vmem>>, vector<8x1xf32>,
      %cst_36 = arith.constant 0.000000e+00 : f32
      %41 = vector.broadcast %cst_36 : f32 to vector<8x8xf32>
      %c0_37 = arith.constant 0 : index
      %c0_38 = arith.constant 0 : index
      %42 = vector.load %arg10[%c0_37, %c0_38] : memref<8x8xf32, #tpu.memory_space<vmem>>, vector<8x8xf32>
      tpu.vector_store %arg10[%c0_37, %c0_38], %41 {strides = array<i32>} : memref<8x8xf32, #tpu.memory_space<vmem>>, vector<8x8xf32>,
    } else {
    }
    %c0 = arith.constant 0 : index
    %c0_1 = arith.constant 0 : index
    %c0_2 = arith.constant 0 : index
    %c0_3 = arith.constant 0 : index
    %3 = vector.load %arg4[%c0, %c0_1, %c0_2, %c0_3] : memref<1x1x8x8xf32, #tpu.memory_space<vmem>>, vector<1x1x8x8xf32>
    %4 = vector.shape_cast %3 : vector<1x1x8x8xf32> to vector<8x8xf32>
    %c0_4 = arith.constant 0 : index
    %c0_5 = arith.constant 0 : index
    %c0_6 = arith.constant 0 : index
    %c0_7 = arith.constant 0 : index
    %5 = vector.load %arg5[%c0_4, %c0_5, %c0_6, %c0_7] : memref<1x1x8x8xf32, #tpu.memory_space<vmem>>, vector<1x1x8x8xf32>
    %6 = vector.shape_cast %5 : vector<1x1x8x8xf32> to vector<8x8xf32>
    %c0_8 = arith.constant 0 : index
    %c0_9 = arith.constant 0 : index
    %c0_10 = arith.constant 0 : index
    %c0_11 = arith.constant 0 : index
    %7 = vector.load %arg6[%c0_8, %c0_9, %c0_10, %c0_11] : memref<1x1x8x8xf32, #tpu.memory_space<vmem>>, vector<1x1x8x8xf32>
    %8 = vector.shape_cast %7 : vector<1x1x8x8xf32> to vector<8x8xf32>
    %cst = arith.constant dense<0.000000e+00> : vector<8x8xf32>
    %9 = tpu.matmul %4, %6, %cst {dimension_numbers = #tpu.dot_dimension_numbers<[1], [1], [0], [0], [0, 0, 1, 0], [], []>} : vector<8x8xf32>, vector<8x8xf32>, vector<8x8xf32> -> vector<8x8xf32>
    %cst_12 = arith.constant 0.353553385 : f32
    %10 = vector.broadcast %cst_12 : f32 to vector<8x8xf32>
    %11 = arith.mulf %9, %10 : vector<8x8xf32>
    %c0_13 = arith.constant 0 : index
    %c0_14 = arith.constant 0 : index
    %12 = vector.load %arg8[%c0_13, %c0_14] : memref<8x1xf32, #tpu.memory_space<vmem>>, vector<8x1xf32>
    %cst_15 = arith.constant dense<0xFF800000> : vector<8xf32>
    %13 = vector.multi_reduction <maximumf>, %11, %cst_15 [1] : vector<8x8xf32> to vector<8xf32>
    %14 = vector.shape_cast %13 : vector<8xf32> to vector<8x1xf32>
    %15 = arith.maximumf %12, %14 : vector<8x1xf32>
    %16 = arith.subf %12, %15 : vector<8x1xf32>
    %17 = math.exp %16 : vector<8x1xf32>
    %18 = vector.broadcast %15 : vector<8x1xf32> to vector<8x8xf32>
    %19 = arith.subf %11, %18 : vector<8x8xf32>
    %20 = math.exp %19 : vector<8x8xf32>
    %c0_16 = arith.constant 0 : index
    %c0_17 = arith.constant 0 : index
    %21 = vector.load %arg9[%c0_16, %c0_17] : memref<8x1xf32, #tpu.memory_space<vmem>>, vector<8x1xf32>
    %22 = arith.mulf %17, %21 : vector<8x1xf32>
    %cst_18 = arith.constant dense<0.000000e+00> : vector<8xf32>
    %23 = vector.multi_reduction <add>, %20, %cst_18 [1] : vector<8x8xf32> to vector<8xf32>
    %24 = vector.shape_cast %23 : vector<8xf32> to vector<8x1xf32>
    %25 = arith.addf %22, %24 : vector<8x1xf32>
    %c0_19 = arith.constant 0 : index
    %c0_20 = arith.constant 0 : index
    %26 = vector.load %arg9[%c0_19, %c0_20] : memref<8x1xf32, #tpu.memory_space<vmem>>, vector<8x1xf32>
    tpu.vector_store %arg9[%c0_19, %c0_20], %25 {strides = array<i32>} : memref<8x1xf32, #tpu.memory_space<vmem>>, vector<8x1xf32>,
    %c0_21 = arith.constant 0 : index
    %c0_22 = arith.constant 0 : index
    %27 = vector.load %arg10[%c0_21, %c0_22] : memref<8x8xf32, #tpu.memory_space<vmem>>, vector<8x8xf32>
    %28 = vector.broadcast %17 : vector<8x1xf32> to vector<8x8xf32>
    %29 = arith.mulf %28, %27 : vector<8x8xf32>
    %cst_23 = arith.constant dense<0.000000e+00> : vector<8x8xf32>
    %30 = tpu.matmul %20, %8, %cst_23 {dimension_numbers = #tpu.dot_dimension_numbers<[1], [0], [0], [1], [0, 0, 1, 1], [], []>} : vector<8x8xf32>, vector<8x8xf32>, vector<8x8xf32> -> vector<8x8xf32>
    %31 = arith.addf %29, %30 : vector<8x8xf32>
    %c0_24 = arith.constant 0 : index
    %c0_25 = arith.constant 0 : index
    %32 = vector.load %arg10[%c0_24, %c0_25] : memref<8x8xf32, #tpu.memory_space<vmem>>, vector<8x8xf32>
    tpu.vector_store %arg10[%c0_24, %c0_25], %31 {strides = array<i32>} : memref<8x8xf32, #tpu.memory_space<vmem>>, vector<8x8xf32>,
    %c0_26 = arith.constant 0 : index
    %c0_27 = arith.constant 0 : index
    %33 = vector.load %arg8[%c0_26, %c0_27] : memref<8x1xf32, #tpu.memory_space<vmem>>, vector<8x1xf32>
    tpu.vector_store %arg8[%c0_26, %c0_27], %15 {strides = array<i32>} : memref<8x1xf32, #tpu.memory_space<vmem>>, vector<8x1xf32>,
    %c0_i32_28 = arith.constant 0 : i32
    %34 = arith.cmpi eq, %arg3, %c0_i32_28 : i32
    %35 = arith.extui %34 : i1 to i32
    %c0_i32_29 = arith.constant 0 : i32
    %36 = arith.cmpi ne, %35, %c0_i32_29 : i32
    scf.if %36 {
      %c0_30 = arith.constant 0 : index
      %c0_31 = arith.constant 0 : index
      %37 = vector.load %arg10[%c0_30, %c0_31] : memref<8x8xf32, #tpu.memory_space<vmem>>, vector<8x8xf32>
      %c0_32 = arith.constant 0 : index
      %c0_33 = arith.constant 0 : index
      %38 = vector.load %arg9[%c0_32, %c0_33] : memref<8x1xf32, #tpu.memory_space<vmem>>, vector<8x1xf32>
      %39 = tpu.reciprocal %38 : vector<8x1xf32> -> vector<8x1xf32>
      %40 = vector.broadcast %39 : vector<8x1xf32> to vector<8x8xf32>
      %41 = arith.mulf %37, %40 : vector<8x8xf32>
      %c0_34 = arith.constant 0 : index
      %c0_35 = arith.constant 0 : index
      %c0_36 = arith.constant 0 : index
      %c0_37 = arith.constant 0 : index
      %42 = vector.load %arg7[%c0_34, %c0_35, %c0_36, %c0_37] : memref<1x1x8x8xf32, #tpu.memory_space<vmem>>, vector<1x1x8x8xf32>
      %43 = vector.shape_cast %42 : vector<1x1x8x8xf32> to vector<8x8xf32>
      %44 = vector.shape_cast %41 : vector<8x8xf32> to vector<1x1x8x8xf32>
      tpu.vector_store %arg7[%c0_34, %c0_35, %c0_36, %c0_37], %44 {strides = array<i32>} : memref<1x1x8x8xf32, #tpu.memory_space<vmem>>, vector<1x1x8x8xf32>,
    } else {
    }
    return
  }
  func.func @transform_0(%arg0: i32, %arg1: i32, %arg2: i32, %arg3: i32) -> (i32, i32, i32, i32) {
    %c0_i32 = arith.constant 0 : i32
    %c0_i32_0 = arith.constant 0 : i32
    return %arg0, %arg1, %arg2, %c0_i32 : i32, i32, i32, i32
  }
  func.func @transform_1(%arg0: i32, %arg1: i32, %arg2: i32, %arg3: i32) -> (i32, i32, i32, i32) {
    %c0_i32 = arith.constant 0 : i32
    %c0_i32_0 = arith.constant 0 : i32
    return %arg0, %arg1, %arg3, %c0_i32 : i32, i32, i32, i32
  }
  func.func @transform_2(%arg0: i32, %arg1: i32, %arg2: i32, %arg3: i32) -> (i32, i32, i32, i32) {
    %c0_i32 = arith.constant 0 : i32
    %c0_i32_0 = arith.constant 0 : i32
    return %arg0, %arg1, %arg3, %c0_i32 : i32, i32, i32, i32
  }
  func.func @transform_3(%arg0: i32, %arg1: i32, %arg2: i32, %arg3: i32) -> (i32, i32, i32, i32) {
    %c0_i32 = arith.constant 0 : i32
    %c0_i32_0 = arith.constant 0 : i32
    return %arg0, %arg1, %arg2, %c0_i32 : i32, i32, i32, i32
  }
}

module attributes {stable_mosaic.version = 11 : i64} {
  func.func @_ln1_qkv_kernel(%arg0: i32, %arg1: i32, %arg2: memref<1x8x32xf32, #tpu.memory_space<vmem>>, %arg3: memref<1x32xf32, #tpu.memory_space<vmem>>, %arg4: memref<1x32xf32, #tpu.memory_space<vmem>>, %arg5: memref<32x96xf32, #tpu.memory_space<vmem>>, %arg6: memref<1x96xf32, #tpu.memory_space<vmem>>, %arg7: memref<1x4x8x8xf32, #tpu.memory_space<vmem>>, %arg8: memref<1x4x8x8xf32, #tpu.memory_space<vmem>>, %arg9: memref<1x4x8x8xf32, #tpu.memory_space<vmem>>) attributes {dimension_semantics = [#tpu.dimension_semantics<parallel>, #tpu.dimension_semantics<parallel>], iteration_bounds = array<i64: 2, 1>, scalar_prefetch = 0 : i64, scratch_operands = 0 : i64, tpu.core_type = #tpu.core_type<tc>, window_params = [{transform_indices = @transform_0, window_bounds = array<i64: 1, 8, 32>}, {pipeline_mode = #tpu.pipeline_mode<synchronous>, transform_indices = @transform_1, window_bounds = array<i64: 1, 32>}, {pipeline_mode = #tpu.pipeline_mode<synchronous>, transform_indices = @transform_2, window_bounds = array<i64: 1, 32>}, {pipeline_mode = #tpu.pipeline_mode<synchronous>, transform_indices = @transform_3, window_bounds = array<i64: 32, 96>}, {pipeline_mode = #tpu.pipeline_mode<synchronous>, transform_indices = @transform_4, window_bounds = array<i64: 1, 96>}, {transform_indices = @transform_5, window_bounds = array<i64: 1, 4, 8, 8>}, {transform_indices = @transform_6, window_bounds = array<i64: 1, 4, 8, 8>}, {transform_indices = @transform_7, window_bounds = array<i64: 1, 4, 8, 8>}]} {
    %c0 = arith.constant 0 : index
    %c0_0 = arith.constant 0 : index
    %c0_1 = arith.constant 0 : index
    %0 = vector.load %arg2[%c0, %c0_0, %c0_1] : memref<1x8x32xf32, #tpu.memory_space<vmem>>, vector<1x8x32xf32>
    %1 = vector.shape_cast %0 : vector<1x8x32xf32> to vector<8x32xf32>
    %c0_2 = arith.constant 0 : index
    %c0_3 = arith.constant 0 : index
    %2 = vector.load %arg3[%c0_2, %c0_3] : memref<1x32xf32, #tpu.memory_space<vmem>>, vector<1x32xf32>
    %c0_4 = arith.constant 0 : index
    %c0_5 = arith.constant 0 : index
    %3 = vector.load %arg4[%c0_4, %c0_5] : memref<1x32xf32, #tpu.memory_space<vmem>>, vector<1x32xf32>
    %cst = arith.constant dense<0.000000e+00> : vector<8xf32>
    %4 = vector.multi_reduction <add>, %1, %cst [1] : vector<8x32xf32> to vector<8xf32>
    %5 = vector.shape_cast %4 : vector<8xf32> to vector<8x1xf32>
    %cst_6 = arith.constant 3.200000e+01 : f32
    %6 = vector.broadcast %cst_6 : f32 to vector<8x1xf32>
    %7 = arith.divf %5, %6 : vector<8x1xf32>
    %8 = arith.mulf %1, %1 : vector<8x32xf32>
    %cst_7 = arith.constant dense<0.000000e+00> : vector<8xf32>
    %9 = vector.multi_reduction <add>, %8, %cst_7 [1] : vector<8x32xf32> to vector<8xf32>
    %10 = vector.shape_cast %9 : vector<8xf32> to vector<8x1xf32>
    %cst_8 = arith.constant 3.200000e+01 : f32
    %11 = vector.broadcast %cst_8 : f32 to vector<8x1xf32>
    %12 = arith.divf %10, %11 : vector<8x1xf32>
    %13 = arith.mulf %7, %7 : vector<8x1xf32>
    %14 = arith.subf %12, %13 : vector<8x1xf32>
    %15 = vector.broadcast %7 : vector<8x1xf32> to vector<8x32xf32>
    %16 = arith.subf %1, %15 : vector<8x32xf32>
    %cst_9 = arith.constant 9.99999997E-7 : f32
    %17 = vector.broadcast %cst_9 : f32 to vector<8x1xf32>
    %18 = arith.addf %14, %17 : vector<8x1xf32>
    %19 = math.rsqrt %18 : vector<8x1xf32>
    %20 = vector.broadcast %19 : vector<8x1xf32> to vector<8x32xf32>
    %21 = arith.mulf %16, %20 : vector<8x32xf32>
    %22 = vector.broadcast %2 : vector<1x32xf32> to vector<8x32xf32>
    %23 = arith.mulf %21, %22 : vector<8x32xf32>
    %24 = vector.broadcast %3 : vector<1x32xf32> to vector<8x32xf32>
    %25 = arith.addf %23, %24 : vector<8x32xf32>
    %c0_10 = arith.constant 0 : index
    %c0_11 = arith.constant 0 : index
    %26 = vector.load %arg5[%c0_10, %c0_11] : memref<32x96xf32, #tpu.memory_space<vmem>>, vector<32x96xf32>
    %cst_12 = arith.constant dense<0.000000e+00> : vector<8x96xf32>
    %27 = tpu.matmul %25, %26, %cst_12 {dimension_numbers = #tpu.dot_dimension_numbers<[1], [0], [0], [1], [0, 0, 1, 1], [], []>} : vector<8x32xf32>, vector<32x96xf32>, vector<8x96xf32> -> vector<8x96xf32>
    %c0_13 = arith.constant 0 : index
    %c0_14 = arith.constant 0 : index
    %28 = vector.load %arg6[%c0_13, %c0_14] : memref<1x96xf32, #tpu.memory_space<vmem>>, vector<1x96xf32>
    %29 = vector.broadcast %28 : vector<1x96xf32> to vector<8x96xf32>
    %30 = arith.addf %27, %29 : vector<8x96xf32>
    %31 = vector.extract_strided_slice %30 {offsets = [0, 0], sizes = [8, 32], strides = [1, 1]} : vector<8x96xf32> to vector<8x32xf32>
    %32 = vector.shape_cast %31 : vector<8x32xf32> to vector<8x4x8xf32>
    %33 = tpu.transpose %32, [1, 0, 2] : vector<8x4x8xf32> -> vector<4x8x8xf32>
    %c0_15 = arith.constant 0 : index
    %c0_16 = arith.constant 0 : index
    %c0_17 = arith.constant 0 : index
    %c0_18 = arith.constant 0 : index
    %34 = vector.load %arg7[%c0_15, %c0_16, %c0_17, %c0_18] : memref<1x4x8x8xf32, #tpu.memory_space<vmem>>, vector<1x4x8x8xf32>
    %35 = vector.shape_cast %34 : vector<1x4x8x8xf32> to vector<4x8x8xf32>
    %36 = vector.shape_cast %33 : vector<4x8x8xf32> to vector<1x4x8x8xf32>
    tpu.vector_store %arg7[%c0_15, %c0_16, %c0_17, %c0_18], %36 {strides = array<i32>} : memref<1x4x8x8xf32, #tpu.memory_space<vmem>>, vector<1x4x8x8xf32>,
    %37 = vector.extract_strided_slice %30 {offsets = [0, 32], sizes = [8, 32], strides = [1, 1]} : vector<8x96xf32> to vector<8x32xf32>
    %38 = vector.shape_cast %37 : vector<8x32xf32> to vector<8x4x8xf32>
    %39 = tpu.transpose %38, [1, 0, 2] : vector<8x4x8xf32> -> vector<4x8x8xf32>
    %c0_19 = arith.constant 0 : index
    %c0_20 = arith.constant 0 : index
    %c0_21 = arith.constant 0 : index
    %c0_22 = arith.constant 0 : index
    %40 = vector.load %arg8[%c0_19, %c0_20, %c0_21, %c0_22] : memref<1x4x8x8xf32, #tpu.memory_space<vmem>>, vector<1x4x8x8xf32>
    %41 = vector.shape_cast %40 : vector<1x4x8x8xf32> to vector<4x8x8xf32>
    %42 = vector.shape_cast %39 : vector<4x8x8xf32> to vector<1x4x8x8xf32>
    tpu.vector_store %arg8[%c0_19, %c0_20, %c0_21, %c0_22], %42 {strides = array<i32>} : memref<1x4x8x8xf32, #tpu.memory_space<vmem>>, vector<1x4x8x8xf32>,
    %43 = vector.extract_strided_slice %30 {offsets = [0, 64], sizes = [8, 32], strides = [1, 1]} : vector<8x96xf32> to vector<8x32xf32>
    %44 = vector.shape_cast %43 : vector<8x32xf32> to vector<8x4x8xf32>
    %45 = tpu.transpose %44, [1, 0, 2] : vector<8x4x8xf32> -> vector<4x8x8xf32>
    %c0_23 = arith.constant 0 : index
    %c0_24 = arith.constant 0 : index
    %c0_25 = arith.constant 0 : index
    %c0_26 = arith.constant 0 : index
    %46 = vector.load %arg9[%c0_23, %c0_24, %c0_25, %c0_26] : memref<1x4x8x8xf32, #tpu.memory_space<vmem>>, vector<1x4x8x8xf32>
    %47 = vector.shape_cast %46 : vector<1x4x8x8xf32> to vector<4x8x8xf32>
    %48 = vector.shape_cast %45 : vector<4x8x8xf32> to vector<1x4x8x8xf32>
    tpu.vector_store %arg9[%c0_23, %c0_24, %c0_25, %c0_26], %48 {strides = array<i32>} : memref<1x4x8x8xf32, #tpu.memory_space<vmem>>, vector<1x4x8x8xf32>,
    return
  }
  func.func @transform_0(%arg0: i32, %arg1: i32) -> (i32, i32, i32) {
    %c0_i32 = arith.constant 0 : i32
    %c0_i32_0 = arith.constant 0 : i32
    return %arg0, %arg1, %c0_i32 : i32, i32, i32
  }
  func.func @transform_1(%arg0: i32, %arg1: i32) -> (i32, i32) {
    %c0_i32 = arith.constant 0 : i32
    %c0_i32_0 = arith.constant 0 : i32
    %c0_i32_1 = arith.constant 0 : i32
    return %c0_i32, %c0_i32_0 : i32, i32
  }
  func.func @transform_2(%arg0: i32, %arg1: i32) -> (i32, i32) {
    %c0_i32 = arith.constant 0 : i32
    %c0_i32_0 = arith.constant 0 : i32
    %c0_i32_1 = arith.constant 0 : i32
    return %c0_i32, %c0_i32_0 : i32, i32
  }
  func.func @transform_3(%arg0: i32, %arg1: i32) -> (i32, i32) {
    %c0_i32 = arith.constant 0 : i32
    %c0_i32_0 = arith.constant 0 : i32
    %c0_i32_1 = arith.constant 0 : i32
    return %c0_i32, %c0_i32_0 : i32, i32
  }
  func.func @transform_4(%arg0: i32, %arg1: i32) -> (i32, i32) {
    %c0_i32 = arith.constant 0 : i32
    %c0_i32_0 = arith.constant 0 : i32
    %c0_i32_1 = arith.constant 0 : i32
    return %c0_i32, %c0_i32_0 : i32, i32
  }
  func.func @transform_5(%arg0: i32, %arg1: i32) -> (i32, i32, i32, i32) {
    %c0_i32 = arith.constant 0 : i32
    %c0_i32_0 = arith.constant 0 : i32
    %c0_i32_1 = arith.constant 0 : i32
    return %arg0, %c0_i32, %arg1, %c0_i32_0 : i32, i32, i32, i32
  }
  func.func @transform_6(%arg0: i32, %arg1: i32) -> (i32, i32, i32, i32) {
    %c0_i32 = arith.constant 0 : i32
    %c0_i32_0 = arith.constant 0 : i32
    %c0_i32_1 = arith.constant 0 : i32
    return %arg0, %c0_i32, %arg1, %c0_i32_0 : i32, i32, i32, i32
  }
  func.func @transform_7(%arg0: i32, %arg1: i32) -> (i32, i32, i32, i32) {
    %c0_i32 = arith.constant 0 : i32
    %c0_i32_0 = arith.constant 0 : i32
    %c0_i32_1 = arith.constant 0 : i32
    return %arg0, %c0_i32, %arg1, %c0_i32_0 : i32, i32, i32, i32
  }
}

module attributes {stable_mosaic.version = 11 : i64} {
  func.func @_out_proj_mlp_kernel(%arg0: i32, %arg1: i32, %arg2: i32, %arg3: memref<1x4x8x8xf32, #tpu.memory_space<vmem>>, %arg4: memref<1x8x32xf32, #tpu.memory_space<vmem>>, %arg5: memref<32x32xf32, #tpu.memory_space<vmem>>, %arg6: memref<1x32xf32, #tpu.memory_space<vmem>>, %arg7: memref<1x32xf32, #tpu.memory_space<vmem>>, %arg8: memref<1x32xf32, #tpu.memory_space<vmem>>, %arg9: memref<32x64xf32, #tpu.memory_space<vmem>>, %arg10: memref<1x64xf32, #tpu.memory_space<vmem>>, %arg11: memref<64x32xf32, #tpu.memory_space<vmem>>, %arg12: memref<1x32xf32, #tpu.memory_space<vmem>>, %arg13: memref<1x8x32xf32, #tpu.memory_space<vmem>>, %arg14: memref<8x32xf32, #tpu.memory_space<vmem>>, %arg15: memref<8x32xf32, #tpu.memory_space<vmem>>, %arg16: memref<8x32xf32, #tpu.memory_space<vmem>>) attributes {dimension_semantics = [#tpu.dimension_semantics<parallel>, #tpu.dimension_semantics<parallel>, #tpu.dimension_semantics<arbitrary>], iteration_bounds = array<i64: 2, 1, 1>, scalar_prefetch = 0 : i64, scratch_operands = 3 : i64, tpu.core_type = #tpu.core_type<tc>, window_params = [{transform_indices = @transform_0, window_bounds = array<i64: 1, 4, 8, 8>}, {transform_indices = @transform_1, window_bounds = array<i64: 1, 8, 32>}, {pipeline_mode = #tpu.pipeline_mode<synchronous>, transform_indices = @transform_2, window_bounds = array<i64: 32, 32>}, {pipeline_mode = #tpu.pipeline_mode<synchronous>, transform_indices = @transform_3, window_bounds = array<i64: 1, 32>}, {pipeline_mode = #tpu.pipeline_mode<synchronous>, transform_indices = @transform_4, window_bounds = array<i64: 1, 32>}, {pipeline_mode = #tpu.pipeline_mode<synchronous>, transform_indices = @transform_5, window_bounds = array<i64: 1, 32>}, {transform_indices = @transform_6, window_bounds = array<i64: 32, 64>}, {transform_indices = @transform_7, window_bounds = array<i64: 1, 64>}, {transform_indices = @transform_8, window_bounds = array<i64: 64, 32>}, {pipeline_mode = #tpu.pipeline_mode<synchronous>, transform_indices = @transform_9, window_bounds = array<i64: 1, 32>}, {transform_indices = @transform_10, window_bounds = array<i64: 1, 8, 32>}]} {
    %c0_i32 = arith.constant 0 : i32
    %0 = arith.cmpi eq, %arg2, %c0_i32 : i32
    %1 = arith.extui %0 : i1 to i32
    %c0_i32_0 = arith.constant 0 : i32
    %2 = arith.cmpi ne, %1, %c0_i32_0 : i32
    scf.if %2 {
      %c0_19 = arith.constant 0 : index
      %c0_20 = arith.constant 0 : index
      %c0_21 = arith.constant 0 : index
      %c0_22 = arith.constant 0 : index
      %30 = vector.load %arg3[%c0_19, %c0_20, %c0_21, %c0_22] : memref<1x4x8x8xf32, #tpu.memory_space<vmem>>, vector<1x4x8x8xf32>
      %31 = vector.shape_cast %30 : vector<1x4x8x8xf32> to vector<4x8x8xf32>
      %32 = tpu.transpose %31, [1, 0, 2] : vector<4x8x8xf32> -> vector<8x4x8xf32>
      %33 = vector.shape_cast %32 : vector<8x4x8xf32> to vector<8x32xf32>
      %c0_23 = arith.constant 0 : index
      %c0_24 = arith.constant 0 : index
      %34 = vector.load %arg5[%c0_23, %c0_24] : memref<32x32xf32, #tpu.memory_space<vmem>>, vector<32x32xf32>
      %cst_25 = arith.constant dense<0.000000e+00> : vector<8x32xf32>
      %35 = tpu.matmul %33, %34, %cst_25 {dimension_numbers = #tpu.dot_dimension_numbers<[1], [0], [0], [1], [0, 0, 1, 1], [], []>} : vector<8x32xf32>, vector<32x32xf32>, vector<8x32xf32> -> vector<8x32xf32>
      %c0_26 = arith.constant 0 : index
      %c0_27 = arith.constant 0 : index
      %36 = vector.load %arg6[%c0_26, %c0_27] : memref<1x32xf32, #tpu.memory_space<vmem>>, vector<1x32xf32>
      %37 = vector.broadcast %36 : vector<1x32xf32> to vector<8x32xf32>
      %38 = arith.addf %35, %37 : vector<8x32xf32>
      %c0_28 = arith.constant 0 : index
      %c0_29 = arith.constant 0 : index
      %c0_30 = arith.constant 0 : index
      %39 = vector.load %arg4[%c0_28, %c0_29, %c0_30] : memref<1x8x32xf32, #tpu.memory_space<vmem>>, vector<1x8x32xf32>
      %40 = vector.shape_cast %39 : vector<1x8x32xf32> to vector<8x32xf32>
      %41 = arith.addf %40, %38 : vector<8x32xf32>
      %c0_31 = arith.constant 0 : index
      %c0_32 = arith.constant 0 : index
      %42 = vector.load %arg14[%c0_31, %c0_32] : memref<8x32xf32, #tpu.memory_space<vmem>>, vector<8x32xf32>
      tpu.vector_store %arg14[%c0_31, %c0_32], %41 {strides = array<i32>} : memref<8x32xf32, #tpu.memory_space<vmem>>, vector<8x32xf32>,
      %c0_33 = arith.constant 0 : index
      %c0_34 = arith.constant 0 : index
      %43 = vector.load %arg7[%c0_33, %c0_34] : memref<1x32xf32, #tpu.memory_space<vmem>>, vector<1x32xf32>
      %c0_35 = arith.constant 0 : index
      %c0_36 = arith.constant 0 : index
      %44 = vector.load %arg8[%c0_35, %c0_36] : memref<1x32xf32, #tpu.memory_space<vmem>>, vector<1x32xf32>
      %cst_37 = arith.constant dense<0.000000e+00> : vector<8xf32>
      %45 = vector.multi_reduction <add>, %41, %cst_37 [1] : vector<8x32xf32> to vector<8xf32>
      %46 = vector.shape_cast %45 : vector<8xf32> to vector<8x1xf32>
      %cst_38 = arith.constant 3.200000e+01 : f32
      %47 = vector.broadcast %cst_38 : f32 to vector<8x1xf32>
      %48 = arith.divf %46, %47 : vector<8x1xf32>
      %49 = arith.mulf %41, %41 : vector<8x32xf32>
      %cst_39 = arith.constant dense<0.000000e+00> : vector<8xf32>
      %50 = vector.multi_reduction <add>, %49, %cst_39 [1] : vector<8x32xf32> to vector<8xf32>
      %51 = vector.shape_cast %50 : vector<8xf32> to vector<8x1xf32>
      %cst_40 = arith.constant 3.200000e+01 : f32
      %52 = vector.broadcast %cst_40 : f32 to vector<8x1xf32>
      %53 = arith.divf %51, %52 : vector<8x1xf32>
      %54 = arith.mulf %48, %48 : vector<8x1xf32>
      %55 = arith.subf %53, %54 : vector<8x1xf32>
      %56 = vector.broadcast %48 : vector<8x1xf32> to vector<8x32xf32>
      %57 = arith.subf %41, %56 : vector<8x32xf32>
      %cst_41 = arith.constant 9.99999997E-7 : f32
      %58 = vector.broadcast %cst_41 : f32 to vector<8x1xf32>
      %59 = arith.addf %55, %58 : vector<8x1xf32>
      %60 = math.rsqrt %59 : vector<8x1xf32>
      %61 = vector.broadcast %60 : vector<8x1xf32> to vector<8x32xf32>
      %62 = arith.mulf %57, %61 : vector<8x32xf32>
      %63 = vector.broadcast %43 : vector<1x32xf32> to vector<8x32xf32>
      %64 = arith.mulf %62, %63 : vector<8x32xf32>
      %65 = vector.broadcast %44 : vector<1x32xf32> to vector<8x32xf32>
      %66 = arith.addf %64, %65 : vector<8x32xf32>
      %c0_42 = arith.constant 0 : index
      %c0_43 = arith.constant 0 : index
      %67 = vector.load %arg15[%c0_42, %c0_43] : memref<8x32xf32, #tpu.memory_space<vmem>>, vector<8x32xf32>
      tpu.vector_store %arg15[%c0_42, %c0_43], %66 {strides = array<i32>} : memref<8x32xf32, #tpu.memory_space<vmem>>, vector<8x32xf32>,
      %cst_44 = arith.constant 0.000000e+00 : f32
      %68 = vector.broadcast %cst_44 : f32 to vector<8x32xf32>
      %c0_45 = arith.constant 0 : index
      %c0_46 = arith.constant 0 : index
      %69 = vector.load %arg16[%c0_45, %c0_46] : memref<8x32xf32, #tpu.memory_space<vmem>>, vector<8x32xf32>
      tpu.vector_store %arg16[%c0_45, %c0_46], %68 {strides = array<i32>} : memref<8x32xf32, #tpu.memory_space<vmem>>, vector<8x32xf32>,
    } else {
    }
    %c0 = arith.constant 0 : index
    %c0_1 = arith.constant 0 : index
    %3 = vector.load %arg15[%c0, %c0_1] : memref<8x32xf32, #tpu.memory_space<vmem>>, vector<8x32xf32>
    %c0_2 = arith.constant 0 : index
    %c0_3 = arith.constant 0 : index
    %4 = vector.load %arg9[%c0_2, %c0_3] : memref<32x64xf32, #tpu.memory_space<vmem>>, vector<32x64xf32>
    %cst = arith.constant dense<0.000000e+00> : vector<8x64xf32>
    %5 = tpu.matmul %3, %4, %cst {dimension_numbers = #tpu.dot_dimension_numbers<[1], [0], [0], [1], [0, 0, 1, 1], [], []>} : vector<8x32xf32>, vector<32x64xf32>, vector<8x64xf32> -> vector<8x64xf32>
    %c0_4 = arith.constant 0 : index
    %c0_5 = arith.constant 0 : index
    %6 = vector.load %arg10[%c0_4, %c0_5] : memref<1x64xf32, #tpu.memory_space<vmem>>, vector<1x64xf32>
    %7 = vector.broadcast %6 : vector<1x64xf32> to vector<8x64xf32>
    %8 = arith.addf %5, %7 : vector<8x64xf32>
    %cst_6 = arith.constant 5.000000e-01 : f32
    %9 = vector.broadcast %cst_6 : f32 to vector<8x64xf32>
    %10 = arith.mulf %9, %8 : vector<8x64xf32>
    %cst_7 = arith.constant 4.471500e-02 : f32
    %11 = vector.broadcast %cst_7 : f32 to vector<8x64xf32>
    %12 = arith.mulf %11, %8 : vector<8x64xf32>
    %13 = arith.mulf %12, %8 : vector<8x64xf32>
    %14 = arith.mulf %13, %8 : vector<8x64xf32>
    %15 = arith.addf %8, %14 : vector<8x64xf32>
    %cst_8 = arith.constant 0.797884583 : f32
    %16 = vector.broadcast %cst_8 : f32 to vector<8x64xf32>
    %17 = arith.mulf %16, %15 : vector<8x64xf32>
    %18 = math.tanh %17 : vector<8x64xf32>
    %cst_9 = arith.constant 1.000000e+00 : f32
    %19 = vector.broadcast %cst_9 : f32 to vector<8x64xf32>
    %20 = arith.addf %19, %18 : vector<8x64xf32>
    %21 = arith.mulf %10, %20 : vector<8x64xf32>
    %c0_10 = arith.constant 0 : index
    %c0_11 = arith.constant 0 : index
    %22 = vector.load %arg16[%c0_10, %c0_11] : memref<8x32xf32, #tpu.memory_space<vmem>>, vector<8x32xf32>
    %c0_12 = arith.constant 0 : index
    %c0_13 = arith.constant 0 : index
    %23 = vector.load %arg11[%c0_12, %c0_13] : memref<64x32xf32, #tpu.memory_space<vmem>>, vector<64x32xf32>
    %cst_14 = arith.constant dense<0.000000e+00> : vector<8x32xf32>
    %24 = tpu.matmul %21, %23, %cst_14 {dimension_numbers = #tpu.dot_dimension_numbers<[1], [0], [0], [1], [0, 0, 1, 1], [], []>} : vector<8x64xf32>, vector<64x32xf32>, vector<8x32xf32> -> vector<8x32xf32>
    %25 = arith.addf %22, %24 : vector<8x32xf32>
    %c0_15 = arith.constant 0 : index
    %c0_16 = arith.constant 0 : index
    %26 = vector.load %arg16[%c0_15, %c0_16] : memref<8x32xf32, #tpu.memory_space<vmem>>, vector<8x32xf32>
    tpu.vector_store %arg16[%c0_15, %c0_16], %25 {strides = array<i32>} : memref<8x32xf32, #tpu.memory_space<vmem>>, vector<8x32xf32>,
    %c0_i32_17 = arith.constant 0 : i32
    %27 = arith.cmpi eq, %arg2, %c0_i32_17 : i32
    %28 = arith.extui %27 : i1 to i32
    %c0_i32_18 = arith.constant 0 : i32
    %29 = arith.cmpi ne, %28, %c0_i32_18 : i32
    scf.if %29 {
      %c0_19 = arith.constant 0 : index
      %c0_20 = arith.constant 0 : index
      %30 = vector.load %arg14[%c0_19, %c0_20] : memref<8x32xf32, #tpu.memory_space<vmem>>, vector<8x32xf32>
      %c0_21 = arith.constant 0 : index
      %c0_22 = arith.constant 0 : index
      %31 = vector.load %arg16[%c0_21, %c0_22] : memref<8x32xf32, #tpu.memory_space<vmem>>, vector<8x32xf32>
      %32 = arith.addf %30, %31 : vector<8x32xf32>
      %c0_23 = arith.constant 0 : index
      %c0_24 = arith.constant 0 : index
      %33 = vector.load %arg12[%c0_23, %c0_24] : memref<1x32xf32, #tpu.memory_space<vmem>>, vector<1x32xf32>
      %34 = vector.broadcast %33 : vector<1x32xf32> to vector<8x32xf32>
      %35 = arith.addf %32, %34 : vector<8x32xf32>
      %c0_25 = arith.constant 0 : index
      %c0_26 = arith.constant 0 : index
      %c0_27 = arith.constant 0 : index
      %36 = vector.load %arg13[%c0_25, %c0_26, %c0_27] : memref<1x8x32xf32, #tpu.memory_space<vmem>>, vector<1x8x32xf32>
      %37 = vector.shape_cast %36 : vector<1x8x32xf32> to vector<8x32xf32>
      %38 = vector.shape_cast %35 : vector<8x32xf32> to vector<1x8x32xf32>
      tpu.vector_store %arg13[%c0_25, %c0_26, %c0_27], %38 {strides = array<i32>} : memref<1x8x32xf32, #tpu.memory_space<vmem>>, vector<1x8x32xf32>,
    } else {
    }
    return
  }
  func.func @transform_0(%arg0: i32, %arg1: i32, %arg2: i32) -> (i32, i32, i32, i32) {
    %c0_i32 = arith.constant 0 : i32
    %c0_i32_0 = arith.constant 0 : i32
    %c0_i32_1 = arith.constant 0 : i32
    return %arg0, %c0_i32, %arg1, %c0_i32_0 : i32, i32, i32, i32
  }
  func.func @transform_1(%arg0: i32, %arg1: i32, %arg2: i32) -> (i32, i32, i32) {
    %c0_i32 = arith.constant 0 : i32
    %c0_i32_0 = arith.constant 0 : i32
    return %arg0, %arg1, %c0_i32 : i32, i32, i32
  }
  func.func @transform_2(%arg0: i32, %arg1: i32, %arg2: i32) -> (i32, i32) {
    %c0_i32 = arith.constant 0 : i32
    %c0_i32_0 = arith.constant 0 : i32
    %c0_i32_1 = arith.constant 0 : i32
    return %c0_i32, %c0_i32_0 : i32, i32
  }
  func.func @transform_3(%arg0: i32, %arg1: i32, %arg2: i32) -> (i32, i32) {
    %c0_i32 = arith.constant 0 : i32
    %c0_i32_0 = arith.constant 0 : i32
    %c0_i32_1 = arith.constant 0 : i32
    return %c0_i32, %c0_i32_0 : i32, i32
  }
  func.func @transform_4(%arg0: i32, %arg1: i32, %arg2: i32) -> (i32, i32) {
    %c0_i32 = arith.constant 0 : i32
    %c0_i32_0 = arith.constant 0 : i32
    %c0_i32_1 = arith.constant 0 : i32
    return %c0_i32, %c0_i32_0 : i32, i32
  }
  func.func @transform_5(%arg0: i32, %arg1: i32, %arg2: i32) -> (i32, i32) {
    %c0_i32 = arith.constant 0 : i32
    %c0_i32_0 = arith.constant 0 : i32
    %c0_i32_1 = arith.constant 0 : i32
    return %c0_i32, %c0_i32_0 : i32, i32
  }
  func.func @transform_6(%arg0: i32, %arg1: i32, %arg2: i32) -> (i32, i32) {
    %c0_i32 = arith.constant 0 : i32
    %c0_i32_0 = arith.constant 0 : i32
    return %c0_i32, %arg2 : i32, i32
  }
  func.func @transform_7(%arg0: i32, %arg1: i32, %arg2: i32) -> (i32, i32) {
    %c0_i32 = arith.constant 0 : i32
    %c0_i32_0 = arith.constant 0 : i32
    return %c0_i32, %arg2 : i32, i32
  }
  func.func @transform_8(%arg0: i32, %arg1: i32, %arg2: i32) -> (i32, i32) {
    %c0_i32 = arith.constant 0 : i32
    %c0_i32_0 = arith.constant 0 : i32
    return %arg2, %c0_i32 : i32, i32
  }
  func.func @transform_9(%arg0: i32, %arg1: i32, %arg2: i32) -> (i32, i32) {
    %c0_i32 = arith.constant 0 : i32
    %c0_i32_0 = arith.constant 0 : i32
    %c0_i32_1 = arith.constant 0 : i32
    return %c0_i32, %c0_i32_0 : i32, i32
  }
  func.func @transform_10(%arg0: i32, %arg1: i32, %arg2: i32) -> (i32, i32, i32) {
    %c0_i32 = arith.constant 0 : i32
    %c0_i32_0 = arith.constant 0 : i32
    return %arg0, %arg1, %c0_i32 : i32, i32, i32
  }
}

</mosaic_0001>

<llo_original>
// kernel: siglip_encoder_layer.3
$region0: #{siglip_encoder_layer.3}
  #allocation0 [shape = 'u32[]', space=smem, size = 0x4, offset = 0x4, fixed_abs, tag = 'smem constant byte address 0x4 - core index']
  #allocation1 [shape = 'u32[144,128]{1,0:T(1,128)}', space=vmem, size = 0x12000, scoped, tag = 'internal scratch']
  %s0 = inlined_call_operand.hbm [shape: f32[2,8,32], index: 0, kind: input, shape index: {}]
  %s1 = inlined_call_operand.hbm [shape: f32[1,32], index: 1, kind: input, shape index: {}]
  %s2 = inlined_call_operand.hbm [shape: f32[1,32], index: 2, kind: input, shape index: {}]
  %s3 = inlined_call_operand.hbm [shape: f32[32,96], index: 3, kind: input, shape index: {}]
  %s4 = inlined_call_operand.hbm [shape: f32[1,96], index: 4, kind: input, shape index: {}]
  %s5 = inlined_call_operand.hbm [shape: f32[2,4,8,8], index: 5, kind: output, shape index: {0}]
  %s6 = inlined_call_operand.hbm [shape: f32[2,4,8,8], index: 6, kind: output, shape index: {1}]
  %s7 = inlined_call_operand.hbm [shape: f32[2,4,8,8], index: 7, kind: output, shape index: {2}]
  %8 = xla_tuple %s5, %s6, %s7
  %s9 = sld [smem:[#allocation0]]
  $region89: #{siglip_encoder_layer.3} parent=0
    _
  %s11 = ssub.s32 1, %s9
  %s12 = scalar_select 0, %s11, %s9
  $region1: #{siglip_encoder_layer.3} parent=0
    #allocation2 [shape = 'u8[8192]{0}', space=vmem, size = 0x2000, scoped, tag = 'input window, operand 0']
    #allocation3 [shape = 's32[2]{0}', space=sflag, size = 0x8, scoped, tag = 'scoped memory for siglip_encoder_layer.3']
    #allocation4 [shape = 's32[2]{0}', space=sflag, size = 0x8, scoped, tag = 'scoped memory for siglip_encoder_layer.3']
    #allocation5 [shape = 'u8[512]{0}', space=vmem, size = 0x400, scoped, tag = 'input window, operand 1, single buffered']
    #allocation6 [shape = 's32[1]{0}', space=sflag, size = 0x4, scoped, tag = 'scoped memory for siglip_encoder_layer.3']
    #allocation7 [shape = 'u8[512]{0}', space=vmem, size = 0x400, scoped, tag = 'input window, operand 2, single buffered']
    #allocation8 [shape = 'u8[16384]{0}', space=vmem, size = 0x4000, scoped, tag = 'input window, operand 3, single buffered']
    #allocation9 [shape = 's32[1]{0}', space=sflag, size = 0x4, scoped, tag = 'scoped memory for siglip_encoder_layer.3']
    #allocation10 [shape = 'u8[512]{0}', space=vmem, size = 0x400, scoped, tag = 'input window, operand 4, single buffered']
    #allocation11 [shape = 'u8[32768]{0}', space=vmem, size = 0x8000, scoped, tag = 'output window, operand 0']
    #allocation12 [shape = 'u8[32768]{0}', space=vmem, size = 0x8000, scoped, tag = 'output window, operand 1']
    #allocation13 [shape = 's32[2]{0}', space=sflag, size = 0x8, scoped, tag = 'scoped memory for siglip_encoder_layer.3']
    #allocation14 [shape = 'u8[32768]{0}', space=vmem, size = 0x8000, scoped, tag = 'output window, operand 2']
    %13 = vsyncpa [#allocation3], 0
    %s14 = scalar_lea.sflag [#allocation3], 1
    %15 = vsyncpa %s14, 0
    %16 = vsyncpa [#allocation6], 0
    %17 = vsyncpa [#allocation9], 0
    %18 = vsyncpa [#allocation4], 0
    %s19 = scalar_lea.sflag [#allocation4], 1
    %20 = vsyncpa %s19, 0
    %21 = vsyncpa [#allocation13], 0
    %s22 = scalar_lea.sflag [#allocation13], 1
    %23 = vsyncpa %s22, 0
    loop: start=0, step=1, limit=4
    $region2: #{siglip_encoder_layer.3} parent=1 // loop_pre_header
      _
    $region3: #{siglip_encoder_layer.3} parent=1 // loop_header
      %s25 = sphi 0, %s29
      %p26 = scmp.ge.s32.totalorder %s25, 4
      %s32 = sphi 0, %s44
      %s33 = sphi 0, %s40
      %s34 = sphi 0, %s32
      %s35 = sphi 0, %s33
      %s36 = sphi 0, %s34
      %s37 = sphi 0, %s35
      %s49 = sphi 0, %s51
      %s52 = sphi 0, %s49
      %s53 = sphi 0, %s52
      %s69 = sphi 0, %s53
      %s73 = sphi 0, %s73
      %s75 = sphi 0, %s73
      %s76 = sphi 0, %s75
      %s90 = sphi 0, %s76
      %s94 = sphi 0, %s94
      %s96 = sphi 0, %s94
      %s97 = sphi 0, %s96
      %s111 = sphi 0, %s97
      %s115 = sphi 0, %s115
      %s117 = sphi 0, %s115
      %s118 = sphi 0, %s117
      %s132 = sphi 0, %s118
      %s136 = sphi 0, %s136
      %s138 = sphi 0, %s136
      %s139 = sphi 0, %s138
      %s153 = sphi 0, %s139
      %s161 = sphi 0, %s163
      %s164 = sphi 0, %s161
      %s165 = sphi 0, %s164
      %s181 = sphi 0, %s165
      %s189 = sphi 0, %s191
      %s192 = sphi 0, %s189
      %s193 = sphi 0, %s192
      %s209 = sphi 0, %s193
      %s217 = sphi 0, %s219
      %s220 = sphi 0, %s217
      %s221 = sphi 0, %s220
      %s237 = sphi 0, %s221
    $region4: #{siglip_encoder_layer.3} parent=1 // loop_header_branch
      %28 = sbr.rel (%p26) target = $region8
    $region5: #{siglip_encoder_layer.3} parent=1 // loop_body
      %s30 = ssub.s32 %s25, 1
      %s31 = ssub.s32 %s25, 2
      %s38 = sadd.s32 1, %s33
      %p39 = scmp.ge.s32.totalorder %s38, 1
      %s40 = scalar_select %p39, 0, %s38
      %s41 = sadd.s32 1, %s32
      %s42 = scalar_select %p39, %s41, %s32
      %p43 = scmp.ge.s32.totalorder %s42, 2
      %s44 = scalar_select %p43, 0, %s42
      %s45 = ssub.s32 %s32, %s44
      %s46 = ssub.s32 %s33, %s40
      %s47 = sor.u32 %s45, %s46
      %p48 = scmp.eq.s32.totalorder %s47, 0
      %s50 = sadd.s32 %s49, 1
      %s51 = scalar_select %p48, %s49, %s50
      %p54 = pneg %p48
      %p55 = scmp.eq.s32.totalorder %s25, 1
      %p56 = por %p54, %p55
      %p57 = scmp.ne.s32.totalorder %s49, %s52
      %p58 = scmp.eq.s32.totalorder %s25, 0
      %p59 = por %p57, %p58
      %p60 = scmp.ne.s32.totalorder %s49, %s52
      %p61 = scmp.eq.s32.totalorder %s30, 1
      %p62 = por %p60, %p61
      %p63 = scmp.ne.s32.totalorder %s52, %s53
      %p64 = scmp.eq.s32.totalorder %s30, 0
      %p65 = por %p63, %p64
      %p66 = scmp.ne.s32.totalorder %s52, %s53
      %p67 = scmp.eq.s32.totalorder %s31, 1
      %p68 = por %p66, %p67
      %p70 = scmp.ne.s32.totalorder %s53, %s69
      %p71 = scmp.eq.s32.totalorder %s31, 0
      %p72 = por %p70, %p71
      %s74 = sadd.s32 %s73, 1
      %p77 = scmp.eq.s32.totalorder %s25, 1
      %p78 = scmp.ne.s32.totalorder %s73, %s75
      %p79 = scmp.eq.s32.totalorder %s25, 0
      %p80 = por %p78, %p79
      %p81 = scmp.ne.s32.totalorder %s73, %s75
      %p82 = scmp.eq.s32.totalorder %s30, 1
      %p83 = por %p81, %p82
      %p84 = scmp.ne.s32.totalorder %s75, %s76
      %p85 = scmp.eq.s32.totalorder %s30, 0
      %p86 = por %p84, %p85
      %p87 = scmp.ne.s32.totalorder %s75, %s76
      %p88 = scmp.eq.s32.totalorder %s31, 1
      %p89 = por %p87, %p88
      %p91 = scmp.ne.s32.totalorder %s76, %s90
      %p92 = scmp.eq.s32.totalorder %s31, 0
      %p93 = por %p91, %p92
      %s95 = sadd.s32 %s94, 1
      %p98 = scmp.eq.s32.totalorder %s25, 1
      %p99 = scmp.ne.s32.totalorder %s94, %s96
      %p100 = scmp.eq.s32.totalorder %s25, 0
      %p101 = por %p99, %p100
      %p102 = scmp.ne.s32.totalorder %s94, %s96
      %p103 = scmp.eq.s32.totalorder %s30, 1
      %p104 = por %p102, %p103
      %p105 = scmp.ne.s32.totalorder %s96, %s97
      %p106 = scmp.eq.s32.totalorder %s30, 0
      %p107 = por %p105, %p106
      %p108 = scmp.ne.s32.totalorder %s96, %s97
      %p109 = scmp.eq.s32.totalorder %s31, 1
      %p110 = por %p108, %p109
      %p112 = scmp.ne.s32.totalorder %s97, %s111
      %p113 = scmp.eq.s32.totalorder %s31, 0
      %p114 = por %p112, %p113
      %s116 = sadd.s32 %s115, 1
      %p119 = scmp.eq.s32.totalorder %s25, 1
      %p120 = scmp.ne.s32.totalorder %s115, %s117
      %p121 = scmp.eq.s32.totalorder %s25, 0
      %p122 = por %p120, %p121
      %p123 = scmp.ne.s32.totalorder %s115, %s117
      %p124 = scmp.eq.s32.totalorder %s30, 1
      %p125 = por %p123, %p124
      %p126 = scmp.ne.s32.totalorder %s117, %s118
      %p127 = scmp.eq.s32.totalorder %s30, 0
      %p128 = por %p126, %p127
      %p129 = scmp.ne.s32.totalorder %s117, %s118
      %p130 = scmp.eq.s32.totalorder %s31, 1
      %p131 = por %p129, %p130
      %p133 = scmp.ne.s32.totalorder %s118, %s132
      %p134 = scmp.eq.s32.totalorder %s31, 0
      %p135 = por %p133, %p134
      %s137 = sadd.s32 %s136, 1
      %p140 = scmp.eq.s32.totalorder %s25, 1
      %p141 = scmp.ne.s32.totalorder %s136, %s138
      %p142 = scmp.eq.s32.totalorder %s25, 0
      %p143 = por %p141, %p142
      %p144 = scmp.ne.s32.totalorder %s136, %s138
      %p145 = scmp.eq.s32.totalorder %s30, 1
      %p146 = por %p144, %p145
      %p147 = scmp.ne.s32.totalorder %s138, %s139
      %p148 = scmp.eq.s32.totalorder %s30, 0
      %p149 = por %p147, %p148
      %p150 = scmp.ne.s32.totalorder %s138, %s139
      %p151 = scmp.eq.s32.totalorder %s31, 1
      %p152 = por %p150, %p151
      %p154 = scmp.ne.s32.totalorder %s139, %s153
      %p155 = scmp.eq.s32.totalorder %s31, 0
      %p156 = por %p154, %p155
      %s157 = ssub.s32 %s32, %s44
      %s158 = ssub.s32 %s33, %s40
      %s159 = sor.u32 %s157, %s158
      %p160 = scmp.eq.s32.totalorder %s159, 0
      %s162 = sadd.s32 %s161, 1
      %s163 = scalar_select %p160, %s161, %s162
      %p166 = pneg %p160
      %p167 = scmp.eq.s32.totalorder %s25, 1
      %p168 = por %p166, %p167
      %p169 = scmp.ne.s32.totalorder %s161, %s164
      %p170 = scmp.eq.s32.totalorder %s25, 0
      %p171 = por %p169, %p170
      %p172 = scmp.ne.s32.totalorder %s161, %s164
      %p173 = scmp.eq.s32.totalorder %s30, 1
      %p174 = por %p172, %p173
      %p175 = scmp.ne.s32.totalorder %s164, %s165
      %p176 = scmp.eq.s32.totalorder %s30, 0
      %p177 = por %p175, %p176
      %p178 = scmp.ne.s32.totalorder %s164, %s165
      %p179 = scmp.eq.s32.totalorder %s31, 1
      %p180 = por %p178, %p179
      %p182 = scmp.ne.s32.totalorder %s165, %s181
      %p183 = scmp.eq.s32.totalorder %s31, 0
      %p184 = por %p182, %p183
      %s185 = ssub.s32 %s32, %s44
      %s186 = ssub.s32 %s33, %s40
      %s187 = sor.u32 %s185, %s186
      %p188 = scmp.eq.s32.totalorder %s187, 0
      %s190 = sadd.s32 %s189, 1
      %s191 = scalar_select %p188, %s189, %s190
      %p194 = pneg %p188
      %p195 = scmp.eq.s32.totalorder %s25, 1
      %p196 = por %p194, %p195
      %p197 = scmp.ne.s32.totalorder %s189, %s192
      %p198 = scmp.eq.s32.totalorder %s25, 0
      %p199 = por %p197, %p198
      %p200 = scmp.ne.s32.totalorder %s189, %s192
      %p201 = scmp.eq.s32.totalorder %s30, 1
      %p202 = por %p200, %p201
      %p203 = scmp.ne.s32.totalorder %s192, %s193
      %p204 = scmp.eq.s32.totalorder %s30, 0
      %p205 = por %p203, %p204
      %p206 = scmp.ne.s32.totalorder %s192, %s193
      %p207 = scmp.eq.s32.totalorder %s31, 1
      %p208 = por %p206, %p207
      %p210 = scmp.ne.s32.totalorder %s193, %s209
      %p211 = scmp.eq.s32.totalorder %s31, 0
      %p212 = por %p210, %p211
      %s213 = ssub.s32 %s32, %s44
      %s214 = ssub.s32 %s33, %s40
      %s215 = sor.u32 %s213, %s214
      %p216 = scmp.eq.s32.totalorder %s215, 0
      %s218 = sadd.s32 %s217, 1
      %s219 = scalar_select %p216, %s217, %s218
      %p222 = pneg %p216
      %p223 = scmp.eq.s32.totalorder %s25, 1
      %p224 = por %p222, %p223
      %p225 = scmp.ne.s32.totalorder %s217, %s220
      %p226 = scmp.eq.s32.totalorder %s25, 0
      %p227 = por %p225, %p226
      %p228 = scmp.ne.s32.totalorder %s217, %s220
      %p229 = scmp.eq.s32.totalorder %s30, 1
      %p230 = por %p228, %p229
      %p231 = scmp.ne.s32.totalorder %s220, %s221
      %p232 = scmp.eq.s32.totalorder %s30, 0
      %p233 = por %p231, %p232
      %p234 = scmp.ne.s32.totalorder %s220, %s221
      %p235 = scmp.eq.s32.totalorder %s31, 1
      %p236 = por %p234, %p235
      %p238 = scmp.ne.s32.totalorder %s221, %s237
      %p239 = scmp.eq.s32.totalorder %s31, 0
      %p240 = por %p238, %p239
      %p241 = scmp.le.s32.totalorder 1, %s25
      %p242 = scmp.lt.s32.totalorder %s25, 3
      %p243 = pnand %p241, %p242
      %p244 = pneg %p243
      // Predicated region
      $region9: #{siglip_encoder_layer.3} parent=5 // pred_check
        _
      $region10: #{siglip_encoder_layer.3} parent=5 // pred_check_branch
        %246 = sbr.rel (%p243) target = $region12
      $region11: #{siglip_encoder_layer.3} parent=5 // pred_region
        %s247 = ssub.s32 %s25, 1
        // Predicated region
        $region13: #{siglip_encoder_layer.3} parent=11 // pred_check
          %p248 = pneg %p86
        $region14: #{siglip_encoder_layer.3} parent=11 // pred_check_branch
          %250 = sbr.rel (%p248) target = $region16
        $region15: #{siglip_encoder_layer.3} parent=11 // pred_region
          %s252 = ssub.s32 16, 16
          %253 = vsyncadd [#allocation6], %s252
          %s255 = sshll.u32 [#allocation5], 4
          %s256 = int_to_ptr.vmem [resolvable:$true] %s255
          %258 = dma.hbm_to_vmem [thread:$0]  %s1, 16, %s256, [#allocation6]
        $region16: #{siglip_encoder_layer.3} parent=11 // pred_fallthru
          _
        // Predicated region
        $region17: #{siglip_encoder_layer.3} parent=11 // pred_check
          %p259 = pneg %p107
        $region18: #{siglip_encoder_layer.3} parent=11 // pred_check_branch
          %261 = sbr.rel (%p259) target = $region20
        $region19: #{siglip_encoder_layer.3} parent=11 // pred_region
          %s263 = ssub.s32 16, 16
          %264 = vsyncadd [#allocation6], %s263
          %s266 = sshll.u32 [#allocation7], 4
          %s267 = int_to_ptr.vmem [resolvable:$true] %s266
          %269 = dma.hbm_to_vmem [thread:$0]  %s2, 16, %s267, [#allocation6]
        $region20: #{siglip_encoder_layer.3} parent=11 // pred_fallthru
          _
        // Predicated region
        $region21: #{siglip_encoder_layer.3} parent=11 // pred_check
          %p270 = pneg %p128
        $region22: #{siglip_encoder_layer.3} parent=11 // pred_check_branch
          %272 = sbr.rel (%p270) target = $region24
        $region23: #{siglip_encoder_layer.3} parent=11 // pred_region
          %s274 = ssub.s32 512, 512
          %275 = vsyncadd [#allocation9], %s274
          %s276 = sshll.u32 [#allocation8], 4
          %s277 = int_to_ptr.vmem [resolvable:$true] %s276
          %282 = dma.hbm_to_vmem [thread:$0]  %s3, 512, %s277, [#allocation9], 128, 128, 8
        $region24: #{siglip_encoder_layer.3} parent=11 // pred_fallthru
          _
        // Predicated region
        $region25: #{siglip_encoder_layer.3} parent=11 // pred_check
          %p283 = pneg %p149
        $region26: #{siglip_encoder_layer.3} parent=11 // pred_check_branch
          %285 = sbr.rel (%p283) target = $region28
        $region27: #{siglip_encoder_layer.3} parent=11 // pred_region
          %s287 = ssub.s32 16, 16
          %288 = vsyncadd [#allocation9], %s287
          %s290 = sshll.u32 [#allocation10], 4
          %s291 = int_to_ptr.vmem [resolvable:$true] %s290
          %293 = dma.hbm_to_vmem [thread:$0]  %s4, 16, %s291, [#allocation9]
        $region28: #{siglip_encoder_layer.3} parent=11 // pred_fallthru
          _
      $region12: #{siglip_encoder_layer.3} parent=5 // pred_fallthru
        _
      %p294 = scmp.lt.s32.totalorder %s25, 2
      // Predicated region
      $region29: #{siglip_encoder_layer.3} parent=5 // pred_check
        %p295 = pneg %p294
      $region30: #{siglip_encoder_layer.3} parent=5 // pred_check_branch
        %297 = sbr.rel (%p295) target = $region32
      $region31: #{siglip_encoder_layer.3} parent=5 // pred_region
        // Predicated region
        $region33: #{siglip_encoder_layer.3} parent=31 // pred_check
          %p298 = pneg %p59
        $region34: #{siglip_encoder_layer.3} parent=31 // pred_check_branch
          %300 = sbr.rel (%p298) target = $region36
        $region35: #{siglip_encoder_layer.3} parent=31 // pred_region
          %s301 = sand.u32 %s49, 1
          %s302 = scalar_lea.sflag [#allocation3], %s301
          %s303 = sand.u32 %s49, 1
          %s304 = smul.addr %s303, 8
          %s305 = scalar_lea.vmem [#allocation2], %s304
          %s307 = ssub.s32 128, 128
          %308 = vsyncadd %s302, %s307
          %s309 = sadd.s32 %s33, %s32
          %s310 = smul.addr %s309, 128
          %s311 = scalar_lea.hbm %s0, %s310
          %s313 = sshll.u32 %s305, 4
          %s314 = int_to_ptr.vmem [resolvable:$true] %s313
          %316 = dma.hbm_to_vmem [thread:$0]  %s311, 128, %s314, %s302
        $region36: #{siglip_encoder_layer.3} parent=31 // pred_fallthru
          _
      $region32: #{siglip_encoder_layer.3} parent=5 // pred_fallthru
        _
      %p317 = scmp.le.s32.totalorder 1, %s25
      %p318 = scmp.lt.s32.totalorder %s25, 3
      %p319 = pnand %p317, %p318
      %p320 = pneg %p319
      // Predicated region
      $region37: #{siglip_encoder_layer.3} parent=5 // pred_check
        _
      $region38: #{siglip_encoder_layer.3} parent=5 // pred_check_branch
        %322 = sbr.rel (%p319) target = $region40
      $region39: #{siglip_encoder_layer.3} parent=5 // pred_region
        %s323 = ssub.s32 %s25, 1
        %s324 = sand.u32 %s52, 1
        %s325 = scalar_lea.sflag [#allocation3], %s324
        %s326 = sand.u32 %s52, 1
        %s327 = smul.addr %s326, 8
        %s328 = scalar_lea.vmem [#allocation2], %s327
        // Predicated region
        $region41: #{siglip_encoder_layer.3} parent=39 // pred_check
          %p329 = pneg %p65
        $region42: #{siglip_encoder_layer.3} parent=39 // pred_check_branch
          %331 = sbr.rel (%p329) target = $region44
        $region43: #{siglip_encoder_layer.3} parent=39 // pred_region
          %332 = dma.done %s325, 128
        $region44: #{siglip_encoder_layer.3} parent=39 // pred_fallthru
          _
        // Predicated region
        $region45: #{siglip_encoder_layer.3} parent=39 // pred_check
          %p333 = pneg %p86
        $region46: #{siglip_encoder_layer.3} parent=39 // pred_check_branch
          %335 = sbr.rel (%p333) target = $region48
        $region47: #{siglip_encoder_layer.3} parent=39 // pred_region
          %336 = dma.done [#allocation6], 16
        $region48: #{siglip_encoder_layer.3} parent=39 // pred_fallthru
          _
        // Predicated region
        $region49: #{siglip_encoder_layer.3} parent=39 // pred_check
          %p337 = pneg %p107
        $region50: #{siglip_encoder_layer.3} parent=39 // pred_check_branch
          %339 = sbr.rel (%p337) target = $region52
        $region51: #{siglip_encoder_layer.3} parent=39 // pred_region
          %340 = dma.done [#allocation6], 16
        $region52: #{siglip_encoder_layer.3} parent=39 // pred_fallthru
          _
        // Predicated region
        $region53: #{siglip_encoder_layer.3} parent=39 // pred_check
          %p341 = pneg %p128
        $region54: #{siglip_encoder_layer.3} parent=39 // pred_check_branch
          %343 = sbr.rel (%p341) target = $region56
        $region55: #{siglip_encoder_layer.3} parent=39 // pred_region
          %344 = dma.done [#allocation9], 512
        $region56: #{siglip_encoder_layer.3} parent=39 // pred_fallthru
          _
        // Predicated region
        $region57: #{siglip_encoder_layer.3} parent=39 // pred_check
          %p345 = pneg %p149
        $region58: #{siglip_encoder_layer.3} parent=39 // pred_check_branch
          %347 = sbr.rel (%p345) target = $region60
        $region59: #{siglip_encoder_layer.3} parent=39 // pred_region
          %348 = dma.done [#allocation9], 16
        $region60: #{siglip_encoder_layer.3} parent=39 // pred_fallthru
          _
        %s349 = sand.u32 %s52, 1
        %s350 = scalar_lea.sflag [#allocation3], %s349
        %s351 = sand.u32 %s52, 1
        %s352 = smul.addr %s351, 8
        %s353 = scalar_lea.vmem [#allocation2], %s352
        %p354 = pneg %p65
        %p355 = pneg %p62
        %p356 = pneg %p86
        %p357 = pneg %p83
        %p358 = pneg %p107
        %p359 = pneg %p104
        %p360 = pneg %p128
        %p361 = pneg %p125
        %p362 = pneg %p149
        %p363 = pneg %p146
        %p364 = pneg %p177
        %p365 = pneg %p174
        %s366 = sand.u32 %s164, 1
        %s367 = scalar_lea.sflag [#allocation4], %s366
        %s368 = sand.u32 %s164, 1
        %s369 = smul.addr %s368, 32
        %s370 = scalar_lea.vmem [#allocation11], %s369
        %p371 = pneg %p205
        %p372 = pneg %p202
        %s373 = sand.u32 %s30, 1
        %s374 = scalar_lea.sflag [#allocation13], %s373
        %s375 = sand.u32 %s192, 1
        %s376 = smul.addr %s375, 32
        %s377 = scalar_lea.vmem [#allocation12], %s376
        %p378 = pneg %p233
        %p379 = pneg %p230
        %s380 = sand.u32 %s30, 1
        %s381 = scalar_lea.sflag [#allocation13], %s380
        %s382 = sand.u32 %s220, 1
        %s383 = smul.addr %s382, 32
        %s384 = scalar_lea.vmem [#allocation14], %s383
        %v385 = vld [vmem:[%s328] sm:$0xff]
        %v386 = vld [vmem:[#allocation5] sm:$0x1]
        %v387 = vld [vmem:[#allocation7] sm:$0x1]
        %vm388 = vcmask 261120
        %v389 = vsel %vm388, %v385, 0.0
        %390 = vadd.xlane.f32.xlu0 %v389
        %v391 = vpop.xlane.xlu0 %390
        %v392 = vrcp.pop 32.0
        %v393 = vmul.f32 %v391, %v392
        %v394 = vmul.f32 %v385, %v385
        %v395 = vsel %vm388, %v394, 0.0
        %396 = vadd.xlane.f32.xlu0 %v395
        %v397 = vpop.xlane.xlu0 %396
        %v398 = vmul.f32 %v397, %v392
        %v399 = vmul.f32 %v393, %v393
        %v400 = vsub.f32 %v398, %v399
        %v401 = vsub.f32 %v385, %v393
        %v402 = vadd.f32 %v400, 1e-06
        %v403 = vrsqrt.pop %v402
        %v404 = vmul.f32 %v401, %v403
        %v406 = vlaneseq
        %v407 = vshrl.u32 %v406, 7
        %v408 = vsub.s32 0, %v407
        %v409 = vrot.slane %v386, %v408
        %v411 = vmul.f32 %v404, %v409
        %v413 = vlaneseq
        %v414 = vshrl.u32 %v413, 7
        %v415 = vsub.s32 0, %v414
        %v416 = vrot.slane %v387, %v415
        %v418 = vadd.f32 %v411, %v416
        %v419 = vld [vmem:[#allocation8] sm:$0xff]
        %v420 = vld [vmem:[#allocation8 + $0x8] sm:$0xff]
        %v421 = vld [vmem:[#allocation8 + $0x10] sm:$0xff]
        %v422 = vld [vmem:[#allocation8 + $0x18] sm:$0xff]
        %v423 = vld [vmem:[#allocation10] sm:$0x1]
        %v425 = vlaneseq
        %v426 = vshrl.u32 %v425, 7
        %v427 = vsub.s32 0, %v426
        %v428 = vrot.slane %v423, %v427
        %v431 = vsel %vm388, %v418, 0
        %433 = vmatprep.subr.mxu0 0.0
        %434 = vmatpush1.msra.mxu0 %v419
        %435 = vmatprep.subr.mxu0 0.0
        %436 = vmatpush1.msra.mxu0 %v420
        %437 = vmatprep.subr.mxu0 0.0
        %438 = vmatpush1.msra.mxu0 %v421
        %439 = vmatprep.subr.mxu0 0.0
        %440 = vmatpush1.msra.mxu0 %v422
        %441 = vmatprep.subr.mxu0 0.0
        %442 = vmatpush1.msra.mxu0 0.0
        %443 = vmatprep.subr.mxu0 0.0
        %444 = vmatpush1.msra.mxu0 0.0
        %445 = vmatprep.subr.mxu0 0.0
        %446 = vmatpush1.msra.mxu0 0.0
        %447 = vmatprep.subr.mxu0 0.0
        %448 = vmatpush1.msra.mxu0 0.0
        %449 = vmatprep.subr.mxu0 0.0
        %450 = vmatpush1.msra.mxu0 0.0
        %451 = vmatprep.subr.mxu0 0.0
        %452 = vmatpush1.msra.mxu0 0.0
        %453 = vmatprep.subr.mxu0 0.0
        %454 = vmatpush1.msra.mxu0 0.0
        %455 = vmatprep.subr.mxu0 0.0
        %456 = vmatpush1.msra.mxu0 0.0
        %457 = vmatprep.subr.mxu0 0.0
        %458 = vmatpush1.msra.mxu0 0.0
        %459 = vmatprep.subr.mxu0 0.0
        %460 = vmatpush1.msra.mxu0 0.0
        %461 = vmatprep.subr.mxu0 0.0
        %462 = vmatpush1.msra.mxu0 0.0
        %463 = vmatprep.subr.mxu0 0.0
        %464 = vmatpush1.msra.mxu0 0.0
        %465 = vmatprep.subr.mxu0 0.0
        %466 = vmatpush1.msra.mxu0 0.0
        %467 = vmatprep.subr.mxu0 0.0
        %468 = vmatpush1.msra.mxu0 0.0
        %469 = vmatprep.subr.mxu0 0.0
        %470 = vmatpush1.msra.mxu0 0.0
        %471 = vmatprep.subr.mxu0 0.0
        %472 = vmatpush1.msra.mxu0 0.0
        %473 = vmatprep.subr.mxu0 0.0
        %474 = vmatpush1.msra.mxu0 0.0
        %475 = vmatprep.subr.mxu0 0.0
        %476 = vmatpush1.msra.mxu0 0.0
        %477 = vmatprep.subr.mxu0 0.0
        %478 = vmatpush1.msra.mxu0 0.0
        %479 = vmatprep.subr.mxu0 0.0
        %480 = vmatpush1.msra.mxu0 0.0
        %481 = vmatprep.subr.mxu0 0.0
        %482 = vmatpush1.msra.mxu0 0.0
        %483 = vmatprep.subr.mxu0 0.0
        %484 = vmatpush1.msra.mxu0 0.0
        %485 = vmatprep.subr.mxu0 0.0
        %486 = vmatpush1.msra.mxu0 0.0
        %487 = vmatprep.subr.mxu0 0.0
        %488 = vmatpush1.msra.mxu0 0.0
        %489 = vmatprep.subr.mxu0 0.0
        %490 = vmatpush1.msra.mxu0 0.0
        %491 = vmatprep.subr.mxu0 0.0
        %492 = vmatpush1.msra.mxu0 0.0
        %493 = vmatprep.subr.mxu0 0.0
        %494 = vmatpush1.msra.mxu0 0.0
        %495 = vmatprep.subr.mxu0 0.0
        %496 = vmatpush1.msra.mxu0 0.0
        %497 = vmatprep.mubr.f32.mxu0 0.0
        %498 = vmatmul.mubr.f32.gmra.mrb[0].mxu0 %v431
        %v499 = vpop.f32.mrb[0].mxu0
        %v500 = vadd.f32 %v428, %v499
        %v501 = vpop.f32.mrb[0].mxu0
        %502 = vdwg.mxu0
        %504 = vrot.lane.b32.xlu0 %v500, 120
        %v505 = vpop.permute.xlu0 %504
        %507 = vrot.lane.b32.xlu0 %v500, 112
        %v508 = vpop.permute.xlu0 %507
        %510 = vrot.lane.b32.xlu0 %v500, 104
        %v511 = vpop.permute.xlu0 %510
        %v513 = vcombine.low %v500, %v508
        %v514 = vcombine.high %v500, %v508
        %v516 = vunpack.c.l.s4 1983009808
        %v517 = vunpack.c.0.s8 %v516
        %v518 = vlaneseq
        %v519 = vshrl.u32 %v518, 7
        %v520 = vsub.s32 %v517, %v519
        %v521 = vrot.slane %v513, %v520
        %v523 = vunpack.c.l.s4 1983009808
        %v524 = vunpack.c.0.s8 %v523
        %v525 = vlaneseq
        %v526 = vshrl.u32 %v525, 7
        %v527 = vsub.s32 %v524, %v526
        %v528 = vrot.slane %v514, %v527
        %v529 = vcombine.low %v505, %v511
        %v530 = vcombine.high %v505, %v511
        %v532 = vunpack.c.l.s4 1983009808
        %v533 = vunpack.c.0.s8 %v532
        %v534 = vlaneseq
        %v535 = vshrl.u32 %v534, 7
        %v536 = vsub.s32 %v533, %v535
        %v537 = vrot.slane %v529, %v536
        %v539 = vunpack.c.l.s4 1983009808
        %v540 = vunpack.c.0.s8 %v539
        %v541 = vlaneseq
        %v542 = vshrl.u32 %v541, 7
        %v543 = vsub.s32 %v540, %v542
        %v544 = vrot.slane %v530, %v543
        %v545 = vcombine.low %v521, %v537
        %v546 = vcombine.high %v521, %v537
        %v548 = vunpack.c.l.s4 1934713408
        %v549 = vunpack.c.0.s8 %v548
        %v550 = vlaneseq
        %v551 = vshrl.u32 %v550, 7
        %v552 = vsub.s32 %v549, %v551
        %v553 = vrot.slane %v545, %v552
        %v555 = vunpack.c.l.s4 1934713408
        %v556 = vunpack.c.0.s8 %v555
        %v557 = vlaneseq
        %v558 = vshrl.u32 %v557, 7
        %v559 = vsub.s32 %v556, %v558
        %v560 = vrot.slane %v546, %v559
        %v561 = vcombine.low %v528, %v544
        %v562 = vcombine.high %v528, %v544
        %v564 = vunpack.c.l.s4 1934713408
        %v565 = vunpack.c.0.s8 %v564
        %v566 = vlaneseq
        %v567 = vshrl.u32 %v566, 7
        %v568 = vsub.s32 %v565, %v567
        %v569 = vrot.slane %v561, %v568
        %v571 = vunpack.c.l.s4 1934713408
        %v572 = vunpack.c.0.s8 %v571
        %v573 = vlaneseq
        %v574 = vshrl.u32 %v573, 7
        %v575 = vsub.s32 %v572, %v574
        %v576 = vrot.slane %v562, %v575
        %v577 = vcombine.high %v553, 0.0
        %v578 = vcombine.high %v560, 0.0
        %v579 = vcombine.high %v569, 0.0
        %v580 = vcombine.high %v576, 0.0
        %v581 = vcombine.low %v553, %v560
        %v583 = vunpack.c.l.s4 1983009808
        %v584 = vunpack.c.0.s8 %v583
        %v585 = vlaneseq
        %v586 = vshrl.u32 %v585, 7
        %v587 = vsub.s32 %v584, %v586
        %v588 = vrot.slane %v581, %v587
        %v589 = vcombine.low %v577, %v578
        %v591 = vunpack.c.l.s4 1983009808
        %v592 = vunpack.c.0.s8 %v591
        %v593 = vlaneseq
        %v594 = vshrl.u32 %v593, 7
        %v595 = vsub.s32 %v592, %v594
        %v596 = vrot.slane %v589, %v595
        %v597 = vcombine.low %v569, %v576
        %v599 = vunpack.c.l.s4 1983009808
        %v600 = vunpack.c.0.s8 %v599
        %v601 = vlaneseq
        %v602 = vshrl.u32 %v601, 7
        %v603 = vsub.s32 %v600, %v602
        %v604 = vrot.slane %v597, %v603
        %v605 = vcombine.low %v579, %v580
        %v607 = vunpack.c.l.s4 1983009808
        %v608 = vunpack.c.0.s8 %v607
        %v609 = vlaneseq
        %v610 = vshrl.u32 %v609, 7
        %v611 = vsub.s32 %v608, %v610
        %v612 = vrot.slane %v605, %v611
        %v613 = vcombine.low %v588, %v596
        %v614 = vcombine.high %v588, %v596
        %v616 = vunpack.c.l.s4 1934713408
        %v617 = vunpack.c.0.s8 %v616
        %v618 = vlaneseq
        %v619 = vshrl.u32 %v618, 7
        %v620 = vsub.s32 %v617, %v619
        %v621 = vrot.slane %v613, %v620
        %v623 = vunpack.c.l.s4 1934713408
        %v624 = vunpack.c.0.s8 %v623
        %v625 = vlaneseq
        %v626 = vshrl.u32 %v625, 7
        %v627 = vsub.s32 %v624, %v626
        %v628 = vrot.slane %v614, %v627
        %v629 = vcombine.low %v604, %v612
        %v630 = vcombine.high %v604, %v612
        %v632 = vunpack.c.l.s4 1934713408
        %v633 = vunpack.c.0.s8 %v632
        %v634 = vlaneseq
        %v635 = vshrl.u32 %v634, 7
        %v636 = vsub.s32 %v633, %v635
        %v637 = vrot.slane %v629, %v636
        %v639 = vunpack.c.l.s4 1934713408
        %v640 = vunpack.c.0.s8 %v639
        %v641 = vlaneseq
        %v642 = vshrl.u32 %v641, 7
        %v643 = vsub.s32 %v640, %v642
        %v644 = vrot.slane %v630, %v643
        %v645 = vcombine.low %v621, %v637
        %v646 = vcombine.high %v621, %v637
        %v647 = vcombine.low %v628, %v644
        %v648 = vcombine.high %v628, %v644
        %vm649 = vcmask 64512
        %650 = vst.msk [vmem:[%s370] sm:$0xff] %vm649, %v645
        %651 = vst.msk [vmem:[%s370 + $0x8] sm:$0xff] %vm649, %v646
        %652 = vst.msk [vmem:[%s370 + $0x10] sm:$0xff] %vm649, %v647
        %653 = vst.msk [vmem:[%s370 + $0x18] sm:$0xff] %vm649, %v648
        %654 = vrot.lane.b32.xlu0 %v500, 96
        %v655 = vpop.permute.xlu0 %654
        %656 = vrot.lane.b32.xlu0 %v505, 96
        %v657 = vpop.permute.xlu0 %656
        %658 = vrot.lane.b32.xlu0 %v508, 96
        %v659 = vpop.permute.xlu0 %658
        %660 = vrot.lane.b32.xlu0 %v511, 96
        %v661 = vpop.permute.xlu0 %660
        %v666 = vcombine.low %v655, %v659
        %v667 = vcombine.high %v655, %v659
        %v669 = vunpack.c.l.s4 1983009808
        %v670 = vunpack.c.0.s8 %v669
        %v671 = vlaneseq
        %v672 = vshrl.u32 %v671, 7
        %v673 = vsub.s32 %v670, %v672
        %v674 = vrot.slane %v666, %v673
        %v676 = vunpack.c.l.s4 1983009808
        %v677 = vunpack.c.0.s8 %v676
        %v678 = vlaneseq
        %v679 = vshrl.u32 %v678, 7
        %v680 = vsub.s32 %v677, %v679
        %v681 = vrot.slane %v667, %v680
        %v682 = vcombine.low %v657, %v661
        %v683 = vcombine.high %v657, %v661
        %v685 = vunpack.c.l.s4 1983009808
        %v686 = vunpack.c.0.s8 %v685
        %v687 = vlaneseq
        %v688 = vshrl.u32 %v687, 7
        %v689 = vsub.s32 %v686, %v688
        %v690 = vrot.slane %v682, %v689
        %v692 = vunpack.c.l.s4 1983009808
        %v693 = vunpack.c.0.s8 %v692
        %v694 = vlaneseq
        %v695 = vshrl.u32 %v694, 7
        %v696 = vsub.s32 %v693, %v695
        %v697 = vrot.slane %v683, %v696
        %v698 = vcombine.low %v674, %v690
        %v699 = vcombine.high %v674, %v690
        %v701 = vunpack.c.l.s4 1934713408
        %v702 = vunpack.c.0.s8 %v701
        %v703 = vlaneseq
        %v704 = vshrl.u32 %v703, 7
        %v705 = vsub.s32 %v702, %v704
        %v706 = vrot.slane %v698, %v705
        %v708 = vunpack.c.l.s4 1934713408
        %v709 = vunpack.c.0.s8 %v708
        %v710 = vlaneseq
        %v711 = vshrl.u32 %v710, 7
        %v712 = vsub.s32 %v709, %v711
        %v713 = vrot.slane %v699, %v712
        %v714 = vcombine.low %v681, %v697
        %v715 = vcombine.high %v681, %v697
        %v717 = vunpack.c.l.s4 1934713408
        %v718 = vunpack.c.0.s8 %v717
        %v719 = vlaneseq
        %v720 = vshrl.u32 %v719, 7
        %v721 = vsub.s32 %v718, %v720
        %v722 = vrot.slane %v714, %v721
        %v724 = vunpack.c.l.s4 1934713408
        %v725 = vunpack.c.0.s8 %v724
        %v726 = vlaneseq
        %v727 = vshrl.u32 %v726, 7
        %v728 = vsub.s32 %v725, %v727
        %v729 = vrot.slane %v715, %v728
        %v730 = vcombine.high %v706, 0.0
        %v731 = vcombine.high %v713, 0.0
        %v732 = vcombine.high %v722, 0.0
        %v733 = vcombine.high %v729, 0.0
        %v734 = vcombine.low %v706, %v713
        %v736 = vunpack.c.l.s4 1983009808
        %v737 = vunpack.c.0.s8 %v736
        %v738 = vlaneseq
        %v739 = vshrl.u32 %v738, 7
        %v740 = vsub.s32 %v737, %v739
        %v741 = vrot.slane %v734, %v740
        %v742 = vcombine.low %v730, %v731
        %v744 = vunpack.c.l.s4 1983009808
        %v745 = vunpack.c.0.s8 %v744
        %v746 = vlaneseq
        %v747 = vshrl.u32 %v746, 7
        %v748 = vsub.s32 %v745, %v747
        %v749 = vrot.slane %v742, %v748
        %v750 = vcombine.low %v722, %v729
        %v752 = vunpack.c.l.s4 1983009808
        %v753 = vunpack.c.0.s8 %v752
        %v754 = vlaneseq
        %v755 = vshrl.u32 %v754, 7
        %v756 = vsub.s32 %v753, %v755
        %v757 = vrot.slane %v750, %v756
        %v758 = vcombine.low %v732, %v733
        %v760 = vunpack.c.l.s4 1983009808
        %v761 = vunpack.c.0.s8 %v760
        %v762 = vlaneseq
        %v763 = vshrl.u32 %v762, 7
        %v764 = vsub.s32 %v761, %v763
        %v765 = vrot.slane %v758, %v764
        %v766 = vcombine.low %v741, %v749
        %v767 = vcombine.high %v741, %v749
        %v769 = vunpack.c.l.s4 1934713408
        %v770 = vunpack.c.0.s8 %v769
        %v771 = vlaneseq
        %v772 = vshrl.u32 %v771, 7
        %v773 = vsub.s32 %v770, %v772
        %v774 = vrot.slane %v766, %v773
        %v776 = vunpack.c.l.s4 1934713408
        %v777 = vunpack.c.0.s8 %v776
        %v778 = vlaneseq
        %v779 = vshrl.u32 %v778, 7
        %v780 = vsub.s32 %v777, %v779
        %v781 = vrot.slane %v767, %v780
        %v782 = vcombine.low %v757, %v765
        %v783 = vcombine.high %v757, %v765
        %v785 = vunpack.c.l.s4 1934713408
        %v786 = vunpack.c.0.s8 %v785
        %v787 = vlaneseq
        %v788 = vshrl.u32 %v787, 7
        %v789 = vsub.s32 %v786, %v788
        %v790 = vrot.slane %v782, %v789
        %v792 = vunpack.c.l.s4 1934713408
        %v793 = vunpack.c.0.s8 %v792
        %v794 = vlaneseq
        %v795 = vshrl.u32 %v794, 7
        %v796 = vsub.s32 %v793, %v795
        %v797 = vrot.slane %v783, %v796
        %v798 = vcombine.low %v774, %v790
        %v799 = vcombine.high %v774, %v790
        %v800 = vcombine.low %v781, %v797
        %v801 = vcombine.high %v781, %v797
        %802 = vst.msk [vmem:[%s377] sm:$0xff] %vm649, %v798
        %803 = vst.msk [vmem:[%s377 + $0x8] sm:$0xff] %vm649, %v799
        %804 = vst.msk [vmem:[%s377 + $0x10] sm:$0xff] %vm649, %v800
        %805 = vst.msk [vmem:[%s377 + $0x18] sm:$0xff] %vm649, %v801
        %806 = vrot.lane.b32.xlu0 %v500, 64
        %v807 = vpop.permute.xlu0 %806
        %808 = vrot.lane.b32.xlu0 %v505, 64
        %v809 = vpop.permute.xlu0 %808
        %810 = vrot.lane.b32.xlu0 %v508, 64
        %v811 = vpop.permute.xlu0 %810
        %812 = vrot.lane.b32.xlu0 %v511, 64
        %v813 = vpop.permute.xlu0 %812
        %v818 = vcombine.low %v807, %v811
        %v819 = vcombine.high %v807, %v811
        %v821 = vunpack.c.l.s4 1983009808
        %v822 = vunpack.c.0.s8 %v821
        %v823 = vlaneseq
        %v824 = vshrl.u32 %v823, 7
        %v825 = vsub.s32 %v822, %v824
        %v826 = vrot.slane %v818, %v825
        %v828 = vunpack.c.l.s4 1983009808
        %v829 = vunpack.c.0.s8 %v828
        %v830 = vlaneseq
        %v831 = vshrl.u32 %v830, 7
        %v832 = vsub.s32 %v829, %v831
        %v833 = vrot.slane %v819, %v832
        %v834 = vcombine.low %v809, %v813
        %v835 = vcombine.high %v809, %v813
        %v837 = vunpack.c.l.s4 1983009808
        %v838 = vunpack.c.0.s8 %v837
        %v839 = vlaneseq
        %v840 = vshrl.u32 %v839, 7
        %v841 = vsub.s32 %v838, %v840
        %v842 = vrot.slane %v834, %v841
        %v844 = vunpack.c.l.s4 1983009808
        %v845 = vunpack.c.0.s8 %v844
        %v846 = vlaneseq
        %v847 = vshrl.u32 %v846, 7
        %v848 = vsub.s32 %v845, %v847
        %v849 = vrot.slane %v835, %v848
        %v850 = vcombine.low %v826, %v842
        %v851 = vcombine.high %v826, %v842
        %v853 = vunpack.c.l.s4 1934713408
        %v854 = vunpack.c.0.s8 %v853
        %v855 = vlaneseq
        %v856 = vshrl.u32 %v855, 7
        %v857 = vsub.s32 %v854, %v856
        %v858 = vrot.slane %v850, %v857
        %v860 = vunpack.c.l.s4 1934713408
        %v861 = vunpack.c.0.s8 %v860
        %v862 = vlaneseq
        %v863 = vshrl.u32 %v862, 7
        %v864 = vsub.s32 %v861, %v863
        %v865 = vrot.slane %v851, %v864
        %v866 = vcombine.low %v833, %v849
        %v867 = vcombine.high %v833, %v849
        %v869 = vunpack.c.l.s4 1934713408
        %v870 = vunpack.c.0.s8 %v869
        %v871 = vlaneseq
        %v872 = vshrl.u32 %v871, 7
        %v873 = vsub.s32 %v870, %v872
        %v874 = vrot.slane %v866, %v873
        %v876 = vunpack.c.l.s4 1934713408
        %v877 = vunpack.c.0.s8 %v876
        %v878 = vlaneseq
        %v879 = vshrl.u32 %v878, 7
        %v880 = vsub.s32 %v877, %v879
        %v881 = vrot.slane %v867, %v880
        %v882 = vcombine.high %v858, 0.0
        %v883 = vcombine.high %v865, 0.0
        %v884 = vcombine.high %v874, 0.0
        %v885 = vcombine.high %v881, 0.0
        %v886 = vcombine.low %v858, %v865
        %v888 = vunpack.c.l.s4 1983009808
        %v889 = vunpack.c.0.s8 %v888
        %v890 = vlaneseq
        %v891 = vshrl.u32 %v890, 7
        %v892 = vsub.s32 %v889, %v891
        %v893 = vrot.slane %v886, %v892
        %v894 = vcombine.low %v882, %v883
        %v896 = vunpack.c.l.s4 1983009808
        %v897 = vunpack.c.0.s8 %v896
        %v898 = vlaneseq
        %v899 = vshrl.u32 %v898, 7
        %v900 = vsub.s32 %v897, %v899
        %v901 = vrot.slane %v894, %v900
        %v902 = vcombine.low %v874, %v881
        %v904 = vunpack.c.l.s4 1983009808
        %v905 = vunpack.c.0.s8 %v904
        %v906 = vlaneseq
        %v907 = vshrl.u32 %v906, 7
        %v908 = vsub.s32 %v905, %v907
        %v909 = vrot.slane %v902, %v908
        %v910 = vcombine.low %v884, %v885
        %v912 = vunpack.c.l.s4 1983009808
        %v913 = vunpack.c.0.s8 %v912
        %v914 = vlaneseq
        %v915 = vshrl.u32 %v914, 7
        %v916 = vsub.s32 %v913, %v915
        %v917 = vrot.slane %v910, %v916
        %v918 = vcombine.low %v893, %v901
        %v919 = vcombine.high %v893, %v901
        %v921 = vunpack.c.l.s4 1934713408
        %v922 = vunpack.c.0.s8 %v921
        %v923 = vlaneseq
        %v924 = vshrl.u32 %v923, 7
        %v925 = vsub.s32 %v922, %v924
        %v926 = vrot.slane %v918, %v925
        %v928 = vunpack.c.l.s4 1934713408
        %v929 = vunpack.c.0.s8 %v928
        %v930 = vlaneseq
        %v931 = vshrl.u32 %v930, 7
        %v932 = vsub.s32 %v929, %v931
        %v933 = vrot.slane %v919, %v932
        %v934 = vcombine.low %v909, %v917
        %v935 = vcombine.high %v909, %v917
        %v937 = vunpack.c.l.s4 1934713408
        %v938 = vunpack.c.0.s8 %v937
        %v939 = vlaneseq
        %v940 = vshrl.u32 %v939, 7
        %v941 = vsub.s32 %v938, %v940
        %v942 = vrot.slane %v934, %v941
        %v944 = vunpack.c.l.s4 1934713408
        %v945 = vunpack.c.0.s8 %v944
        %v946 = vlaneseq
        %v947 = vshrl.u32 %v946, 7
        %v948 = vsub.s32 %v945, %v947
        %v949 = vrot.slane %v935, %v948
        %v950 = vcombine.low %v926, %v942
        %v951 = vcombine.high %v926, %v942
        %v952 = vcombine.low %v933, %v949
        %v953 = vcombine.high %v933, %v949
        %954 = vst.msk [vmem:[%s384] sm:$0xff] %vm649, %v950
        %955 = vst.msk [vmem:[%s384 + $0x8] sm:$0xff] %vm649, %v951
        %956 = vst.msk [vmem:[%s384 + $0x10] sm:$0xff] %vm649, %v952
        %957 = vst.msk [vmem:[%s384 + $0x18] sm:$0xff] %vm649, %v953
        %s958 = sand.u32 %s164, 1
        %s959 = scalar_lea.sflag [#allocation4], %s958
        %s960 = sand.u32 %s164, 1
        %s961 = smul.addr %s960, 32
        %s962 = scalar_lea.vmem [#allocation11], %s961
        %s963 = sand.u32 %s30, 1
        %s964 = scalar_lea.sflag [#allocation13], %s963
        %s965 = sand.u32 %s192, 1
        %s966 = smul.addr %s965, 32
        %s967 = scalar_lea.vmem [#allocation12], %s966
        %s968 = sand.u32 %s30, 1
        %s969 = scalar_lea.sflag [#allocation13], %s968
        %s970 = sand.u32 %s220, 1
        %s971 = smul.addr %s970, 32
        %s972 = scalar_lea.vmem [#allocation14], %s971
        // Predicated region
        $region61: #{siglip_encoder_layer.3} parent=39 // pred_check
          %p973 = pneg %p174
        $region62: #{siglip_encoder_layer.3} parent=39 // pred_check_branch
          %975 = sbr.rel (%p973) target = $region64
        $region63: #{siglip_encoder_layer.3} parent=39 // pred_region
          %s977 = ssub.s32 512, 512
          %978 = vsyncadd %s959, %s977
          %s979 = smul.addr %s34, 4
          %s980 = sadd.s32 %s35, %s979
          %s981 = smul.addr %s980, 128
          %s982 = scalar_lea.hbm %s5, %s981
          %s983 = sshll.u32 %s962, 4
          %s984 = int_to_ptr.vmem [resolvable:$true] %s983
          %989 = dma.vmem_to_hbm [thread:$0]  %s984, 512, %s982, %s959, 128, 128, 8
        $region64: #{siglip_encoder_layer.3} parent=39 // pred_fallthru
          _
        // Predicated region
        $region65: #{siglip_encoder_layer.3} parent=39 // pred_check
          %p990 = pneg %p202
        $region66: #{siglip_encoder_layer.3} parent=39 // pred_check_branch
          %992 = sbr.rel (%p990) target = $region68
        $region67: #{siglip_encoder_layer.3} parent=39 // pred_region
          %s994 = ssub.s32 512, 512
          %995 = vsyncadd %s964, %s994
          %s996 = smul.addr %s34, 4
          %s997 = sadd.s32 %s35, %s996
          %s998 = smul.addr %s997, 128
          %s999 = scalar_lea.hbm %s6, %s998
          %s1000 = sshll.u32 %s967, 4
          %s1001 = int_to_ptr.vmem [resolvable:$true] %s1000
          %1006 = dma.vmem_to_hbm [thread:$0]  %s1001, 512, %s999, %s964, 128, 128, 8
        $region68: #{siglip_encoder_layer.3} parent=39 // pred_fallthru
          _
        // Predicated region
        $region69: #{siglip_encoder_layer.3} parent=39 // pred_check
          %p1007 = pneg %p230
        $region70: #{siglip_encoder_layer.3} parent=39 // pred_check_branch
          %1009 = sbr.rel (%p1007) target = $region72
        $region71: #{siglip_encoder_layer.3} parent=39 // pred_region
          %s1011 = ssub.s32 512, 512
          %1012 = vsyncadd %s969, %s1011
          %s1013 = smul.addr %s34, 4
          %s1014 = sadd.s32 %s35, %s1013
          %s1015 = smul.addr %s1014, 128
          %s1016 = scalar_lea.hbm %s7, %s1015
          %s1017 = sshll.u32 %s972, 4
          %s1018 = int_to_ptr.vmem [resolvable:$true] %s1017
          %1023 = dma.vmem_to_hbm [thread:$0]  %s1018, 512, %s1016, %s969, 128, 128, 8
        $region72: #{siglip_encoder_layer.3} parent=39 // pred_fallthru
          _
      $region40: #{siglip_encoder_layer.3} parent=5 // pred_fallthru
        _
      %p1024 = scmp.le.s32.totalorder 2, %s25
      // Predicated region
      $region73: #{siglip_encoder_layer.3} parent=5 // pred_check
        %p1025 = pneg %p1024
      $region74: #{siglip_encoder_layer.3} parent=5 // pred_check_branch
        %1027 = sbr.rel (%p1025) target = $region76
      $region75: #{siglip_encoder_layer.3} parent=5 // pred_region
        %s1028 = ssub.s32 %s25, 2
        // Predicated region
        $region77: #{siglip_encoder_layer.3} parent=75 // pred_check
          %p1029 = pneg %p180
        $region78: #{siglip_encoder_layer.3} parent=75 // pred_check_branch
          %1031 = sbr.rel (%p1029) target = $region80
        $region79: #{siglip_encoder_layer.3} parent=75 // pred_region
          %s1032 = sand.u32 %s165, 1
          %s1033 = scalar_lea.sflag [#allocation4], %s1032
          %s1034 = sand.u32 %s165, 1
          %s1035 = smul.addr %s1034, 32
          %s1036 = scalar_lea.vmem [#allocation11], %s1035
          %1037 = dma.done %s1033, 512
        $region80: #{siglip_encoder_layer.3} parent=75 // pred_fallthru
          _
        // Predicated region
        $region81: #{siglip_encoder_layer.3} parent=75 // pred_check
          %p1038 = pneg %p208
        $region82: #{siglip_encoder_layer.3} parent=75 // pred_check_branch
          %1040 = sbr.rel (%p1038) target = $region84
        $region83: #{siglip_encoder_layer.3} parent=75 // pred_region
          %s1041 = sand.u32 %s31, 1
          %s1042 = scalar_lea.sflag [#allocation13], %s1041
          %s1043 = sand.u32 %s193, 1
          %s1044 = smul.addr %s1043, 32
          %s1045 = scalar_lea.vmem [#allocation12], %s1044
          %1046 = dma.done %s1042, 512
        $region84: #{siglip_encoder_layer.3} parent=75 // pred_fallthru
          _
        // Predicated region
        $region85: #{siglip_encoder_layer.3} parent=75 // pred_check
          %p1047 = pneg %p236
        $region86: #{siglip_encoder_layer.3} parent=75 // pred_check_branch
          %1049 = sbr.rel (%p1047) target = $region88
        $region87: #{siglip_encoder_layer.3} parent=75 // pred_region
          %s1050 = sand.u32 %s31, 1
          %s1051 = scalar_lea.sflag [#allocation13], %s1050
          %s1052 = sand.u32 %s221, 1
          %s1053 = smul.addr %s1052, 32
          %s1054 = scalar_lea.vmem [#allocation14], %s1053
          %1055 = dma.done %s1051, 512
        $region88: #{siglip_encoder_layer.3} parent=75 // pred_fallthru
          _
      $region76: #{siglip_encoder_layer.3} parent=5 // pred_fallthru
        _
    $region6: #{siglip_encoder_layer.3} parent=1 // loop_footer
      %s29 = sadd.s32 1, %s25
    $region7: #{siglip_encoder_layer.3} parent=1 // loop_footer_branch
      %24 = sbr.rel target = $region3
    $region8: #{siglip_encoder_layer.3} parent=1 // loop_exit
      _
    %1056 = vsyncpa [#allocation3], 1
    %s1057 = scalar_lea.sflag [#allocation3], 1
    %1058 = vsyncpa %s1057, 1
    %1059 = vsyncpa [#allocation6], 1
    %1060 = vsyncpa [#allocation9], 1
    %1061 = vsyncpa [#allocation4], 1
    %s1062 = scalar_lea.sflag [#allocation4], 1
    %1063 = vsyncpa %s1062, 1
    %1064 = vsyncpa [#allocation13], 1
    %s1065 = scalar_lea.sflag [#allocation13], 1
    %1066 = vsyncpa %s1065, 1

// kernel: siglip_encoder_layer.4
$region0: #{siglip_encoder_layer.4}
  #allocation0 [shape = 'u32[]', space=smem, size = 0x4, offset = 0x4, fixed_abs, tag = 'smem constant byte address 0x4 - core index']
  #allocation1 [shape = 'u32[144,128]{1,0:T(1,128)}', space=vmem, size = 0x12000, scoped, tag = 'internal scratch']
  #allocation2 [shape = 'f32[8,1]{1,0:T(8,128)}', space=vmem, size = 0x1000, scoped, tag = 'scratch operand']
  #allocation3 [shape = 'f32[8,1]{1,0:T(8,128)}', space=vmem, size = 0x1000, scoped, tag = 'scratch operand']
  #allocation4 [shape = 'f32[8,8]{1,0:T(8,128)}', space=vmem, size = 0x1000, scoped, tag = 'scratch operand']
  %s0 = inlined_call_operand.hbm [shape: f32[2,4,8,8], index: 0, kind: input, shape index: {}]
  %s1 = inlined_call_operand.hbm [shape: f32[2,4,8,8], index: 1, kind: input, shape index: {}]
  %s2 = inlined_call_operand.hbm [shape: f32[2,4,8,8], index: 2, kind: input, shape index: {}]
  %s3 = inlined_call_operand.hbm [shape: f32[2,4,8,8], index: 3, kind: output, shape index: {}]
  %s4 = sld [smem:[#allocation0]]
  $region65: #{siglip_encoder_layer.4} parent=0
    _
  %s6 = ssub.s32 1, %s4
  %s7 = scalar_select 0, %s6, %s4
  $region1: #{siglip_encoder_layer.4} parent=0
    #allocation5 [shape = 'u8[8192]{0}', space=vmem, size = 0x2000, scoped, tag = 'input window, operand 0']
    #allocation6 [shape = 's32[2]{0}', space=sflag, size = 0x8, scoped, tag = 'scoped memory for siglip_encoder_layer.4']
    #allocation7 [shape = 's32[2]{0}', space=sflag, size = 0x8, scoped, tag = 'scoped memory for siglip_encoder_layer.4']
    #allocation8 [shape = 'u8[8192]{0}', space=vmem, size = 0x2000, scoped, tag = 'input window, operand 1']
    #allocation9 [shape = 's32[2]{0}', space=sflag, size = 0x8, scoped, tag = 'scoped memory for siglip_encoder_layer.4']
    #allocation10 [shape = 'u8[8192]{0}', space=vmem, size = 0x2000, scoped, tag = 'input window, operand 2']
    #allocation11 [shape = 'u8[8192]{0}', space=vmem, size = 0x2000, scoped, tag = 'output window, operand 0']
    %8 = vsyncpa [#allocation6], 0
    %s9 = scalar_lea.sflag [#allocation6], 1
    %10 = vsyncpa %s9, 0
    %11 = vsyncpa [#allocation9], 0
    %s12 = scalar_lea.sflag [#allocation9], 1
    %13 = vsyncpa %s12, 0
    %14 = vsyncpa [#allocation7], 0
    %s15 = scalar_lea.sflag [#allocation7], 1
    %16 = vsyncpa %s15, 0
    loop: start=0, step=1, limit=10
    $region2: #{siglip_encoder_layer.4} parent=1 // loop_pre_header
      _
    $region3: #{siglip_encoder_layer.4} parent=1 // loop_header
      %s18 = sphi 0, %s22
      %p19 = scmp.ge.s32.totalorder %s18, 10
      %s25 = sphi 0, %s51
      %s26 = sphi 0, %s47
      %s27 = sphi 0, %s43
      %s28 = sphi 0, %s39
      %s29 = sphi 0, %s25
      %s30 = sphi 0, %s26
      %s31 = sphi 0, %s27
      %s32 = sphi 0, %s28
      %s33 = sphi 0, %s29
      %s34 = sphi 0, %s30
      %s35 = sphi 0, %s31
      %s36 = sphi 0, %s32
      %s58 = sphi 0, %s60
      %s61 = sphi 0, %s58
      %s62 = sphi 0, %s61
      %s78 = sphi 0, %s62
      %s88 = sphi 0, %s90
      %s91 = sphi 0, %s88
      %s92 = sphi 0, %s91
      %s108 = sphi 0, %s92
      %s118 = sphi 0, %s120
      %s121 = sphi 0, %s118
      %s122 = sphi 0, %s121
      %s138 = sphi 0, %s122
      %s148 = sphi 0, %s150
      %s151 = sphi 0, %s148
      %s152 = sphi 0, %s151
      %s168 = sphi 0, %s152
    $region4: #{siglip_encoder_layer.4} parent=1 // loop_header_branch
      %21 = sbr.rel (%p19) target = $region8
    $region5: #{siglip_encoder_layer.4} parent=1 // loop_body
      %s23 = ssub.s32 %s18, 1
      %s24 = ssub.s32 %s18, 2
      %s37 = sadd.s32 1, %s28
      %p38 = scmp.ge.s32.totalorder %s37, 1
      %s39 = scalar_select %p38, 0, %s37
      %s40 = sadd.s32 1, %s27
      %s41 = scalar_select %p38, %s40, %s27
      %p42 = scmp.ge.s32.totalorder %s41, 1
      %s43 = scalar_select %p42, 0, %s41
      %s44 = sadd.s32 1, %s26
      %s45 = scalar_select %p42, %s44, %s26
      %p46 = scmp.ge.s32.totalorder %s45, 4
      %s47 = scalar_select %p46, 0, %s45
      %s48 = sadd.s32 1, %s25
      %s49 = scalar_select %p46, %s48, %s25
      %p50 = scmp.ge.s32.totalorder %s49, 2
      %s51 = scalar_select %p50, 0, %s49
      %s52 = ssub.s32 %s25, %s51
      %s53 = ssub.s32 %s26, %s47
      %s54 = sor.u32 %s52, %s53
      %s55 = ssub.s32 %s27, %s43
      %s56 = sor.u32 %s54, %s55
      %p57 = scmp.eq.s32.totalorder %s56, 0
      %s59 = sadd.s32 %s58, 1
      %s60 = scalar_select %p57, %s58, %s59
      %p63 = pneg %p57
      %p64 = scmp.eq.s32.totalorder %s18, 7
      %p65 = por %p63, %p64
      %p66 = scmp.ne.s32.totalorder %s58, %s61
      %p67 = scmp.eq.s32.totalorder %s18, 0
      %p68 = por %p66, %p67
      %p69 = scmp.ne.s32.totalorder %s58, %s61
      %p70 = scmp.eq.s32.totalorder %s23, 7
      %p71 = por %p69, %p70
      %p72 = scmp.ne.s32.totalorder %s61, %s62
      %p73 = scmp.eq.s32.totalorder %s23, 0
      %p74 = por %p72, %p73
      %p75 = scmp.ne.s32.totalorder %s61, %s62
      %p76 = scmp.eq.s32.totalorder %s24, 7
      %p77 = por %p75, %p76
      %p79 = scmp.ne.s32.totalorder %s62, %s78
      %p80 = scmp.eq.s32.totalorder %s24, 0
      %p81 = por %p79, %p80
      %s82 = ssub.s32 %s25, %s51
      %s83 = ssub.s32 %s26, %s47
      %s84 = sor.u32 %s82, %s83
      %s85 = ssub.s32 %s28, %s39
      %s86 = sor.u32 %s84, %s85
      %p87 = scmp.eq.s32.totalorder %s86, 0
      %s89 = sadd.s32 %s88, 1
      %s90 = scalar_select %p87, %s88, %s89
      %p93 = pneg %p87
      %p94 = scmp.eq.s32.totalorder %s18, 7
      %p95 = por %p93, %p94
      %p96 = scmp.ne.s32.totalorder %s88, %s91
      %p97 = scmp.eq.s32.totalorder %s18, 0
      %p98 = por %p96, %p97
      %p99 = scmp.ne.s32.totalorder %s88, %s91
      %p100 = scmp.eq.s32.totalorder %s23, 7
      %p101 = por %p99, %p100
      %p102 = scmp.ne.s32.totalorder %s91, %s92
      %p103 = scmp.eq.s32.totalorder %s23, 0
      %p104 = por %p102, %p103
      %p105 = scmp.ne.s32.totalorder %s91, %s92
      %p106 = scmp.eq.s32.totalorder %s24, 7
      %p107 = por %p105, %p106
      %p109 = scmp.ne.s32.totalorder %s92, %s108
      %p110 = scmp.eq.s32.totalorder %s24, 0
      %p111 = por %p109, %p110
      %s112 = ssub.s32 %s25, %s51
      %s113 = ssub.s32 %s26, %s47
      %s114 = sor.u32 %s112, %s113
      %s115 = ssub.s32 %s28, %s39
      %s116 = sor.u32 %s114, %s115
      %p117 = scmp.eq.s32.totalorder %s116, 0
      %s119 = sadd.s32 %s118, 1
      %s120 = scalar_select %p117, %s118, %s119
      %p123 = pneg %p117
      %p124 = scmp.eq.s32.totalorder %s18, 7
      %p125 = por %p123, %p124
      %p126 = scmp.ne.s32.totalorder %s118, %s121
      %p127 = scmp.eq.s32.totalorder %s18, 0
      %p128 = por %p126, %p127
      %p129 = scmp.ne.s32.totalorder %s118, %s121
      %p130 = scmp.eq.s32.totalorder %s23, 7
      %p131 = por %p129, %p130
      %p132 = scmp.ne.s32.totalorder %s121, %s122
      %p133 = scmp.eq.s32.totalorder %s23, 0
      %p134 = por %p132, %p133
      %p135 = scmp.ne.s32.totalorder %s121, %s122
      %p136 = scmp.eq.s32.totalorder %s24, 7
      %p137 = por %p135, %p136
      %p139 = scmp.ne.s32.totalorder %s122, %s138
      %p140 = scmp.eq.s32.totalorder %s24, 0
      %p141 = por %p139, %p140
      %s142 = ssub.s32 %s25, %s51
      %s143 = ssub.s32 %s26, %s47
      %s144 = sor.u32 %s142, %s143
      %s145 = ssub.s32 %s27, %s43
      %s146 = sor.u32 %s144, %s145
      %p147 = scmp.eq.s32.totalorder %s146, 0
      %s149 = sadd.s32 %s148, 1
      %s150 = scalar_select %p147, %s148, %s149
      %p153 = pneg %p147
      %p154 = scmp.eq.s32.totalorder %s18, 7
      %p155 = por %p153, %p154
      %p156 = scmp.ne.s32.totalorder %s148, %s151
      %p157 = scmp.eq.s32.totalorder %s18, 0
      %p158 = por %p156, %p157
      %p159 = scmp.ne.s32.totalorder %s148, %s151
      %p160 = scmp.eq.s32.totalorder %s23, 7
      %p161 = por %p159, %p160
      %p162 = scmp.ne.s32.totalorder %s151, %s152
      %p163 = scmp.eq.s32.totalorder %s23, 0
      %p164 = por %p162, %p163
      %p165 = scmp.ne.s32.totalorder %s151, %s152
      %p166 = scmp.eq.s32.totalorder %s24, 7
      %p167 = por %p165, %p166
      %p169 = scmp.ne.s32.totalorder %s152, %s168
      %p170 = scmp.eq.s32.totalorder %s24, 0
      %p171 = por %p169, %p170
      %p172 = scmp.le.s32.totalorder 1, %s18
      %p173 = scmp.lt.s32.totalorder %s18, 9
      %p174 = pnand %p172, %p173
      %p175 = pneg %p174
      // Predicated region
      $region9: #{siglip_encoder_layer.4} parent=5 // pred_check
        _
      $region10: #{siglip_encoder_layer.4} parent=5 // pred_check_branch
        %177 = sbr.rel (%p174) target = $region12
      $region11: #{siglip_encoder_layer.4} parent=5 // pred_region
        %s178 = ssub.s32 %s18, 1
      $region12: #{siglip_encoder_layer.4} parent=5 // pred_fallthru
        _
      %p179 = scmp.lt.s32.totalorder %s18, 8
      // Predicated region
      $region13: #{siglip_encoder_layer.4} parent=5 // pred_check
        %p180 = pneg %p179
      $region14: #{siglip_encoder_layer.4} parent=5 // pred_check_branch
        %182 = sbr.rel (%p180) target = $region16
      $region15: #{siglip_encoder_layer.4} parent=5 // pred_region
        // Predicated region
        $region17: #{siglip_encoder_layer.4} parent=15 // pred_check
          %p183 = pneg %p68
        $region18: #{siglip_encoder_layer.4} parent=15 // pred_check_branch
          %185 = sbr.rel (%p183) target = $region20
        $region19: #{siglip_encoder_layer.4} parent=15 // pred_region
          %s186 = sand.u32 %s58, 1
          %s187 = scalar_lea.sflag [#allocation6], %s186
          %s188 = sand.u32 %s58, 1
          %s189 = smul.addr %s188, 8
          %s190 = scalar_lea.vmem [#allocation5], %s189
          %s192 = ssub.s32 128, 128
          %193 = vsyncadd %s187, %s192
          %s194 = sadd.s32 %s27, %s26
          %s195 = smul.addr %s25, 4
          %s196 = sadd.s32 %s194, %s195
          %s197 = smul.addr %s196, 128
          %s198 = scalar_lea.hbm %s0, %s197
          %s200 = sshll.u32 %s190, 4
          %s201 = int_to_ptr.vmem [resolvable:$true] %s200
          %203 = dma.hbm_to_vmem [thread:$0]  %s198, 128, %s201, %s187
        $region20: #{siglip_encoder_layer.4} parent=15 // pred_fallthru
          _
        // Predicated region
        $region21: #{siglip_encoder_layer.4} parent=15 // pred_check
          %p204 = pneg %p98
        $region22: #{siglip_encoder_layer.4} parent=15 // pred_check_branch
          %206 = sbr.rel (%p204) target = $region24
        $region23: #{siglip_encoder_layer.4} parent=15 // pred_region
          %s207 = sand.u32 %s18, 1
          %s208 = scalar_lea.sflag [#allocation9], %s207
          %s209 = sand.u32 %s88, 1
          %s210 = smul.addr %s209, 8
          %s211 = scalar_lea.vmem [#allocation8], %s210
          %s213 = ssub.s32 128, 128
          %214 = vsyncadd %s208, %s213
          %s215 = sadd.s32 %s28, %s26
          %s216 = smul.addr %s25, 4
          %s217 = sadd.s32 %s215, %s216
          %s218 = smul.addr %s217, 128
          %s219 = scalar_lea.hbm %s1, %s218
          %s221 = sshll.u32 %s211, 4
          %s222 = int_to_ptr.vmem [resolvable:$true] %s221
          %224 = dma.hbm_to_vmem [thread:$0]  %s219, 128, %s222, %s208
        $region24: #{siglip_encoder_layer.4} parent=15 // pred_fallthru
          _
        // Predicated region
        $region25: #{siglip_encoder_layer.4} parent=15 // pred_check
          %p225 = pneg %p128
        $region26: #{siglip_encoder_layer.4} parent=15 // pred_check_branch
          %227 = sbr.rel (%p225) target = $region28
        $region27: #{siglip_encoder_layer.4} parent=15 // pred_region
          %s228 = sand.u32 %s18, 1
          %s229 = scalar_lea.sflag [#allocation9], %s228
          %s230 = sand.u32 %s118, 1
          %s231 = smul.addr %s230, 8
          %s232 = scalar_lea.vmem [#allocation10], %s231
          %s234 = ssub.s32 128, 128
          %235 = vsyncadd %s229, %s234
          %s236 = sadd.s32 %s28, %s26
          %s237 = smul.addr %s25, 4
          %s238 = sadd.s32 %s236, %s237
          %s239 = smul.addr %s238, 128
          %s240 = scalar_lea.hbm %s2, %s239
          %s242 = sshll.u32 %s232, 4
          %s243 = int_to_ptr.vmem [resolvable:$true] %s242
          %245 = dma.hbm_to_vmem [thread:$0]  %s240, 128, %s243, %s229
        $region28: #{siglip_encoder_layer.4} parent=15 // pred_fallthru
          _
      $region16: #{siglip_encoder_layer.4} parent=5 // pred_fallthru
        _
      %p246 = scmp.le.s32.totalorder 1, %s18
      %p247 = scmp.lt.s32.totalorder %s18, 9
      %p248 = pnand %p246, %p247
      %p249 = pneg %p248
      // Predicated region
      $region29: #{siglip_encoder_layer.4} parent=5 // pred_check
        _
      $region30: #{siglip_encoder_layer.4} parent=5 // pred_check_branch
        %251 = sbr.rel (%p248) target = $region32
      $region31: #{siglip_encoder_layer.4} parent=5 // pred_region
        %s252 = ssub.s32 %s18, 1
        %s253 = sand.u32 %s61, 1
        %s254 = scalar_lea.sflag [#allocation6], %s253
        %s255 = sand.u32 %s61, 1
        %s256 = smul.addr %s255, 8
        %s257 = scalar_lea.vmem [#allocation5], %s256
        // Predicated region
        $region33: #{siglip_encoder_layer.4} parent=31 // pred_check
          %p258 = pneg %p74
        $region34: #{siglip_encoder_layer.4} parent=31 // pred_check_branch
          %260 = sbr.rel (%p258) target = $region36
        $region35: #{siglip_encoder_layer.4} parent=31 // pred_region
          %261 = dma.done %s254, 128
        $region36: #{siglip_encoder_layer.4} parent=31 // pred_fallthru
          _
        %s262 = sand.u32 %s23, 1
        %s263 = scalar_lea.sflag [#allocation9], %s262
        %s264 = sand.u32 %s91, 1
        %s265 = smul.addr %s264, 8
        %s266 = scalar_lea.vmem [#allocation8], %s265
        // Predicated region
        $region37: #{siglip_encoder_layer.4} parent=31 // pred_check
          %p267 = pneg %p104
        $region38: #{siglip_encoder_layer.4} parent=31 // pred_check_branch
          %269 = sbr.rel (%p267) target = $region40
        $region39: #{siglip_encoder_layer.4} parent=31 // pred_region
          %270 = dma.done %s263, 128
        $region40: #{siglip_encoder_layer.4} parent=31 // pred_fallthru
          _
        %s271 = sand.u32 %s23, 1
        %s272 = scalar_lea.sflag [#allocation9], %s271
        %s273 = sand.u32 %s121, 1
        %s274 = smul.addr %s273, 8
        %s275 = scalar_lea.vmem [#allocation10], %s274
        // Predicated region
        $region41: #{siglip_encoder_layer.4} parent=31 // pred_check
          %p276 = pneg %p134
        $region42: #{siglip_encoder_layer.4} parent=31 // pred_check_branch
          %278 = sbr.rel (%p276) target = $region44
        $region43: #{siglip_encoder_layer.4} parent=31 // pred_region
          %279 = dma.done %s272, 128
        $region44: #{siglip_encoder_layer.4} parent=31 // pred_fallthru
          _
        %s280 = sand.u32 %s61, 1
        %s281 = scalar_lea.sflag [#allocation6], %s280
        %s282 = sand.u32 %s61, 1
        %s283 = smul.addr %s282, 8
        %s284 = scalar_lea.vmem [#allocation5], %s283
        %p285 = pneg %p74
        %p286 = pneg %p71
        %s287 = sand.u32 %s23, 1
        %s288 = scalar_lea.sflag [#allocation9], %s287
        %s289 = sand.u32 %s91, 1
        %s290 = smul.addr %s289, 8
        %s291 = scalar_lea.vmem [#allocation8], %s290
        %p292 = pneg %p104
        %p293 = pneg %p101
        %s294 = sand.u32 %s23, 1
        %s295 = scalar_lea.sflag [#allocation9], %s294
        %s296 = sand.u32 %s121, 1
        %s297 = smul.addr %s296, 8
        %s298 = scalar_lea.vmem [#allocation10], %s297
        %p299 = pneg %p134
        %p300 = pneg %p131
        %p301 = pneg %p164
        %p302 = pneg %p161
        %s303 = sand.u32 %s151, 1
        %s304 = scalar_lea.sflag [#allocation7], %s303
        %s305 = sand.u32 %s151, 1
        %s306 = smul.addr %s305, 8
        %s307 = scalar_lea.vmem [#allocation11], %s306
        %p308 = scmp.eq.s32.totalorder %s32, 0
        // Predicated region
        $region45: #{siglip_encoder_layer.4} parent=31 // pred_check
          %p309 = pneg %p308
        $region46: #{siglip_encoder_layer.4} parent=31 // pred_check_branch
          %311 = sbr.rel (%p309) target = $region48
        $region47: #{siglip_encoder_layer.4} parent=31 // pred_region
          %vm312 = vcmask 7168
          %313 = vst.msk [vmem:[#allocation2] sm:$0xff] %vm312, -inf
          %314 = vst.msk [vmem:[#allocation3] sm:$0xff] %vm312, 0.0
          %vm315 = vcmask 64512
          %316 = vst.msk [vmem:[#allocation4] sm:$0xff] %vm315, 0.0
        $region48: #{siglip_encoder_layer.4} parent=31 // pred_fallthru
          _
        %v317 = vld [vmem:[%s257] sm:$0xff]
        %v318 = vld [vmem:[%s266] sm:$0xff]
        %v319 = vld [vmem:[%s275] sm:$0xff]
        %vm320 = vcmask 64512
        %v322 = vsel %vm320, %v317, 0
        %v325 = vsel %vm320, %v318, 0
        %327 = vmatprep.subr.mxu0 0.0
        %328 = vmatpush1.xpose.msra.mxu0 %v325
        %329 = vmatprep.subr.mxu0 0.0
        %330 = vmatpush1.xpose.msra.mxu0 0.0
        %331 = vmatprep.subr.mxu0 0.0
        %332 = vmatpush1.xpose.msra.mxu0 0.0
        %333 = vmatprep.subr.mxu0 0.0
        %334 = vmatpush1.xpose.msra.mxu0 0.0
        %335 = vmatprep.subr.mxu0 0.0
        %336 = vmatpush1.xpose.msra.mxu0 0.0
        %337 = vmatprep.subr.mxu0 0.0
        %338 = vmatpush1.xpose.msra.mxu0 0.0
        %339 = vmatprep.subr.mxu0 0.0
        %340 = vmatpush1.xpose.msra.mxu0 0.0
        %341 = vmatprep.subr.mxu0 0.0
        %342 = vmatpush1.xpose.msra.mxu0 0.0
        %343 = vmatprep.subr.mxu0 0.0
        %344 = vmatpush1.xpose.msra.mxu0 0.0
        %345 = vmatprep.subr.mxu0 0.0
        %346 = vmatpush1.xpose.msra.mxu0 0.0
        %347 = vmatprep.subr.mxu0 0.0
        %348 = vmatpush1.xpose.msra.mxu0 0.0
        %349 = vmatprep.subr.mxu0 0.0
        %350 = vmatpush1.xpose.msra.mxu0 0.0
        %351 = vmatprep.subr.mxu0 0.0
        %352 = vmatpush1.xpose.msra.mxu0 0.0
        %353 = vmatprep.subr.mxu0 0.0
        %354 = vmatpush1.xpose.msra.mxu0 0.0
        %355 = vmatprep.subr.mxu0 0.0
        %356 = vmatpush1.xpose.msra.mxu0 0.0
        %357 = vmatprep.subr.mxu0 0.0
        %358 = vmatpush1.xpose.msra.mxu0 0.0
        %359 = vmatprep.subr.mxu0 0.0
        %360 = vmatpush1.xpose.msra.mxu0 0.0
        %361 = vmatprep.subr.mxu0 0.0
        %362 = vmatpush1.xpose.msra.mxu0 0.0
        %363 = vmatprep.subr.mxu0 0.0
        %364 = vmatpush1.xpose.msra.mxu0 0.0
        %365 = vmatprep.subr.mxu0 0.0
        %366 = vmatpush1.xpose.msra.mxu0 0.0
        %367 = vmatprep.subr.mxu0 0.0
        %368 = vmatpush1.xpose.msra.mxu0 0.0
        %369 = vmatprep.subr.mxu0 0.0
        %370 = vmatpush1.xpose.msra.mxu0 0.0
        %371 = vmatprep.subr.mxu0 0.0
        %372 = vmatpush1.xpose.msra.mxu0 0.0
        %373 = vmatprep.subr.mxu0 0.0
        %374 = vmatpush1.xpose.msra.mxu0 0.0
        %375 = vmatprep.subr.mxu0 0.0
        %376 = vmatpush1.xpose.msra.mxu0 0.0
        %377 = vmatprep.subr.mxu0 0.0
        %378 = vmatpush1.xpose.msra.mxu0 0.0
        %379 = vmatprep.subr.mxu0 0.0
        %380 = vmatpush1.xpose.msra.mxu0 0.0
        %381 = vmatprep.subr.mxu0 0.0
        %382 = vmatpush1.xpose.msra.mxu0 0.0
        %383 = vmatprep.subr.mxu0 0.0
        %384 = vmatpush1.xpose.msra.mxu0 0.0
        %385 = vmatprep.subr.mxu0 0.0
        %386 = vmatpush1.xpose.msra.mxu0 0.0
        %387 = vmatprep.subr.mxu0 0.0
        %388 = vmatpush1.xpose.msra.mxu0 0.0
        %389 = vmatprep.subr.mxu0 0.0
        %390 = vmatpush1.xpose.msra.mxu0 0.0
        %391 = vmatprep.mubr.f32.mxu0 0.0
        %392 = vmatmul.mubr.f32.gmra.mrb[0].mxu0 %v322
        %v393 = vpop.f32.mrb[0].mxu0
        %v394 = vadd.f32 0.0, %v393
        %v395 = vpop.f32.mrb[0].mxu0
        %396 = vdwg.mxu0
        %v397 = vmul.f32 %v394, 0.35355338
        %v398 = vld [vmem:[#allocation2] sm:$0xff]
        %v399 = vsel %vm320, %v397, -inf
        %400 = vmax.xlane.f32.xlu0 %v399
        %v401 = vpop.xlane.xlu0 %400
        %v402 = vmax.f32 %v398, %v401
        %v403 = vsub.f32 %v398, %v402
        %v404 = vmul.f32 %v403, 1.442695
        %v405 = vpow.pop %v404
        %407 = vset.pattern.permute.xlu0 0
        %408 = vperm.xlu0 %407, %v402
        %v409 = vpop.permute.xlu0 %408
        %v411 = vsub.f32 %v397, %v409
        %v412 = vmul.f32 %v411, 1.442695
        %v413 = vpow.pop %v412
        %v414 = vld [vmem:[#allocation3] sm:$0xff]
        %v415 = vmul.f32 %v405, %v414
        %v416 = vsel %vm320, %v413, 0.0
        %417 = vadd.xlane.f32.xlu0 %v416
        %v418 = vpop.xlane.xlu0 %417
        %v419 = vadd.f32 %v415, %v418
        %vm420 = vcmask 7168
        %421 = vst.msk [vmem:[#allocation3] sm:$0xff] %vm420, %v419
        %v422 = vld [vmem:[#allocation4] sm:$0xff]
        %424 = vset.pattern.permute.xlu0 0
        %425 = vperm.xlu0 %424, %v405
        %v426 = vpop.permute.xlu0 %425
        %v428 = vmul.f32 %v426, %v422
        %v430 = vsel %vm320, %v413, 0
        %432 = vmatprep.subr.mxu0 0.0
        %433 = vmatpush1.msra.mxu0 %v319
        %434 = vmatprep.subr.mxu0 0.0
        %435 = vmatpush1.msra.mxu0 0.0
        %436 = vmatprep.subr.mxu0 0.0
        %437 = vmatpush1.msra.mxu0 0.0
        %438 = vmatprep.subr.mxu0 0.0
        %439 = vmatpush1.msra.mxu0 0.0
        %440 = vmatprep.subr.mxu0 0.0
        %441 = vmatpush1.msra.mxu0 0.0
        %442 = vmatprep.subr.mxu0 0.0
        %443 = vmatpush1.msra.mxu0 0.0
        %444 = vmatprep.subr.mxu0 0.0
        %445 = vmatpush1.msra.mxu0 0.0
        %446 = vmatprep.subr.mxu0 0.0
        %447 = vmatpush1.msra.mxu0 0.0
        %448 = vmatprep.subr.mxu0 0.0
        %449 = vmatpush1.msra.mxu0 0.0
        %450 = vmatprep.subr.mxu0 0.0
        %451 = vmatpush1.msra.mxu0 0.0
        %452 = vmatprep.subr.mxu0 0.0
        %453 = vmatpush1.msra.mxu0 0.0
        %454 = vmatprep.subr.mxu0 0.0
        %455 = vmatpush1.msra.mxu0 0.0
        %456 = vmatprep.subr.mxu0 0.0
        %457 = vmatpush1.msra.mxu0 0.0
        %458 = vmatprep.subr.mxu0 0.0
        %459 = vmatpush1.msra.mxu0 0.0
        %460 = vmatprep.subr.mxu0 0.0
        %461 = vmatpush1.msra.mxu0 0.0
        %462 = vmatprep.subr.mxu0 0.0
        %463 = vmatpush1.msra.mxu0 0.0
        %464 = vmatprep.subr.mxu0 0.0
        %465 = vmatpush1.msra.mxu0 0.0
        %466 = vmatprep.subr.mxu0 0.0
        %467 = vmatpush1.msra.mxu0 0.0
        %468 = vmatprep.subr.mxu0 0.0
        %469 = vmatpush1.msra.mxu0 0.0
        %470 = vmatprep.subr.mxu0 0.0
        %471 = vmatpush1.msra.mxu0 0.0
        %472 = vmatprep.subr.mxu0 0.0
        %473 = vmatpush1.msra.mxu0 0.0
        %474 = vmatprep.subr.mxu0 0.0
        %475 = vmatpush1.msra.mxu0 0.0
        %476 = vmatprep.subr.mxu0 0.0
        %477 = vmatpush1.msra.mxu0 0.0
        %478 = vmatprep.subr.mxu0 0.0
        %479 = vmatpush1.msra.mxu0 0.0
        %480 = vmatprep.subr.mxu0 0.0
        %481 = vmatpush1.msra.mxu0 0.0
        %482 = vmatprep.subr.mxu0 0.0
        %483 = vmatpush1.msra.mxu0 0.0
        %484 = vmatprep.subr.mxu0 0.0
        %485 = vmatpush1.msra.mxu0 0.0
        %486 = vmatprep.subr.mxu0 0.0
        %487 = vmatpush1.msra.mxu0 0.0
        %488 = vmatprep.subr.mxu0 0.0
        %489 = vmatpush1.msra.mxu0 0.0
        %490 = vmatprep.subr.mxu0 0.0
        %491 = vmatpush1.msra.mxu0 0.0
        %492 = vmatprep.subr.mxu0 0.0
        %493 = vmatpush1.msra.mxu0 0.0
        %494 = vmatprep.subr.mxu0 0.0
        %495 = vmatpush1.msra.mxu0 0.0
        %496 = vmatprep.mubr.f32.mxu0 0.0
        %497 = vmatmul.mubr.f32.gmra.mrb[0].mxu0 %v430
        %v498 = vpop.f32.mrb[0].mxu0
        %v499 = vadd.f32 0.0, %v498
        %v500 = vpop.f32.mrb[0].mxu0
        %501 = vdwg.mxu0
        %v502 = vadd.f32 %v428, %v499
        %503 = vst.msk [vmem:[#allocation4] sm:$0xff] %vm320, %v502
        %504 = vst.msk [vmem:[#allocation2] sm:$0xff] %vm420, %v402
        // Predicated region
        $region49: #{siglip_encoder_layer.4} parent=31 // pred_check
          %p505 = pneg %p308
        $region50: #{siglip_encoder_layer.4} parent=31 // pred_check_branch
          %507 = sbr.rel (%p505) target = $region52
        $region51: #{siglip_encoder_layer.4} parent=31 // pred_region
          %v508 = vld [vmem:[#allocation4] sm:$0xff]
          %v509 = vld [vmem:[#allocation3] sm:$0xff]
          %v510 = vrcp.pop %v509
          %512 = vset.pattern.permute.xlu0 0
          %513 = vperm.xlu0 %512, %v510
          %v514 = vpop.permute.xlu0 %513
          %v516 = vmul.f32 %v508, %v514
          %517 = vst.msk [vmem:[%s307] sm:$0xff] %vm320, %v516
        $region52: #{siglip_encoder_layer.4} parent=31 // pred_fallthru
          _
        %s518 = sand.u32 %s151, 1
        %s519 = scalar_lea.sflag [#allocation7], %s518
        %s520 = sand.u32 %s151, 1
        %s521 = smul.addr %s520, 8
        %s522 = scalar_lea.vmem [#allocation11], %s521
        // Predicated region
        $region53: #{siglip_encoder_layer.4} parent=31 // pred_check
          %p523 = pneg %p161
        $region54: #{siglip_encoder_layer.4} parent=31 // pred_check_branch
          %525 = sbr.rel (%p523) target = $region56
        $region55: #{siglip_encoder_layer.4} parent=31 // pred_region
          %s527 = ssub.s32 128, 128
          %528 = vsyncadd %s519, %s527
          %s529 = sadd.s32 %s31, %s30
          %s530 = smul.addr %s29, 4
          %s531 = sadd.s32 %s529, %s530
          %s532 = smul.addr %s531, 128
          %s533 = scalar_lea.hbm %s3, %s532
          %s535 = sshll.u32 %s522, 4
          %s536 = int_to_ptr.vmem [resolvable:$true] %s535
          %538 = dma.vmem_to_hbm [thread:$0]  %s536, 128, %s533, %s519
        $region56: #{siglip_encoder_layer.4} parent=31 // pred_fallthru
          _
      $region32: #{siglip_encoder_layer.4} parent=5 // pred_fallthru
        _
      %p539 = scmp.le.s32.totalorder 2, %s18
      // Predicated region
      $region57: #{siglip_encoder_layer.4} parent=5 // pred_check
        %p540 = pneg %p539
      $region58: #{siglip_encoder_layer.4} parent=5 // pred_check_branch
        %542 = sbr.rel (%p540) target = $region60
      $region59: #{siglip_encoder_layer.4} parent=5 // pred_region
        %s543 = ssub.s32 %s18, 2
        // Predicated region
        $region61: #{siglip_encoder_layer.4} parent=59 // pred_check
          %p544 = pneg %p167
        $region62: #{siglip_encoder_layer.4} parent=59 // pred_check_branch
          %546 = sbr.rel (%p544) target = $region64
        $region63: #{siglip_encoder_layer.4} parent=59 // pred_region
          %s547 = sand.u32 %s152, 1
          %s548 = scalar_lea.sflag [#allocation7], %s547
          %s549 = sand.u32 %s152, 1
          %s550 = smul.addr %s549, 8
          %s551 = scalar_lea.vmem [#allocation11], %s550
          %552 = dma.done %s548, 128
        $region64: #{siglip_encoder_layer.4} parent=59 // pred_fallthru
          _
      $region60: #{siglip_encoder_layer.4} parent=5 // pred_fallthru
        _
    $region6: #{siglip_encoder_layer.4} parent=1 // loop_footer
      %s22 = sadd.s32 1, %s18
    $region7: #{siglip_encoder_layer.4} parent=1 // loop_footer_branch
      %17 = sbr.rel target = $region3
    $region8: #{siglip_encoder_layer.4} parent=1 // loop_exit
      _
    %553 = vsyncpa [#allocation6], 1
    %s554 = scalar_lea.sflag [#allocation6], 1
    %555 = vsyncpa %s554, 1
    %556 = vsyncpa [#allocation9], 1
    %s557 = scalar_lea.sflag [#allocation9], 1
    %558 = vsyncpa %s557, 1
    %559 = vsyncpa [#allocation7], 1
    %s560 = scalar_lea.sflag [#allocation7], 1
    %561 = vsyncpa %s560, 1

// kernel: siglip_encoder_layer.5
$region0: #{siglip_encoder_layer.5}
  #allocation0 [shape = 'u32[]', space=smem, size = 0x4, offset = 0x4, fixed_abs, tag = 'smem constant byte address 0x4 - core index']
  #allocation1 [shape = 'u32[144,128]{1,0:T(1,128)}', space=vmem, size = 0x12000, scoped, tag = 'internal scratch']
  #allocation2 [shape = 'f32[8,32]{1,0:T(8,128)}', space=vmem, size = 0x1000, scoped, tag = 'scratch operand']
  #allocation3 [shape = 'f32[8,32]{1,0:T(8,128)}', space=vmem, size = 0x1000, scoped, tag = 'scratch operand']
  #allocation4 [shape = 'f32[8,32]{1,0:T(8,128)}', space=vmem, size = 0x1000, scoped, tag = 'scratch operand']
  %s0 = inlined_call_operand.hbm [shape: f32[2,4,8,8], index: 0, kind: input, shape index: {}]
  %s1 = inlined_call_operand.hbm [shape: f32[2,8,32], index: 1, kind: input, shape index: {}]
  %s2 = inlined_call_operand.hbm [shape: f32[32,32], index: 2, kind: input, shape index: {}]
  %s3 = inlined_call_operand.hbm [shape: f32[1,32], index: 3, kind: input, shape index: {}]
  %s4 = inlined_call_operand.hbm [shape: f32[1,32], index: 4, kind: input, shape index: {}]
  %s5 = inlined_call_operand.hbm [shape: f32[1,32], index: 5, kind: input, shape index: {}]
  %s6 = inlined_call_operand.hbm [shape: f32[32,64], index: 6, kind: input, shape index: {}]
  %s7 = inlined_call_operand.hbm [shape: f32[1,64], index: 7, kind: input, shape index: {}]
  %s8 = inlined_call_operand.hbm [shape: f32[64,32], index: 8, kind: input, shape index: {}]
  %s9 = inlined_call_operand.hbm [shape: f32[1,32], index: 9, kind: input, shape index: {}]
  %s10 = inlined_call_operand.hbm [shape: f32[2,8,32], index: 10, kind: output, shape index: {}]
  %s11 = sld [smem:[#allocation0]]
  $region121: #{siglip_encoder_layer.5} parent=0
    _
  %s13 = ssub.s32 1, %s11
  %s14 = scalar_select 0, %s13, %s11
  $region1: #{siglip_encoder_layer.5} parent=0
    #allocation5 [shape = 'u8[32768]{0}', space=vmem, size = 0x8000, scoped, tag = 'input window, operand 0']
    #allocation6 [shape = 's32[2]{0}', space=sflag, size = 0x8, scoped, tag = 'scoped memory for siglip_encoder_layer.5']
    #allocation7 [shape = 's32[2]{0}', space=sflag, size = 0x8, scoped, tag = 'scoped memory for siglip_encoder_layer.5']
    #allocation8 [shape = 'u8[8192]{0}', space=vmem, size = 0x2000, scoped, tag = 'input window, operand 1']
    #allocation9 [shape = 's32[2]{0}', space=sflag, size = 0x8, scoped, tag = 'scoped memory for siglip_encoder_layer.5']
    #allocation10 [shape = 'u8[16384]{0}', space=vmem, size = 0x4000, scoped, tag = 'input window, operand 2, single buffered']
    #allocation11 [shape = 'u8[512]{0}', space=vmem, size = 0x400, scoped, tag = 'input window, operand 3, single buffered']
    #allocation12 [shape = 's32[1]{0}', space=sflag, size = 0x4, scoped, tag = 'scoped memory for siglip_encoder_layer.5']
    #allocation13 [shape = 'u8[512]{0}', space=vmem, size = 0x400, scoped, tag = 'input window, operand 4, single buffered']
    #allocation14 [shape = 'u8[512]{0}', space=vmem, size = 0x400, scoped, tag = 'input window, operand 5, single buffered']
    #allocation15 [shape = 's32[1]{0}', space=sflag, size = 0x4, scoped, tag = 'scoped memory for siglip_encoder_layer.5']
    #allocation16 [shape = 'u8[16384]{0}', space=vmem, size = 0x4000, scoped, tag = 'input window, operand 6, single buffered']
    #allocation17 [shape = 'u8[512]{0}', space=vmem, size = 0x400, scoped, tag = 'input window, operand 7, single buffered']
    #allocation18 [shape = 's32[1]{0}', space=sflag, size = 0x4, scoped, tag = 'scoped memory for siglip_encoder_layer.5']
    #allocation19 [shape = 'u8[32768]{0}', space=vmem, size = 0x8000, scoped, tag = 'input window, operand 8, single buffered']
    #allocation20 [shape = 'u8[512]{0}', space=vmem, size = 0x400, scoped, tag = 'input window, operand 9, single buffered']
    #allocation21 [shape = 's32[1]{0}', space=sflag, size = 0x4, scoped, tag = 'scoped memory for siglip_encoder_layer.5']
    #allocation22 [shape = 'u8[8192]{0}', space=vmem, size = 0x2000, scoped, tag = 'output window, operand 0']
    %15 = vsyncpa [#allocation6], 0
    %s16 = scalar_lea.sflag [#allocation6], 1
    %17 = vsyncpa %s16, 0
    %18 = vsyncpa [#allocation9], 0
    %s19 = scalar_lea.sflag [#allocation9], 1
    %20 = vsyncpa %s19, 0
    %21 = vsyncpa [#allocation12], 0
    %22 = vsyncpa [#allocation15], 0
    %23 = vsyncpa [#allocation18], 0
    %24 = vsyncpa [#allocation21], 0
    %25 = vsyncpa [#allocation7], 0
    %s26 = scalar_lea.sflag [#allocation7], 1
    %27 = vsyncpa %s26, 0
    loop: start=0, step=1, limit=4
    $region2: #{siglip_encoder_layer.5} parent=1 // loop_pre_header
      _
    $region3: #{siglip_encoder_layer.5} parent=1 // loop_header
      %s29 = sphi 0, %s33
      %p30 = scmp.ge.s32.totalorder %s29, 4
      %s36 = sphi 0, %s55
      %s37 = sphi 0, %s51
      %s38 = sphi 0, %s47
      %s39 = sphi 0, %s36
      %s40 = sphi 0, %s37
      %s41 = sphi 0, %s38
      %s42 = sphi 0, %s39
      %s43 = sphi 0, %s40
      %s44 = sphi 0, %s41
      %s60 = sphi 0, %s62
      %s63 = sphi 0, %s60
      %s64 = sphi 0, %s63
      %s80 = sphi 0, %s64
      %s88 = sphi 0, %s90
      %s91 = sphi 0, %s88
      %s92 = sphi 0, %s91
      %s108 = sphi 0, %s92
      %s112 = sphi 0, %s112
      %s114 = sphi 0, %s112
      %s115 = sphi 0, %s114
      %s129 = sphi 0, %s115
      %s133 = sphi 0, %s133
      %s135 = sphi 0, %s133
      %s136 = sphi 0, %s135
      %s150 = sphi 0, %s136
      %s154 = sphi 0, %s154
      %s156 = sphi 0, %s154
      %s157 = sphi 0, %s156
      %s171 = sphi 0, %s157
      %s175 = sphi 0, %s175
      %s177 = sphi 0, %s175
      %s178 = sphi 0, %s177
      %s192 = sphi 0, %s178
      %s198 = sphi 0, %s200
      %s201 = sphi 0, %s198
      %s202 = sphi 0, %s201
      %s218 = sphi 0, %s202
      %s224 = sphi 0, %s226
      %s227 = sphi 0, %s224
      %s228 = sphi 0, %s227
      %s244 = sphi 0, %s228
      %s250 = sphi 0, %s252
      %s253 = sphi 0, %s250
      %s254 = sphi 0, %s253
      %s270 = sphi 0, %s254
      %s274 = sphi 0, %s274
      %s276 = sphi 0, %s274
      %s277 = sphi 0, %s276
      %s291 = sphi 0, %s277
      %s299 = sphi 0, %s301
      %s302 = sphi 0, %s299
      %s303 = sphi 0, %s302
      %s319 = sphi 0, %s303
    $region4: #{siglip_encoder_layer.5} parent=1 // loop_header_branch
      %32 = sbr.rel (%p30) target = $region8
    $region5: #{siglip_encoder_layer.5} parent=1 // loop_body
      %s34 = ssub.s32 %s29, 1
      %s35 = ssub.s32 %s29, 2
      %s45 = sadd.s32 1, %s38
      %p46 = scmp.ge.s32.totalorder %s45, 1
      %s47 = scalar_select %p46, 0, %s45
      %s48 = sadd.s32 1, %s37
      %s49 = scalar_select %p46, %s48, %s37
      %p50 = scmp.ge.s32.totalorder %s49, 1
      %s51 = scalar_select %p50, 0, %s49
      %s52 = sadd.s32 1, %s36
      %s53 = scalar_select %p50, %s52, %s36
      %p54 = scmp.ge.s32.totalorder %s53, 2
      %s55 = scalar_select %p54, 0, %s53
      %s56 = ssub.s32 %s36, %s55
      %s57 = ssub.s32 %s37, %s51
      %s58 = sor.u32 %s56, %s57
      %p59 = scmp.eq.s32.totalorder %s58, 0
      %s61 = sadd.s32 %s60, 1
      %s62 = scalar_select %p59, %s60, %s61
      %p65 = pneg %p59
      %p66 = scmp.eq.s32.totalorder %s29, 1
      %p67 = por %p65, %p66
      %p68 = scmp.ne.s32.totalorder %s60, %s63
      %p69 = scmp.eq.s32.totalorder %s29, 0
      %p70 = por %p68, %p69
      %p71 = scmp.ne.s32.totalorder %s60, %s63
      %p72 = scmp.eq.s32.totalorder %s34, 1
      %p73 = por %p71, %p72
      %p74 = scmp.ne.s32.totalorder %s63, %s64
      %p75 = scmp.eq.s32.totalorder %s34, 0
      %p76 = por %p74, %p75
      %p77 = scmp.ne.s32.totalorder %s63, %s64
      %p78 = scmp.eq.s32.totalorder %s35, 1
      %p79 = por %p77, %p78
      %p81 = scmp.ne.s32.totalorder %s64, %s80
      %p82 = scmp.eq.s32.totalorder %s35, 0
      %p83 = por %p81, %p82
      %s84 = ssub.s32 %s36, %s55
      %s85 = ssub.s32 %s37, %s51
      %s86 = sor.u32 %s84, %s85
      %p87 = scmp.eq.s32.totalorder %s86, 0
      %s89 = sadd.s32 %s88, 1
      %s90 = scalar_select %p87, %s88, %s89
      %p93 = pneg %p87
      %p94 = scmp.eq.s32.totalorder %s29, 1
      %p95 = por %p93, %p94
      %p96 = scmp.ne.s32.totalorder %s88, %s91
      %p97 = scmp.eq.s32.totalorder %s29, 0
      %p98 = por %p96, %p97
      %p99 = scmp.ne.s32.totalorder %s88, %s91
      %p100 = scmp.eq.s32.totalorder %s34, 1
      %p101 = por %p99, %p100
      %p102 = scmp.ne.s32.totalorder %s91, %s92
      %p103 = scmp.eq.s32.totalorder %s34, 0
      %p104 = por %p102, %p103
      %p105 = scmp.ne.s32.totalorder %s91, %s92
      %p106 = scmp.eq.s32.totalorder %s35, 1
      %p107 = por %p105, %p106
      %p109 = scmp.ne.s32.totalorder %s92, %s108
      %p110 = scmp.eq.s32.totalorder %s35, 0
      %p111 = por %p109, %p110
      %s113 = sadd.s32 %s112, 1
      %p116 = scmp.eq.s32.totalorder %s29, 1
      %p117 = scmp.ne.s32.totalorder %s112, %s114
      %p118 = scmp.eq.s32.totalorder %s29, 0
      %p119 = por %p117, %p118
      %p120 = scmp.ne.s32.totalorder %s112, %s114
      %p121 = scmp.eq.s32.totalorder %s34, 1
      %p122 = por %p120, %p121
      %p123 = scmp.ne.s32.totalorder %s114, %s115
      %p124 = scmp.eq.s32.totalorder %s34, 0
      %p125 = por %p123, %p124
      %p126 = scmp.ne.s32.totalorder %s114, %s115
      %p127 = scmp.eq.s32.totalorder %s35, 1
      %p128 = por %p126, %p127
      %p130 = scmp.ne.s32.totalorder %s115, %s129
      %p131 = scmp.eq.s32.totalorder %s35, 0
      %p132 = por %p130, %p131
      %s134 = sadd.s32 %s133, 1
      %p137 = scmp.eq.s32.totalorder %s29, 1
      %p138 = scmp.ne.s32.totalorder %s133, %s135
      %p139 = scmp.eq.s32.totalorder %s29, 0
      %p140 = por %p138, %p139
      %p141 = scmp.ne.s32.totalorder %s133, %s135
      %p142 = scmp.eq.s32.totalorder %s34, 1
      %p143 = por %p141, %p142
      %p144 = scmp.ne.s32.totalorder %s135, %s136
      %p145 = scmp.eq.s32.totalorder %s34, 0
      %p146 = por %p144, %p145
      %p147 = scmp.ne.s32.totalorder %s135, %s136
      %p148 = scmp.eq.s32.totalorder %s35, 1
      %p149 = por %p147, %p148
      %p151 = scmp.ne.s32.totalorder %s136, %s150
      %p152 = scmp.eq.s32.totalorder %s35, 0
      %p153 = por %p151, %p152
      %s155 = sadd.s32 %s154, 1
      %p158 = scmp.eq.s32.totalorder %s29, 1
      %p159 = scmp.ne.s32.totalorder %s154, %s156
      %p160 = scmp.eq.s32.totalorder %s29, 0
      %p161 = por %p159, %p160
      %p162 = scmp.ne.s32.totalorder %s154, %s156
      %p163 = scmp.eq.s32.totalorder %s34, 1
      %p164 = por %p162, %p163
      %p165 = scmp.ne.s32.totalorder %s156, %s157
      %p166 = scmp.eq.s32.totalorder %s34, 0
      %p167 = por %p165, %p166
      %p168 = scmp.ne.s32.totalorder %s156, %s157
      %p169 = scmp.eq.s32.totalorder %s35, 1
      %p170 = por %p168, %p169
      %p172 = scmp.ne.s32.totalorder %s157, %s171
      %p173 = scmp.eq.s32.totalorder %s35, 0
      %p174 = por %p172, %p173
      %s176 = sadd.s32 %s175, 1
      %p179 = scmp.eq.s32.totalorder %s29, 1
      %p180 = scmp.ne.s32.totalorder %s175, %s177
      %p181 = scmp.eq.s32.totalorder %s29, 0
      %p182 = por %p180, %p181
      %p183 = scmp.ne.s32.totalorder %s175, %s177
      %p184 = scmp.eq.s32.totalorder %s34, 1
      %p185 = por %p183, %p184
      %p186 = scmp.ne.s32.totalorder %s177, %s178
      %p187 = scmp.eq.s32.totalorder %s34, 0
      %p188 = por %p186, %p187
      %p189 = scmp.ne.s32.totalorder %s177, %s178
      %p190 = scmp.eq.s32.totalorder %s35, 1
      %p191 = por %p189, %p190
      %p193 = scmp.ne.s32.totalorder %s178, %s192
      %p194 = scmp.eq.s32.totalorder %s35, 0
      %p195 = por %p193, %p194
      %s196 = ssub.s32 %s38, %s47
      %p197 = scmp.eq.s32.totalorder %s196, 0
      %s199 = sadd.s32 %s198, 1
      %s200 = scalar_select %p197, %s198, %s199
      %p203 = pneg %p197
      %p204 = scmp.eq.s32.totalorder %s29, 1
      %p205 = por %p203, %p204
      %p206 = scmp.ne.s32.totalorder %s198, %s201
      %p207 = scmp.eq.s32.totalorder %s29, 0
      %p208 = por %p206, %p207
      %p209 = scmp.ne.s32.totalorder %s198, %s201
      %p210 = scmp.eq.s32.totalorder %s34, 1
      %p211 = por %p209, %p210
      %p212 = scmp.ne.s32.totalorder %s201, %s202
      %p213 = scmp.eq.s32.totalorder %s34, 0
      %p214 = por %p212, %p213
      %p215 = scmp.ne.s32.totalorder %s201, %s202
      %p216 = scmp.eq.s32.totalorder %s35, 1
      %p217 = por %p215, %p216
      %p219 = scmp.ne.s32.totalorder %s202, %s218
      %p220 = scmp.eq.s32.totalorder %s35, 0
      %p221 = por %p219, %p220
      %s222 = ssub.s32 %s38, %s47
      %p223 = scmp.eq.s32.totalorder %s222, 0
      %s225 = sadd.s32 %s224, 1
      %s226 = scalar_select %p223, %s224, %s225
      %p229 = pneg %p223
      %p230 = scmp.eq.s32.totalorder %s29, 1
      %p231 = por %p229, %p230
      %p232 = scmp.ne.s32.totalorder %s224, %s227
      %p233 = scmp.eq.s32.totalorder %s29, 0
      %p234 = por %p232, %p233
      %p235 = scmp.ne.s32.totalorder %s224, %s227
      %p236 = scmp.eq.s32.totalorder %s34, 1
      %p237 = por %p235, %p236
      %p238 = scmp.ne.s32.totalorder %s227, %s228
      %p239 = scmp.eq.s32.totalorder %s34, 0
      %p240 = por %p238, %p239
      %p241 = scmp.ne.s32.totalorder %s227, %s228
      %p242 = scmp.eq.s32.totalorder %s35, 1
      %p243 = por %p241, %p242
      %p245 = scmp.ne.s32.totalorder %s228, %s244
      %p246 = scmp.eq.s32.totalorder %s35, 0
      %p247 = por %p245, %p246
      %s248 = ssub.s32 %s38, %s47
      %p249 = scmp.eq.s32.totalorder %s248, 0
      %s251 = sadd.s32 %s250, 1
      %s252 = scalar_select %p249, %s250, %s251
      %p255 = pneg %p249
      %p256 = scmp.eq.s32.totalorder %s29, 1
      %p257 = por %p255, %p256
      %p258 = scmp.ne.s32.totalorder %s250, %s253
      %p259 = scmp.eq.s32.totalorder %s29, 0
      %p260 = por %p258, %p259
      %p261 = scmp.ne.s32.totalorder %s250, %s253
      %p262 = scmp.eq.s32.totalorder %s34, 1
      %p263 = por %p261, %p262
      %p264 = scmp.ne.s32.totalorder %s253, %s254
      %p265 = scmp.eq.s32.totalorder %s34, 0
      %p266 = por %p264, %p265
      %p267 = scmp.ne.s32.totalorder %s253, %s254
      %p268 = scmp.eq.s32.totalorder %s35, 1
      %p269 = por %p267, %p268
      %p271 = scmp.ne.s32.totalorder %s254, %s270
      %p272 = scmp.eq.s32.totalorder %s35, 0
      %p273 = por %p271, %p272
      %s275 = sadd.s32 %s274, 1
      %p278 = scmp.eq.s32.totalorder %s29, 1
      %p279 = scmp.ne.s32.totalorder %s274, %s276
      %p280 = scmp.eq.s32.totalorder %s29, 0
      %p281 = por %p279, %p280
      %p282 = scmp.ne.s32.totalorder %s274, %s276
      %p283 = scmp.eq.s32.totalorder %s34, 1
      %p284 = por %p282, %p283
      %p285 = scmp.ne.s32.totalorder %s276, %s277
      %p286 = scmp.eq.s32.totalorder %s34, 0
      %p287 = por %p285, %p286
      %p288 = scmp.ne.s32.totalorder %s276, %s277
      %p289 = scmp.eq.s32.totalorder %s35, 1
      %p290 = por %p288, %p289
      %p292 = scmp.ne.s32.totalorder %s277, %s291
      %p293 = scmp.eq.s32.totalorder %s35, 0
      %p294 = por %p292, %p293
      %s295 = ssub.s32 %s36, %s55
      %s296 = ssub.s32 %s37, %s51
      %s297 = sor.u32 %s295, %s296
      %p298 = scmp.eq.s32.totalorder %s297, 0
      %s300 = sadd.s32 %s299, 1
      %s301 = scalar_select %p298, %s299, %s300
      %p304 = pneg %p298
      %p305 = scmp.eq.s32.totalorder %s29, 1
      %p306 = por %p304, %p305
      %p307 = scmp.ne.s32.totalorder %s299, %s302
      %p308 = scmp.eq.s32.totalorder %s29, 0
      %p309 = por %p307, %p308
      %p310 = scmp.ne.s32.totalorder %s299, %s302
      %p311 = scmp.eq.s32.totalorder %s34, 1
      %p312 = por %p310, %p311
      %p313 = scmp.ne.s32.totalorder %s302, %s303
      %p314 = scmp.eq.s32.totalorder %s34, 0
      %p315 = por %p313, %p314
      %p316 = scmp.ne.s32.totalorder %s302, %s303
      %p317 = scmp.eq.s32.totalorder %s35, 1
      %p318 = por %p316, %p317
      %p320 = scmp.ne.s32.totalorder %s303, %s319
      %p321 = scmp.eq.s32.totalorder %s35, 0
      %p322 = por %p320, %p321
      %p323 = scmp.le.s32.totalorder 1, %s29
      %p324 = scmp.lt.s32.totalorder %s29, 3
      %p325 = pnand %p323, %p324
      %p326 = pneg %p325
      // Predicated region
      $region9: #{siglip_encoder_layer.5} parent=5 // pred_check
        _
      $region10: #{siglip_encoder_layer.5} parent=5 // pred_check_branch
        %328 = sbr.rel (%p325) target = $region12
      $region11: #{siglip_encoder_layer.5} parent=5 // pred_region
        %s329 = ssub.s32 %s29, 1
        // Predicated region
        $region13: #{siglip_encoder_layer.5} parent=11 // pred_check
          %p330 = pneg %p125
        $region14: #{siglip_encoder_layer.5} parent=11 // pred_check_branch
          %332 = sbr.rel (%p330) target = $region16
        $region15: #{siglip_encoder_layer.5} parent=11 // pred_region
          %s334 = ssub.s32 512, 512
          %335 = vsyncadd [#allocation9], %s334
          %s336 = sshll.u32 [#allocation10], 4
          %s337 = int_to_ptr.vmem [resolvable:$true] %s336
          %342 = dma.hbm_to_vmem [thread:$0]  %s2, 512, %s337, [#allocation9], 128, 128, 8
        $region16: #{siglip_encoder_layer.5} parent=11 // pred_fallthru
          _
        // Predicated region
        $region17: #{siglip_encoder_layer.5} parent=11 // pred_check
          %p343 = pneg %p146
        $region18: #{siglip_encoder_layer.5} parent=11 // pred_check_branch
          %345 = sbr.rel (%p343) target = $region20
        $region19: #{siglip_encoder_layer.5} parent=11 // pred_region
          %s347 = ssub.s32 16, 16
          %348 = vsyncadd [#allocation12], %s347
          %s350 = sshll.u32 [#allocation11], 4
          %s351 = int_to_ptr.vmem [resolvable:$true] %s350
          %353 = dma.hbm_to_vmem [thread:$0]  %s3, 16, %s351, [#allocation12]
        $region20: #{siglip_encoder_layer.5} parent=11 // pred_fallthru
          _
        // Predicated region
        $region21: #{siglip_encoder_layer.5} parent=11 // pred_check
          %p354 = pneg %p167
        $region22: #{siglip_encoder_layer.5} parent=11 // pred_check_branch
          %356 = sbr.rel (%p354) target = $region24
        $region23: #{siglip_encoder_layer.5} parent=11 // pred_region
          %s358 = ssub.s32 16, 16
          %359 = vsyncadd [#allocation12], %s358
          %s361 = sshll.u32 [#allocation13], 4
          %s362 = int_to_ptr.vmem [resolvable:$true] %s361
          %364 = dma.hbm_to_vmem [thread:$0]  %s4, 16, %s362, [#allocation12]
        $region24: #{siglip_encoder_layer.5} parent=11 // pred_fallthru
          _
        // Predicated region
        $region25: #{siglip_encoder_layer.5} parent=11 // pred_check
          %p365 = pneg %p188
        $region26: #{siglip_encoder_layer.5} parent=11 // pred_check_branch
          %367 = sbr.rel (%p365) target = $region28
        $region27: #{siglip_encoder_layer.5} parent=11 // pred_region
          %s369 = ssub.s32 16, 16
          %370 = vsyncadd [#allocation15], %s369
          %s372 = sshll.u32 [#allocation14], 4
          %s373 = int_to_ptr.vmem [resolvable:$true] %s372
          %375 = dma.hbm_to_vmem [thread:$0]  %s5, 16, %s373, [#allocation15]
        $region28: #{siglip_encoder_layer.5} parent=11 // pred_fallthru
          _
        // Predicated region
        $region29: #{siglip_encoder_layer.5} parent=11 // pred_check
          %p376 = pneg %p214
        $region30: #{siglip_encoder_layer.5} parent=11 // pred_check_branch
          %378 = sbr.rel (%p376) target = $region32
        $region31: #{siglip_encoder_layer.5} parent=11 // pred_region
          %s380 = ssub.s32 512, 512
          %381 = vsyncadd [#allocation15], %s380
          %s382 = smul.addr %s41, 128
          %s383 = scalar_lea.hbm %s6, %s382
          %s384 = sshll.u32 [#allocation16], 4
          %s385 = int_to_ptr.vmem [resolvable:$true] %s384
          %390 = dma.hbm_to_vmem [thread:$0]  %s383, 512, %s385, [#allocation15], 128, 128, 8
        $region32: #{siglip_encoder_layer.5} parent=11 // pred_fallthru
          _
        // Predicated region
        $region33: #{siglip_encoder_layer.5} parent=11 // pred_check
          %p391 = pneg %p240
        $region34: #{siglip_encoder_layer.5} parent=11 // pred_check_branch
          %393 = sbr.rel (%p391) target = $region36
        $region35: #{siglip_encoder_layer.5} parent=11 // pred_region
          %s395 = ssub.s32 16, 16
          %396 = vsyncadd [#allocation18], %s395
          %s397 = smul.addr %s41, 16
          %s398 = scalar_lea.hbm %s7, %s397
          %s400 = sshll.u32 [#allocation17], 4
          %s401 = int_to_ptr.vmem [resolvable:$true] %s400
          %403 = dma.hbm_to_vmem [thread:$0]  %s398, 16, %s401, [#allocation18]
        $region36: #{siglip_encoder_layer.5} parent=11 // pred_fallthru
          _
        // Predicated region
        $region37: #{siglip_encoder_layer.5} parent=11 // pred_check
          %p404 = pneg %p266
        $region38: #{siglip_encoder_layer.5} parent=11 // pred_check_branch
          %406 = sbr.rel (%p404) target = $region40
        $region39: #{siglip_encoder_layer.5} parent=11 // pred_region
          %s407 = smul.u32 8, %s41
          %s409 = ssub.s32 1024, 1024
          %410 = vsyncadd [#allocation18], %s409
          %s411 = smul.addr %s407, 128
          %s412 = scalar_lea.hbm %s8, %s411
          %s413 = sshll.u32 [#allocation19], 4
          %s414 = int_to_ptr.vmem [resolvable:$true] %s413
          %419 = dma.hbm_to_vmem [thread:$0]  %s412, 1024, %s414, [#allocation18], 128, 128, 8
        $region40: #{siglip_encoder_layer.5} parent=11 // pred_fallthru
          _
        // Predicated region
        $region41: #{siglip_encoder_layer.5} parent=11 // pred_check
          %p420 = pneg %p287
        $region42: #{siglip_encoder_layer.5} parent=11 // pred_check_branch
          %422 = sbr.rel (%p420) target = $region44
        $region43: #{siglip_encoder_layer.5} parent=11 // pred_region
          %s424 = ssub.s32 16, 16
          %425 = vsyncadd [#allocation21], %s424
          %s427 = sshll.u32 [#allocation20], 4
          %s428 = int_to_ptr.vmem [resolvable:$true] %s427
          %430 = dma.hbm_to_vmem [thread:$0]  %s9, 16, %s428, [#allocation21]
        $region44: #{siglip_encoder_layer.5} parent=11 // pred_fallthru
          _
      $region12: #{siglip_encoder_layer.5} parent=5 // pred_fallthru
        _
      %p431 = scmp.lt.s32.totalorder %s29, 2
      // Predicated region
      $region45: #{siglip_encoder_layer.5} parent=5 // pred_check
        %p432 = pneg %p431
      $region46: #{siglip_encoder_layer.5} parent=5 // pred_check_branch
        %434 = sbr.rel (%p432) target = $region48
      $region47: #{siglip_encoder_layer.5} parent=5 // pred_region
        // Predicated region
        $region49: #{siglip_encoder_layer.5} parent=47 // pred_check
          %p435 = pneg %p70
        $region50: #{siglip_encoder_layer.5} parent=47 // pred_check_branch
          %437 = sbr.rel (%p435) target = $region52
        $region51: #{siglip_encoder_layer.5} parent=47 // pred_region
          %s438 = sand.u32 %s60, 1
          %s439 = scalar_lea.sflag [#allocation6], %s438
          %s440 = sand.u32 %s60, 1
          %s441 = smul.addr %s440, 32
          %s442 = scalar_lea.vmem [#allocation5], %s441
          %s444 = ssub.s32 512, 512
          %445 = vsyncadd %s439, %s444
          %s446 = smul.addr %s36, 4
          %s447 = sadd.s32 %s37, %s446
          %s448 = smul.addr %s447, 128
          %s449 = scalar_lea.hbm %s0, %s448
          %s450 = sshll.u32 %s442, 4
          %s451 = int_to_ptr.vmem [resolvable:$true] %s450
          %456 = dma.hbm_to_vmem [thread:$0]  %s449, 512, %s451, %s439, 128, 128, 8
        $region52: #{siglip_encoder_layer.5} parent=47 // pred_fallthru
          _
        // Predicated region
        $region53: #{siglip_encoder_layer.5} parent=47 // pred_check
          %p457 = pneg %p98
        $region54: #{siglip_encoder_layer.5} parent=47 // pred_check_branch
          %459 = sbr.rel (%p457) target = $region56
        $region55: #{siglip_encoder_layer.5} parent=47 // pred_region
          %s460 = sand.u32 %s29, 1
          %s461 = scalar_lea.sflag [#allocation9], %s460
          %s462 = sand.u32 %s88, 1
          %s463 = smul.addr %s462, 8
          %s464 = scalar_lea.vmem [#allocation8], %s463
          %s466 = ssub.s32 128, 128
          %467 = vsyncadd %s461, %s466
          %s468 = sadd.s32 %s37, %s36
          %s469 = smul.addr %s468, 128
          %s470 = scalar_lea.hbm %s1, %s469
          %s472 = sshll.u32 %s464, 4
          %s473 = int_to_ptr.vmem [resolvable:$true] %s472
          %475 = dma.hbm_to_vmem [thread:$0]  %s470, 128, %s473, %s461
        $region56: #{siglip_encoder_layer.5} parent=47 // pred_fallthru
          _
      $region48: #{siglip_encoder_layer.5} parent=5 // pred_fallthru
        _
      %p476 = scmp.le.s32.totalorder 1, %s29
      %p477 = scmp.lt.s32.totalorder %s29, 3
      %p478 = pnand %p476, %p477
      %p479 = pneg %p478
      // Predicated region
      $region57: #{siglip_encoder_layer.5} parent=5 // pred_check
        _
      $region58: #{siglip_encoder_layer.5} parent=5 // pred_check_branch
        %481 = sbr.rel (%p478) target = $region60
      $region59: #{siglip_encoder_layer.5} parent=5 // pred_region
        %s482 = ssub.s32 %s29, 1
        %s483 = sand.u32 %s63, 1
        %s484 = scalar_lea.sflag [#allocation6], %s483
        %s485 = sand.u32 %s63, 1
        %s486 = smul.addr %s485, 32
        %s487 = scalar_lea.vmem [#allocation5], %s486
        // Predicated region
        $region61: #{siglip_encoder_layer.5} parent=59 // pred_check
          %p488 = pneg %p76
        $region62: #{siglip_encoder_layer.5} parent=59 // pred_check_branch
          %490 = sbr.rel (%p488) target = $region64
        $region63: #{siglip_encoder_layer.5} parent=59 // pred_region
          %491 = dma.done %s484, 512
        $region64: #{siglip_encoder_layer.5} parent=59 // pred_fallthru
          _
        %s492 = sand.u32 %s34, 1
        %s493 = scalar_lea.sflag [#allocation9], %s492
        %s494 = sand.u32 %s91, 1
        %s495 = smul.addr %s494, 8
        %s496 = scalar_lea.vmem [#allocation8], %s495
        // Predicated region
        $region65: #{siglip_encoder_layer.5} parent=59 // pred_check
          %p497 = pneg %p104
        $region66: #{siglip_encoder_layer.5} parent=59 // pred_check_branch
          %499 = sbr.rel (%p497) target = $region68
        $region67: #{siglip_encoder_layer.5} parent=59 // pred_region
          %500 = dma.done %s493, 128
        $region68: #{siglip_encoder_layer.5} parent=59 // pred_fallthru
          _
        // Predicated region
        $region69: #{siglip_encoder_layer.5} parent=59 // pred_check
          %p501 = pneg %p125
        $region70: #{siglip_encoder_layer.5} parent=59 // pred_check_branch
          %503 = sbr.rel (%p501) target = $region72
        $region71: #{siglip_encoder_layer.5} parent=59 // pred_region
          %504 = dma.done [#allocation9], 512
        $region72: #{siglip_encoder_layer.5} parent=59 // pred_fallthru
          _
        // Predicated region
        $region73: #{siglip_encoder_layer.5} parent=59 // pred_check
          %p505 = pneg %p146
        $region74: #{siglip_encoder_layer.5} parent=59 // pred_check_branch
          %507 = sbr.rel (%p505) target = $region76
        $region75: #{siglip_encoder_layer.5} parent=59 // pred_region
          %508 = dma.done [#allocation12], 16
        $region76: #{siglip_encoder_layer.5} parent=59 // pred_fallthru
          _
        // Predicated region
        $region77: #{siglip_encoder_layer.5} parent=59 // pred_check
          %p509 = pneg %p167
        $region78: #{siglip_encoder_layer.5} parent=59 // pred_check_branch
          %511 = sbr.rel (%p509) target = $region80
        $region79: #{siglip_encoder_layer.5} parent=59 // pred_region
          %512 = dma.done [#allocation12], 16
        $region80: #{siglip_encoder_layer.5} parent=59 // pred_fallthru
          _
        // Predicated region
        $region81: #{siglip_encoder_layer.5} parent=59 // pred_check
          %p513 = pneg %p188
        $region82: #{siglip_encoder_layer.5} parent=59 // pred_check_branch
          %515 = sbr.rel (%p513) target = $region84
        $region83: #{siglip_encoder_layer.5} parent=59 // pred_region
          %516 = dma.done [#allocation15], 16
        $region84: #{siglip_encoder_layer.5} parent=59 // pred_fallthru
          _
        // Predicated region
        $region85: #{siglip_encoder_layer.5} parent=59 // pred_check
          %p517 = pneg %p214
        $region86: #{siglip_encoder_layer.5} parent=59 // pred_check_branch
          %519 = sbr.rel (%p517) target = $region88
        $region87: #{siglip_encoder_layer.5} parent=59 // pred_region
          %520 = dma.done [#allocation15], 512
        $region88: #{siglip_encoder_layer.5} parent=59 // pred_fallthru
          _
        // Predicated region
        $region89: #{siglip_encoder_layer.5} parent=59 // pred_check
          %p521 = pneg %p240
        $region90: #{siglip_encoder_layer.5} parent=59 // pred_check_branch
          %523 = sbr.rel (%p521) target = $region92
        $region91: #{siglip_encoder_layer.5} parent=59 // pred_region
          %524 = dma.done [#allocation18], 16
        $region92: #{siglip_encoder_layer.5} parent=59 // pred_fallthru
          _
        // Predicated region
        $region93: #{siglip_encoder_layer.5} parent=59 // pred_check
          %p525 = pneg %p266
        $region94: #{siglip_encoder_layer.5} parent=59 // pred_check_branch
          %527 = sbr.rel (%p525) target = $region96
        $region95: #{siglip_encoder_layer.5} parent=59 // pred_region
          %528 = dma.done [#allocation18], 1024
        $region96: #{siglip_encoder_layer.5} parent=59 // pred_fallthru
          _
        // Predicated region
        $region97: #{siglip_encoder_layer.5} parent=59 // pred_check
          %p529 = pneg %p287
        $region98: #{siglip_encoder_layer.5} parent=59 // pred_check_branch
          %531 = sbr.rel (%p529) target = $region100
        $region99: #{siglip_encoder_layer.5} parent=59 // pred_region
          %532 = dma.done [#allocation21], 16
        $region100: #{siglip_encoder_layer.5} parent=59 // pred_fallthru
          _
        %s533 = sand.u32 %s63, 1
        %s534 = scalar_lea.sflag [#allocation6], %s533
        %s535 = sand.u32 %s63, 1
        %s536 = smul.addr %s535, 32
        %s537 = scalar_lea.vmem [#allocation5], %s536
        %p538 = pneg %p76
        %p539 = pneg %p73
        %s540 = sand.u32 %s34, 1
        %s541 = scalar_lea.sflag [#allocation9], %s540
        %s542 = sand.u32 %s91, 1
        %s543 = smul.addr %s542, 8
        %s544 = scalar_lea.vmem [#allocation8], %s543
        %p545 = pneg %p104
        %p546 = pneg %p101
        %p547 = pneg %p125
        %p548 = pneg %p122
        %p549 = pneg %p146
        %p550 = pneg %p143
        %p551 = pneg %p167
        %p552 = pneg %p164
        %p553 = pneg %p188
        %p554 = pneg %p185
        %p555 = pneg %p214
        %p556 = pneg %p211
        %p557 = pneg %p240
        %p558 = pneg %p237
        %p559 = pneg %p266
        %p560 = pneg %p263
        %p561 = pneg %p287
        %p562 = pneg %p284
        %p563 = pneg %p315
        %p564 = pneg %p312
        %s565 = sand.u32 %s302, 1
        %s566 = scalar_lea.sflag [#allocation7], %s565
        %s567 = sand.u32 %s302, 1
        %s568 = smul.addr %s567, 8
        %s569 = scalar_lea.vmem [#allocation22], %s568
        %s570 = smul.u32 8, %s41
        %p571 = scmp.eq.s32.totalorder %s41, 0
        // Predicated region
        $region101: #{siglip_encoder_layer.5} parent=59 // pred_check
          %p572 = pneg %p571
        $region102: #{siglip_encoder_layer.5} parent=59 // pred_check_branch
          %574 = sbr.rel (%p572) target = $region104
        $region103: #{siglip_encoder_layer.5} parent=59 // pred_region
          %v575 = vld [vmem:[%s487] sm:$0xff]
          %v576 = vld [vmem:[%s487 + $0x8] sm:$0xff]
          %v577 = vld [vmem:[%s487 + $0x10] sm:$0xff]
          %v578 = vld [vmem:[%s487 + $0x18] sm:$0xff]
          %v579 = vcombine.low %v575, %v577
          %v580 = vcombine.high %v575, %v577
          %v582 = vunpack.c.l.s4 1983009808
          %v583 = vunpack.c.0.s8 %v582
          %v584 = vlaneseq
          %v585 = vshrl.u32 %v584, 7
          %v586 = vsub.s32 %v583, %v585
          %v587 = vrot.slane %v579, %v586
          %v589 = vunpack.c.l.s4 1983009808
          %v590 = vunpack.c.0.s8 %v589
          %v591 = vlaneseq
          %v592 = vshrl.u32 %v591, 7
          %v593 = vsub.s32 %v590, %v592
          %v594 = vrot.slane %v580, %v593
          %v595 = vcombine.low %v576, %v578
          %v596 = vcombine.high %v576, %v578
          %v598 = vunpack.c.l.s4 1983009808
          %v599 = vunpack.c.0.s8 %v598
          %v600 = vlaneseq
          %v601 = vshrl.u32 %v600, 7
          %v602 = vsub.s32 %v599, %v601
          %v603 = vrot.slane %v595, %v602
          %v605 = vunpack.c.l.s4 1983009808
          %v606 = vunpack.c.0.s8 %v605
          %v607 = vlaneseq
          %v608 = vshrl.u32 %v607, 7
          %v609 = vsub.s32 %v606, %v608
          %v610 = vrot.slane %v596, %v609
          %v611 = vcombine.low %v587, %v603
          %v612 = vcombine.high %v587, %v603
          %v614 = vunpack.c.l.s4 1934713408
          %v615 = vunpack.c.0.s8 %v614
          %v616 = vlaneseq
          %v617 = vshrl.u32 %v616, 7
          %v618 = vsub.s32 %v615, %v617
          %v619 = vrot.slane %v611, %v618
          %v621 = vunpack.c.l.s4 1934713408
          %v622 = vunpack.c.0.s8 %v621
          %v623 = vlaneseq
          %v624 = vshrl.u32 %v623, 7
          %v625 = vsub.s32 %v622, %v624
          %v626 = vrot.slane %v612, %v625
          %v627 = vcombine.low %v594, %v610
          %v628 = vcombine.high %v594, %v610
          %v630 = vunpack.c.l.s4 1934713408
          %v631 = vunpack.c.0.s8 %v630
          %v632 = vlaneseq
          %v633 = vshrl.u32 %v632, 7
          %v634 = vsub.s32 %v631, %v633
          %v635 = vrot.slane %v627, %v634
          %v637 = vunpack.c.l.s4 1934713408
          %v638 = vunpack.c.0.s8 %v637
          %v639 = vlaneseq
          %v640 = vshrl.u32 %v639, 7
          %v641 = vsub.s32 %v638, %v640
          %v642 = vrot.slane %v628, %v641
          %v643 = vcombine.high %v619, 0.0
          %v644 = vcombine.high %v626, 0.0
          %v645 = vcombine.high %v635, 0.0
          %v646 = vcombine.high %v642, 0.0
          %v647 = vcombine.low %v619, %v626
          %v649 = vunpack.c.l.s4 1983009808
          %v650 = vunpack.c.0.s8 %v649
          %v651 = vlaneseq
          %v652 = vshrl.u32 %v651, 7
          %v653 = vsub.s32 %v650, %v652
          %v654 = vrot.slane %v647, %v653
          %v655 = vcombine.low %v643, %v644
          %v657 = vunpack.c.l.s4 1983009808
          %v658 = vunpack.c.0.s8 %v657
          %v659 = vlaneseq
          %v660 = vshrl.u32 %v659, 7
          %v661 = vsub.s32 %v658, %v660
          %v662 = vrot.slane %v655, %v661
          %v663 = vcombine.low %v635, %v642
          %v665 = vunpack.c.l.s4 1983009808
          %v666 = vunpack.c.0.s8 %v665
          %v667 = vlaneseq
          %v668 = vshrl.u32 %v667, 7
          %v669 = vsub.s32 %v666, %v668
          %v670 = vrot.slane %v663, %v669
          %v671 = vcombine.low %v645, %v646
          %v673 = vunpack.c.l.s4 1983009808
          %v674 = vunpack.c.0.s8 %v673
          %v675 = vlaneseq
          %v676 = vshrl.u32 %v675, 7
          %v677 = vsub.s32 %v674, %v676
          %v678 = vrot.slane %v671, %v677
          %v679 = vcombine.low %v654, %v662
          %v680 = vcombine.high %v654, %v662
          %v682 = vunpack.c.l.s4 1934713408
          %v683 = vunpack.c.0.s8 %v682
          %v684 = vlaneseq
          %v685 = vshrl.u32 %v684, 7
          %v686 = vsub.s32 %v683, %v685
          %v687 = vrot.slane %v679, %v686
          %v689 = vunpack.c.l.s4 1934713408
          %v690 = vunpack.c.0.s8 %v689
          %v691 = vlaneseq
          %v692 = vshrl.u32 %v691, 7
          %v693 = vsub.s32 %v690, %v692
          %v694 = vrot.slane %v680, %v693
          %v695 = vcombine.low %v670, %v678
          %v696 = vcombine.high %v670, %v678
          %v698 = vunpack.c.l.s4 1934713408
          %v699 = vunpack.c.0.s8 %v698
          %v700 = vlaneseq
          %v701 = vshrl.u32 %v700, 7
          %v702 = vsub.s32 %v699, %v701
          %v703 = vrot.slane %v695, %v702
          %v705 = vunpack.c.l.s4 1934713408
          %v706 = vunpack.c.0.s8 %v705
          %v707 = vlaneseq
          %v708 = vshrl.u32 %v707, 7
          %v709 = vsub.s32 %v706, %v708
          %v710 = vrot.slane %v696, %v709
          %v711 = vcombine.low %v687, %v703
          %v712 = vcombine.high %v687, %v703
          %v713 = vcombine.low %v694, %v710
          %v714 = vcombine.high %v694, %v710
          %716 = vrot.lane.b32.xlu0 %v712, 8
          %v717 = vpop.permute.xlu0 %716
          %720 = vrot.lane.b32.xlu0 %v713, 16
          %v721 = vpop.permute.xlu0 %720
          %724 = vrot.lane.b32.xlu0 %v714, 24
          %v725 = vpop.permute.xlu0 %724
          %vm727 = vcmask 64512
          %v728 = vsel %vm727, %v711, %v717
          %vm729 = vcmask 130048
          %v730 = vsel %vm729, %v728, %v721
          %vm731 = vcmask 195584
          %v732 = vsel %vm731, %v730, %v725
          %v733 = vld [vmem:[#allocation10] sm:$0xff]
          %v734 = vld [vmem:[#allocation10 + $0x8] sm:$0xff]
          %v735 = vld [vmem:[#allocation10 + $0x10] sm:$0xff]
          %v736 = vld [vmem:[#allocation10 + $0x18] sm:$0xff]
          %v737 = vld [vmem:[#allocation11] sm:$0x1]
          %v739 = vlaneseq
          %v740 = vshrl.u32 %v739, 7
          %v741 = vsub.s32 0, %v740
          %v742 = vrot.slane %v737, %v741
          %vm744 = vcmask 261120
          %v746 = vsel %vm744, %v732, 0
          %748 = vmatprep.subr.mxu0 0.0
          %749 = vmatpush1.msra.mxu0 %v733
          %750 = vmatprep.subr.mxu0 0.0
          %751 = vmatpush1.msra.mxu0 %v734
          %752 = vmatprep.subr.mxu0 0.0
          %753 = vmatpush1.msra.mxu0 %v735
          %754 = vmatprep.subr.mxu0 0.0
          %755 = vmatpush1.msra.mxu0 %v736
          %756 = vmatprep.subr.mxu0 0.0
          %757 = vmatpush1.msra.mxu0 0.0
          %758 = vmatprep.subr.mxu0 0.0
          %759 = vmatpush1.msra.mxu0 0.0
          %760 = vmatprep.subr.mxu0 0.0
          %761 = vmatpush1.msra.mxu0 0.0
          %762 = vmatprep.subr.mxu0 0.0
          %763 = vmatpush1.msra.mxu0 0.0
          %764 = vmatprep.subr.mxu0 0.0
          %765 = vmatpush1.msra.mxu0 0.0
          %766 = vmatprep.subr.mxu0 0.0
          %767 = vmatpush1.msra.mxu0 0.0
          %768 = vmatprep.subr.mxu0 0.0
          %769 = vmatpush1.msra.mxu0 0.0
          %770 = vmatprep.subr.mxu0 0.0
          %771 = vmatpush1.msra.mxu0 0.0
          %772 = vmatprep.subr.mxu0 0.0
          %773 = vmatpush1.msra.mxu0 0.0
          %774 = vmatprep.subr.mxu0 0.0
          %775 = vmatpush1.msra.mxu0 0.0
          %776 = vmatprep.subr.mxu0 0.0
          %777 = vmatpush1.msra.mxu0 0.0
          %778 = vmatprep.subr.mxu0 0.0
          %779 = vmatpush1.msra.mxu0 0.0
          %780 = vmatprep.subr.mxu0 0.0
          %781 = vmatpush1.msra.mxu0 0.0
          %782 = vmatprep.subr.mxu0 0.0
          %783 = vmatpush1.msra.mxu0 0.0
          %784 = vmatprep.subr.mxu0 0.0
          %785 = vmatpush1.msra.mxu0 0.0
          %786 = vmatprep.subr.mxu0 0.0
          %787 = vmatpush1.msra.mxu0 0.0
          %788 = vmatprep.subr.mxu0 0.0
          %789 = vmatpush1.msra.mxu0 0.0
          %790 = vmatprep.subr.mxu0 0.0
          %791 = vmatpush1.msra.mxu0 0.0
          %792 = vmatprep.subr.mxu0 0.0
          %793 = vmatpush1.msra.mxu0 0.0
          %794 = vmatprep.subr.mxu0 0.0
          %795 = vmatpush1.msra.mxu0 0.0
          %796 = vmatprep.subr.mxu0 0.0
          %797 = vmatpush1.msra.mxu0 0.0
          %798 = vmatprep.subr.mxu0 0.0
          %799 = vmatpush1.msra.mxu0 0.0
          %800 = vmatprep.subr.mxu0 0.0
          %801 = vmatpush1.msra.mxu0 0.0
          %802 = vmatprep.subr.mxu0 0.0
          %803 = vmatpush1.msra.mxu0 0.0
          %804 = vmatprep.subr.mxu0 0.0
          %805 = vmatpush1.msra.mxu0 0.0
          %806 = vmatprep.subr.mxu0 0.0
          %807 = vmatpush1.msra.mxu0 0.0
          %808 = vmatprep.subr.mxu0 0.0
          %809 = vmatpush1.msra.mxu0 0.0
          %810 = vmatprep.subr.mxu0 0.0
          %811 = vmatpush1.msra.mxu0 0.0
          %812 = vmatprep.mubr.f32.mxu0 0.0
          %813 = vmatmul.mubr.f32.gmra.mrb[0].mxu0 %v746
          %v814 = vpop.f32.mrb[0].mxu0
          %v815 = vadd.f32 %v742, %v814
          %v816 = vpop.f32.mrb[0].mxu0
          %817 = vdwg.mxu0
          %v818 = vld [vmem:[%s496] sm:$0xff]
          %v819 = vadd.f32 %v818, %v815
          %820 = vst.msk [vmem:[#allocation2] sm:$0xff] %vm744, %v819
          %v821 = vld [vmem:[#allocation13] sm:$0x1]
          %v822 = vld [vmem:[#allocation14] sm:$0x1]
          %v823 = vsel %vm744, %v819, 0.0
          %824 = vadd.xlane.f32.xlu0 %v823
          %v825 = vpop.xlane.xlu0 %824
          %v826 = vrcp.pop 32.0
          %v827 = vmul.f32 %v825, %v826
          %v828 = vmul.f32 %v819, %v819
          %v829 = vsel %vm744, %v828, 0.0
          %830 = vadd.xlane.f32.xlu0 %v829
          %v831 = vpop.xlane.xlu0 %830
          %v832 = vmul.f32 %v831, %v826
          %v833 = vmul.f32 %v827, %v827
          %v834 = vsub.f32 %v832, %v833
          %v835 = vsub.f32 %v819, %v827
          %v836 = vadd.f32 %v834, 1e-06
          %v837 = vrsqrt.pop %v836
          %v838 = vmul.f32 %v835, %v837
          %v840 = vlaneseq
          %v841 = vshrl.u32 %v840, 7
          %v842 = vsub.s32 0, %v841
          %v843 = vrot.slane %v821, %v842
          %v845 = vmul.f32 %v838, %v843
          %v847 = vlaneseq
          %v848 = vshrl.u32 %v847, 7
          %v849 = vsub.s32 0, %v848
          %v850 = vrot.slane %v822, %v849
          %v852 = vadd.f32 %v845, %v850
          %853 = vst.msk [vmem:[#allocation3] sm:$0xff] %vm744, %v852
          %854 = vst.msk [vmem:[#allocation4] sm:$0xff] %vm744, 0.0
        $region104: #{siglip_encoder_layer.5} parent=59 // pred_fallthru
          _
        %v855 = vld [vmem:[#allocation3] sm:$0xff]
        %v856 = vld [vmem:[#allocation16] sm:$0xff]
        %v857 = vld [vmem:[#allocation16 + $0x8] sm:$0xff]
        %v858 = vld [vmem:[#allocation16 + $0x10] sm:$0xff]
        %v859 = vld [vmem:[#allocation16 + $0x18] sm:$0xff]
        %v860 = vld [vmem:[#allocation17] sm:$0x1]
        %v862 = vlaneseq
        %v863 = vshrl.u32 %v862, 7
        %v864 = vsub.s32 0, %v863
        %v865 = vrot.slane %v860, %v864
        %vm867 = vcmask 261120
        %v869 = vsel %vm867, %v855, 0
        %871 = vmatprep.subr.mxu0 0.0
        %872 = vmatpush1.msra.mxu0 %v856
        %873 = vmatprep.subr.mxu0 0.0
        %874 = vmatpush1.msra.mxu0 %v857
        %875 = vmatprep.subr.mxu0 0.0
        %876 = vmatpush1.msra.mxu0 %v858
        %877 = vmatprep.subr.mxu0 0.0
        %878 = vmatpush1.msra.mxu0 %v859
        %879 = vmatprep.subr.mxu0 0.0
        %880 = vmatpush1.msra.mxu0 0.0
        %881 = vmatprep.subr.mxu0 0.0
        %882 = vmatpush1.msra.mxu0 0.0
        %883 = vmatprep.subr.mxu0 0.0
        %884 = vmatpush1.msra.mxu0 0.0
        %885 = vmatprep.subr.mxu0 0.0
        %886 = vmatpush1.msra.mxu0 0.0
        %887 = vmatprep.subr.mxu0 0.0
        %888 = vmatpush1.msra.mxu0 0.0
        %889 = vmatprep.subr.mxu0 0.0
        %890 = vmatpush1.msra.mxu0 0.0
        %891 = vmatprep.subr.mxu0 0.0
        %892 = vmatpush1.msra.mxu0 0.0
        %893 = vmatprep.subr.mxu0 0.0
        %894 = vmatpush1.msra.mxu0 0.0
        %895 = vmatprep.subr.mxu0 0.0
        %896 = vmatpush1.msra.mxu0 0.0
        %897 = vmatprep.subr.mxu0 0.0
        %898 = vmatpush1.msra.mxu0 0.0
        %899 = vmatprep.subr.mxu0 0.0
        %900 = vmatpush1.msra.mxu0 0.0
        %901 = vmatprep.subr.mxu0 0.0
        %902 = vmatpush1.msra.mxu0 0.0
        %903 = vmatprep.subr.mxu0 0.0
        %904 = vmatpush1.msra.mxu0 0.0
        %905 = vmatprep.subr.mxu0 0.0
        %906 = vmatpush1.msra.mxu0 0.0
        %907 = vmatprep.subr.mxu0 0.0
        %908 = vmatpush1.msra.mxu0 0.0
        %909 = vmatprep.subr.mxu0 0.0
        %910 = vmatpush1.msra.mxu0 0.0
        %911 = vmatprep.subr.mxu0 0.0
        %912 = vmatpush1.msra.mxu0 0.0
        %913 = vmatprep.subr.mxu0 0.0
        %914 = vmatpush1.msra.mxu0 0.0
        %915 = vmatprep.subr.mxu0 0.0
        %916 = vmatpush1.msra.mxu0 0.0
        %917 = vmatprep.subr.mxu0 0.0
        %918 = vmatpush1.msra.mxu0 0.0
        %919 = vmatprep.subr.mxu0 0.0
        %920 = vmatpush1.msra.mxu0 0.0
        %921 = vmatprep.subr.mxu0 0.0
        %922 = vmatpush1.msra.mxu0 0.0
        %923 = vmatprep.subr.mxu0 0.0
        %924 = vmatpush1.msra.mxu0 0.0
        %925 = vmatprep.subr.mxu0 0.0
        %926 = vmatpush1.msra.mxu0 0.0
        %927 = vmatprep.subr.mxu0 0.0
        %928 = vmatpush1.msra.mxu0 0.0
        %929 = vmatprep.subr.mxu0 0.0
        %930 = vmatpush1.msra.mxu0 0.0
        %931 = vmatprep.subr.mxu0 0.0
        %932 = vmatpush1.msra.mxu0 0.0
        %933 = vmatprep.subr.mxu0 0.0
        %934 = vmatpush1.msra.mxu0 0.0
        %935 = vmatprep.mubr.f32.mxu0 0.0
        %936 = vmatmul.mubr.f32.gmra.mrb[0].mxu0 %v869
        %v937 = vpop.f32.mrb[0].mxu0
        %v938 = vadd.f32 %v865, %v937
        %v939 = vpop.f32.mrb[0].mxu0
        %940 = vdwg.mxu0
        %v941 = vmul.f32 %v938, 0.5
        %v942 = vmul.f32 %v938, 0.044715
        %v943 = vmul.f32 %v942, %v938
        %v944 = vmul.f32 %v943, %v938
        %v945 = vadd.f32 %v938, %v944
        %v946 = vmul.f32 %v945, 0.7978846
        %v947 = vtanh.pop %v946
        %v948 = vadd.f32 %v947, 1.0
        %v949 = vmul.f32 %v941, %v948
        %v950 = vld [vmem:[#allocation4] sm:$0xff]
        %v951 = vld [vmem:[#allocation19] sm:$0xff]
        %v952 = vld [vmem:[#allocation19 + $0x8] sm:$0xff]
        %v953 = vld [vmem:[#allocation19 + $0x10] sm:$0xff]
        %v954 = vld [vmem:[#allocation19 + $0x18] sm:$0xff]
        %v955 = vld [vmem:[#allocation19 + $0x20] sm:$0xff]
        %v956 = vld [vmem:[#allocation19 + $0x28] sm:$0xff]
        %v957 = vld [vmem:[#allocation19 + $0x30] sm:$0xff]
        %v958 = vld [vmem:[#allocation19 + $0x38] sm:$0xff]
        %vm959 = vcmask 523264
        %v961 = vsel %vm959, %v949, 0
        %963 = vmatprep.subr.mxu0 0.0
        %964 = vmatpush1.msra.mxu0 %v951
        %965 = vmatprep.subr.mxu0 0.0
        %966 = vmatpush1.msra.mxu0 %v952
        %967 = vmatprep.subr.mxu0 0.0
        %968 = vmatpush1.msra.mxu0 %v953
        %969 = vmatprep.subr.mxu0 0.0
        %970 = vmatpush1.msra.mxu0 %v954
        %971 = vmatprep.subr.mxu0 0.0
        %972 = vmatpush1.msra.mxu0 %v955
        %973 = vmatprep.subr.mxu0 0.0
        %974 = vmatpush1.msra.mxu0 %v956
        %975 = vmatprep.subr.mxu0 0.0
        %976 = vmatpush1.msra.mxu0 %v957
        %977 = vmatprep.subr.mxu0 0.0
        %978 = vmatpush1.msra.mxu0 %v958
        %979 = vmatprep.subr.mxu0 0.0
        %980 = vmatpush1.msra.mxu0 0.0
        %981 = vmatprep.subr.mxu0 0.0
        %982 = vmatpush1.msra.mxu0 0.0
        %983 = vmatprep.subr.mxu0 0.0
        %984 = vmatpush1.msra.mxu0 0.0
        %985 = vmatprep.subr.mxu0 0.0
        %986 = vmatpush1.msra.mxu0 0.0
        %987 = vmatprep.subr.mxu0 0.0
        %988 = vmatpush1.msra.mxu0 0.0
        %989 = vmatprep.subr.mxu0 0.0
        %990 = vmatpush1.msra.mxu0 0.0
        %991 = vmatprep.subr.mxu0 0.0
        %992 = vmatpush1.msra.mxu0 0.0
        %993 = vmatprep.subr.mxu0 0.0
        %994 = vmatpush1.msra.mxu0 0.0
        %995 = vmatprep.subr.mxu0 0.0
        %996 = vmatpush1.msra.mxu0 0.0
        %997 = vmatprep.subr.mxu0 0.0
        %998 = vmatpush1.msra.mxu0 0.0
        %999 = vmatprep.subr.mxu0 0.0
        %1000 = vmatpush1.msra.mxu0 0.0
        %1001 = vmatprep.subr.mxu0 0.0
        %1002 = vmatpush1.msra.mxu0 0.0
        %1003 = vmatprep.subr.mxu0 0.0
        %1004 = vmatpush1.msra.mxu0 0.0
        %1005 = vmatprep.subr.mxu0 0.0
        %1006 = vmatpush1.msra.mxu0 0.0
        %1007 = vmatprep.subr.mxu0 0.0
        %1008 = vmatpush1.msra.mxu0 0.0
        %1009 = vmatprep.subr.mxu0 0.0
        %1010 = vmatpush1.msra.mxu0 0.0
        %1011 = vmatprep.subr.mxu0 0.0
        %1012 = vmatpush1.msra.mxu0 0.0
        %1013 = vmatprep.subr.mxu0 0.0
        %1014 = vmatpush1.msra.mxu0 0.0
        %1015 = vmatprep.subr.mxu0 0.0
        %1016 = vmatpush1.msra.mxu0 0.0
        %1017 = vmatprep.subr.mxu0 0.0
        %1018 = vmatpush1.msra.mxu0 0.0
        %1019 = vmatprep.subr.mxu0 0.0
        %1020 = vmatpush1.msra.mxu0 0.0
        %1021 = vmatprep.subr.mxu0 0.0
        %1022 = vmatpush1.msra.mxu0 0.0
        %1023 = vmatprep.subr.mxu0 0.0
        %1024 = vmatpush1.msra.mxu0 0.0
        %1025 = vmatprep.subr.mxu0 0.0
        %1026 = vmatpush1.msra.mxu0 0.0
        %1027 = vmatprep.mubr.f32.mxu0 0.0
        %1028 = vmatmul.mubr.f32.gmra.mrb[0].mxu0 %v961
        %v1029 = vpop.f32.mrb[0].mxu0
        %v1030 = vadd.f32 0.0, %v1029
        %v1031 = vpop.f32.mrb[0].mxu0
        %1032 = vdwg.mxu0
        %v1033 = vadd.f32 %v950, %v1030
        %1034 = vst.msk [vmem:[#allocation4] sm:$0xff] %vm867, %v1033
        // Predicated region
        $region105: #{siglip_encoder_layer.5} parent=59 // pred_check
          %p1035 = pneg %p571
        $region106: #{siglip_encoder_layer.5} parent=59 // pred_check_branch
          %1037 = sbr.rel (%p1035) target = $region108
        $region107: #{siglip_encoder_layer.5} parent=59 // pred_region
          %v1038 = vld [vmem:[#allocation2] sm:$0xff]
          %v1039 = vld [vmem:[#allocation4] sm:$0xff]
          %v1040 = vadd.f32 %v1038, %v1039
          %v1041 = vld [vmem:[#allocation20] sm:$0x1]
          %v1043 = vlaneseq
          %v1044 = vshrl.u32 %v1043, 7
          %v1045 = vsub.s32 0, %v1044
          %v1046 = vrot.slane %v1041, %v1045
          %v1048 = vadd.f32 %v1040, %v1046
          %1049 = vst.msk [vmem:[%s569] sm:$0xff] %vm867, %v1048
        $region108: #{siglip_encoder_layer.5} parent=59 // pred_fallthru
          _
        %s1050 = sand.u32 %s302, 1
        %s1051 = scalar_lea.sflag [#allocation7], %s1050
        %s1052 = sand.u32 %s302, 1
        %s1053 = smul.addr %s1052, 8
        %s1054 = scalar_lea.vmem [#allocation22], %s1053
        // Predicated region
        $region109: #{siglip_encoder_layer.5} parent=59 // pred_check
          %p1055 = pneg %p312
        $region110: #{siglip_encoder_layer.5} parent=59 // pred_check_branch
          %1057 = sbr.rel (%p1055) target = $region112
        $region111: #{siglip_encoder_layer.5} parent=59 // pred_region
          %s1059 = ssub.s32 128, 128
          %1060 = vsyncadd %s1051, %s1059
          %s1061 = sadd.s32 %s40, %s39
          %s1062 = smul.addr %s1061, 128
          %s1063 = scalar_lea.hbm %s10, %s1062
          %s1065 = sshll.u32 %s1054, 4
          %s1066 = int_to_ptr.vmem [resolvable:$true] %s1065
          %1068 = dma.vmem_to_hbm [thread:$0]  %s1066, 128, %s1063, %s1051
        $region112: #{siglip_encoder_layer.5} parent=59 // pred_fallthru
          _
      $region60: #{siglip_encoder_layer.5} parent=5 // pred_fallthru
        _
      %p1069 = scmp.le.s32.totalorder 2, %s29
      // Predicated region
      $region113: #{siglip_encoder_layer.5} parent=5 // pred_check
        %p1070 = pneg %p1069
      $region114: #{siglip_encoder_layer.5} parent=5 // pred_check_branch
        %1072 = sbr.rel (%p1070) target = $region116
      $region115: #{siglip_encoder_layer.5} parent=5 // pred_region
        %s1073 = ssub.s32 %s29, 2
        // Predicated region
        $region117: #{siglip_encoder_layer.5} parent=115 // pred_check
          %p1074 = pneg %p318
        $region118: #{siglip_encoder_layer.5} parent=115 // pred_check_branch
          %1076 = sbr.rel (%p1074) target = $region120
        $region119: #{siglip_encoder_layer.5} parent=115 // pred_region
          %s1077 = sand.u32 %s303, 1
          %s1078 = scalar_lea.sflag [#allocation7], %s1077
          %s1079 = sand.u32 %s303, 1
          %s1080 = smul.addr %s1079, 8
          %s1081 = scalar_lea.vmem [#allocation22], %s1080
          %1082 = dma.done %s1078, 128
        $region120: #{siglip_encoder_layer.5} parent=115 // pred_fallthru
          _
      $region116: #{siglip_encoder_layer.5} parent=5 // pred_fallthru
        _
    $region6: #{siglip_encoder_layer.5} parent=1 // loop_footer
      %s33 = sadd.s32 1, %s29
    $region7: #{siglip_encoder_layer.5} parent=1 // loop_footer_branch
      %28 = sbr.rel target = $region3
    $region8: #{siglip_encoder_layer.5} parent=1 // loop_exit
      _
    %1083 = vsyncpa [#allocation6], 1
    %s1084 = scalar_lea.sflag [#allocation6], 1
    %1085 = vsyncpa %s1084, 1
    %1086 = vsyncpa [#allocation9], 1
    %s1087 = scalar_lea.sflag [#allocation9], 1
    %1088 = vsyncpa %s1087, 1
    %1089 = vsyncpa [#allocation12], 1
    %1090 = vsyncpa [#allocation15], 1
    %1091 = vsyncpa [#allocation18], 1
    %1092 = vsyncpa [#allocation21], 1
    %1093 = vsyncpa [#allocation7], 1
    %s1094 = scalar_lea.sflag [#allocation7], 1
    %1095 = vsyncpa %s1094, 1

</llo_original>
